<compile_context>
chip_gen: v7x
topology: tpu7x:2x2x1
jax: 0.10.0
libtpu: 0.0.40
codegen_flags: <defaults>
</compile_context>

<pallas_src>
import numpy as np
import jax
import jax.numpy as jnp
from jax import lax
from jax.experimental import pallas as pl
from jax.experimental.pallas import tpu as pltpu


# --------------------------------------------------------------------------- #
# host-side precompute
# --------------------------------------------------------------------------- #

def _pool1d(n):
    """1-D factor of AvgPool2d(k=3, stride=2, pad=1, count_include_pad=True)."""
    no = (n + 2 - 3) // 2 + 1
    p = np.zeros((no, n), np.float32)
    for o in range(no):
        for d in range(3):
            i = 2 * o + d - 1
            if 0 <= i < n:
                p[o, i] = 1.0 / 3.0
    return p, no


def init_params(key, cond_c=3, nf=64):
    """Deterministic synthetic parameters matching ConditionNetDDFALL shapes.

    All conv/linear weights are stored channels-last: shape (Cin, Cout).
    """
    block_defs = [(3, 16, True), (16, 32, True), (32, 64, True),
                  (64, 128, True), (128, 128, False)]
    blocks = []
    for cin, cout, norm in block_defs:
        key, k1, k2, k3, k4 = jax.random.split(key, 5)
        blocks.append(dict(
            w=jax.random.normal(k1, (cin, cout), jnp.float32) * 0.1,
            b=jax.random.normal(k2, (cout,), jnp.float32) * 0.01,
            gamma=1.0 + 0.1 * jax.random.normal(k3, (cout,), jnp.float32),
            beta=0.1 * jax.random.normal(k4, (cout,), jnp.float32),
            norm=norm))
    key, k1, k2 = jax.random.split(key, 3)
    raw = dict(
        blocks=blocks,
        wc=jax.random.normal(k1, (128, cond_c), jnp.float32) * 0.1,   # Conv2d(128, cond_c, 1)
        bc=jax.random.normal(k2, (cond_c,), jnp.float32) * 0.01,
    )
    for name, dim in (("scale_first", nf), ("shift_first", nf),
                      ("scale_HR", nf), ("shift_HR", nf),
                      ("scale_last", 3), ("shift_last", 3)):
        key, k1, k2 = jax.random.split(key, 3)
        raw[name] = (jax.random.normal(k1, (cond_c, dim), jnp.float32) * 0.1,
                     jax.random.normal(k2, (dim,), jnp.float32) * 0.01)
    for name, cin, cout in (("1", 3, nf), ("2", nf, nf), ("3", nf, 3)):
        key, k1, k2 = jax.random.split(key, 3)
        raw["w" + name] = jax.random.normal(k1, (cin, cout), jnp.float32) * 0.1
        raw["b" + name] = jax.random.normal(k2, (cout,), jnp.float32) * 0.01
    return raw


_MOD_NAMES = ("scale_first", "shift_first", "scale_HR", "shift_HR",
              "scale_last", "shift_last")


def build_kernel_operands(raw, hq, wq):
    """Flatten parameters into the exact operand order the fused kernel consumes."""
    flat = []
    norm_flags = []
    h, w = hq, wq
    for blk in raw["blocks"]:
        wmat = np.asarray(blk["w"], np.float32)
        bvec = np.asarray(blk["b"], np.float32)
        cin, cout = wmat.shape
        ph, ho = _pool1d(h)
        pw, wo = _pool1d(w)
        qw = np.kron(pw.T, np.eye(cin, dtype=np.float32))          # (w*cin, wo*cin)  pool over W
        wk = np.kron(np.eye(wo, dtype=np.float32), wmat)           # (wo*cin, wo*cout) 1x1 conv
        q_fused = (qw @ wk).astype(np.float32)                     # fused: pool-W + conv
        rs_h, rs_w = ph.sum(1), pw.sum(1)                          # pooling row-sums (<1 at borders)
        bg = (rs_h[:, None, None] * rs_w[None, :, None]
              * bvec[None, None, :]).reshape(ho, wo * cout).astype(np.float32)
        flat += [ph, q_fused, bg]
        norm_flags.append(bool(blk["norm"]))
        if blk["norm"]:
            ssum = np.kron(np.ones((wo, 1), np.float32),
                           np.eye(cout, dtype=np.float32))          # (wo*cout, cout): sum wo-groups
            flat += [ssum, np.ascontiguousarray(ssum.T),
                     np.asarray(blk["gamma"], np.float32).reshape(1, cout),
                     np.asarray(blk["beta"], np.float32).reshape(1, cout)]
        h, w = ho, wo

    # ---- fold head (Dropout->Conv1x1->AdaptiveAvgPool) + all 6 Linears ------
    # mods_col = A @ rowsum(x5)^T + bmod, with every per-image modulation
    # vector stacked (8-row aligned) along the rows of A / bmod.
    c_last = np.asarray(raw["blocks"][-1]["w"]).shape[1]
    npix = h * w
    ssum_h = np.kron(np.ones((w, 1), np.float32), np.eye(c_last, dtype=np.float32))
    wc = np.asarray(raw["wc"], np.float32)
    bc = np.asarray(raw["bc"], np.float32).reshape(-1, 1)
    mod_offs, mod_sizes = [], []
    wt_rows, b_rows = [], []
    rows = 0
    for nm in _MOD_NAMES:
        wl = np.asarray(raw[nm][0], np.float32)                    # (cond_c, dim)
        bl = np.asarray(raw[nm][1], np.float32).reshape(-1)
        d = wl.shape[1]
        pad = (-d) % 8                                             # keep slice starts 8-aligned
        mod_offs.append(rows)
        mod_sizes.append(d)
        wt_rows.append(np.concatenate(
            [wl.T, np.zeros((pad, wl.shape[0]), np.float32)], axis=0))
        b_rows.append(np.concatenate([bl, np.zeros((pad,), np.float32)], axis=0))
        rows += d + pad
    w_all_t = np.concatenate(wt_rows, axis=0)                      # (rows, cond_c)
    b_all = np.concatenate(b_rows, axis=0).reshape(rows, 1)
    a_mod = (w_all_t @ wc.T @ ssum_h.T / npix).astype(np.float32)  # (rows, w*c_last)
    b_mod = (w_all_t @ bc + b_all).astype(np.float32)              # (rows, 1)
    flat += [a_mod, b_mod]

    # ---- content path weights: channel-major (Cout, Cin) + bias columns -----
    for name in ("1", "2", "3"):
        wm = np.asarray(raw["w" + name], np.float32)               # (cin, cout)
        bv = np.asarray(raw["b" + name], np.float32)
        flat += [np.ascontiguousarray(wm.T), bv.reshape(-1, 1)]

    return ([jnp.asarray(a) for a in flat], tuple(norm_flags),
            tuple(mod_offs), tuple(mod_sizes))


# --------------------------------------------------------------------------- #
# fused Pallas kernel (one grid step = one image)
# --------------------------------------------------------------------------- #

def _make_fused_kernel(norm_flags, mod_offs, mod_sizes):
    def kernel(cond_ref, content_ref, *rest):
        *prefs, out_ref = rest
        it = iter(prefs)
        nxt = lambda: next(it)[...]
        f32 = jnp.float32

        # ---- classifier: Color_ConditionDF (DDFPack == identity) ------------
        # activations kept in (H, W*C) channels-minor layout; all dots run at
        # DEFAULT MXU precision (single bf16 pass, f32 accumulate).
        x = cond_ref[0]
        for has_norm in norm_flags:
            ph, q, bg = nxt(), nxt(), nxt()
            # separable AvgPool folded with the (linear) 1x1 conv:
            #   pool over H (ph), then one fused dot for pool-over-W + conv.
            # Border bias scaling (count_include_pad) is folded into bg.
            z = jnp.dot(ph, x, preferred_element_type=f32)           # pool over H
            y = jnp.dot(z, q, preferred_element_type=f32) + bg       # pool W + conv + bias
            y = jnp.where(y >= 0.0, y, 0.2 * y)                      # LeakyReLU(0.2)
            if has_norm:                                             # InstanceNorm2d(affine)
                ssum, stile, gamma, beta = nxt(), nxt(), nxt(), nxt()
                cout = gamma.shape[1]
                inv_npix = 1.0 / (y.shape[0] * (y.shape[1] // cout))
                m1 = jnp.dot(jnp.sum(y, axis=0, keepdims=True), ssum,
                             preferred_element_type=f32) * inv_npix   # E[y]   per channel
                m2 = jnp.dot(jnp.sum(y * y, axis=0, keepdims=True), ssum,
                             preferred_element_type=f32) * inv_npix   # E[y^2] per channel
                var = jnp.maximum(m2 - m1 * m1, 0.0)
                scale = gamma * lax.rsqrt(var + 1e-5)
                shift = beta - m1 * scale
                y = (y * jnp.dot(scale, stile, preferred_element_type=f32)
                     + jnp.dot(shift, stile, preferred_element_type=f32))
            x = y

        # ---- head + 6 conditioning Linears, fully folded on the host --------
        # Dropout (eval: identity) -> Conv1x1 -> AdaptiveAvgPool -> 6 Linears
        # == A @ rowsum(x)^T + bmod.  Computed as a VPU multiply + XLU lane
        # reduction: zero MXU round-trips on this part of the critical path.
        a_mod, b_mod = nxt(), nxt()
        rsum = jnp.sum(x, axis=0, keepdims=True)                      # (1, Wl*Cl)
        mods = jnp.sum(a_mod * rsum, axis=1, keepdims=True) + b_mod   # (rows, 1) column

        def mod(i):                                                   # 8-aligned static slices
            off, size = mod_offs[i], mod_sizes[i]
            return mods[off:off + size, :]

        # ---- content path: channel-major (C, HW), lane-dense ----------------
        # GFM "out*scale + shift + out" == out*(scale+1) + shift; the per-image
        # (scale+1) is folded into the conv weight ROWS (tiny (Cout,Cin) mul)
        # instead of the (Cout, HW) activation.  DDFPack == identity.
        o = content_ref[0]                                            # (3, HW)
        for i in range(3):
            wt, bcol = nxt(), nxt()
            s = mod(2 * i) + 1.0                                      # (Cout, 1)
            o = (jnp.dot(wt * s, o, preferred_element_type=f32)
                 + (bcol * s + mod(2 * i + 1)))
            if i < 2:                                                 # ReLU after first/HR conv
                o = jnp.maximum(o, 0.0)
        out_ref[0] = o                                                # (3, HW) lane-dense store

    return kernel


def condition_net_ddfall_forward(content, condition, raw):
    """ConditionNetDDFALL.forward((content, condition)) as a single fused pallas_call."""
    n, c_in, hc, wc_px = content.shape
    _, cq, hq, wq = condition.shape
    cond_l = jnp.transpose(condition, (0, 2, 3, 1)).reshape(n, hq, wq * cq)  # (N, H, W*C)
    cont_l = content.reshape(n, c_in, hc * wc_px)                            # (N, C, HW) channel-major
    operands, norm_flags, mod_offs, mod_sizes = build_kernel_operands(raw, hq, wq)
    out_c = np.asarray(raw["w3"]).shape[1]

    in_specs = ([pl.BlockSpec((1, hq, wq * cq), lambda i: (i, 0, 0)),
                 pl.BlockSpec((1, c_in, hc * wc_px), lambda i: (i, 0, 0))]
                + [pl.BlockSpec(p.shape, lambda i: (0, 0)) for p in operands])

    out = pl.pallas_call(
        _make_fused_kernel(norm_flags, mod_offs, mod_sizes),
        out_shape=jax.ShapeDtypeStruct((n, out_c, hc * wc_px), jnp.float32),
        grid=(n,),
        in_specs=in_specs,
        out_specs=pl.BlockSpec((1, out_c, hc * wc_px), lambda i: (i, 0, 0)),
        compiler_params=pltpu.CompilerParams(dimension_semantics=("parallel",)),
    )(cond_l, cont_l, *operands)
    return out.reshape(n, out_c, hc, wc_px)


# --------------------------------------------------------------------------- #
# pure-JAX reference (same semantics: DDFPack identity, eval-mode dropout)
# --------------------------------------------------------------------------- #

def reference_forward(content, condition, raw):
    hi = lax.Precision.HIGHEST
    x = jnp.transpose(condition, (0, 2, 3, 1))
    for blk in raw["blocks"]:
        y = jnp.einsum("nhwc,cd->nhwd", x, blk["w"], precision=hi) + blk["b"]
        y = lax.reduce_window(y, np.float32(0.0), lax.add,
                              (1, 3, 3, 1), (1, 2, 2, 1),
                              [(0, 0), (1, 1), (1, 1), (0, 0)]) / 9.0
        y = jnp.where(y >= 0.0, y, 0.2 * y)
        if blk["norm"]:
            mean = jnp.mean(y, axis=(1, 2), keepdims=True)
            var = jnp.mean((y - mean) ** 2, axis=(1, 2), keepdims=True)
            y = (y - mean) * lax.rsqrt(var + 1e-5) * blk["gamma"] + blk["beta"]
        x = y
    t = jnp.einsum("nhwc,cd->nhwd", x, raw["wc"], precision=hi) + raw["bc"]
    fea = jnp.mean(t, axis=(1, 2))

    def lin(name):
        wl, bl = raw[name]
        return jnp.dot(fea, wl, precision=hi) + bl

    sf, hf = lin("scale_first"), lin("shift_first")
    shr, hhr = lin("scale_HR"), lin("shift_HR")
    sl, hl = lin("scale_last"), lin("shift_last")
    o = jnp.transpose(content, (0, 2, 3, 1))
    o = jnp.einsum("nhwc,cd->nhwd", o, raw["w1"], precision=hi) + raw["b1"]
    o = jnp.maximum(o * (sf[:, None, None, :] + 1.0) + hf[:, None, None, :], 0.0)
    o = jnp.einsum("nhwc,cd->nhwd", o, raw["w2"], precision=hi) + raw["b2"]
    o = jnp.maximum(o * (shr[:, None, None, :] + 1.0) + hhr[:, None, None, :], 0.0)
    o = jnp.einsum("nhwc,cd->nhwd", o, raw["w3"], precision=hi) + raw["b3"]
    o = o * (sl[:, None, None, :] + 1.0) + hl[:, None, None, :]
    return jnp.transpose(o, (0, 3, 1, 2))


if __name__ == "__main__":
    key = jax.random.PRNGKey(0)
    key, k_content, k_cond = jax.random.split(key, 3)
    n = 2
    content = jax.random.normal(k_content, (n, 3, 16, 16), jnp.float32)
    condition = jax.random.normal(k_cond, (n, 3, 32, 32), jnp.float32)
    raw = init_params(key, cond_c=3, nf=64)

    out = condition_net_ddfall_forward(content, condition, raw)
    out = jax.block_until_ready(out)

    assert out.shape == (n, 3, 16, 16), out.shape
    assert bool(jnp.all(jnp.isfinite(out)))

    ref = reference_forward(content, condition, raw)
    err = float(jnp.max(jnp.abs(out - ref)))
    # Kernel dots run at DEFAULT (bf16-pass) MXU precision, the reference at
    # HIGHEST f32: 5e-2 absolute covers that gap at these magnitudes while
    # still catching real bugs (which show up as O(0.1-1) errors).
    assert err < 5e-2, f"max |pallas - reference| = {err}"
    print("KERNEL_OK")
</pallas_src>

<mosaic_0001>
module attributes {stable_mosaic.version = 11 : i64} {
  func.func @kernel(%arg0: i32, %arg1: memref<1x32x96xf32, #tpu.memory_space<vmem>>, %arg2: memref<1x3x256xf32, #tpu.memory_space<vmem>>, %arg3: memref<16x32xf32, #tpu.memory_space<vmem>>, %arg4: memref<96x256xf32, #tpu.memory_space<vmem>>, %arg5: memref<16x256xf32, #tpu.memory_space<vmem>>, %arg6: memref<256x16xf32, #tpu.memory_space<vmem>>, %arg7: memref<16x256xf32, #tpu.memory_space<vmem>>, %arg8: memref<1x16xf32, #tpu.memory_space<vmem>>, %arg9: memref<1x16xf32, #tpu.memory_space<vmem>>, %arg10: memref<8x16xf32, #tpu.memory_space<vmem>>, %arg11: memref<256x256xf32, #tpu.memory_space<vmem>>, %arg12: memref<8x256xf32, #tpu.memory_space<vmem>>, %arg13: memref<256x32xf32, #tpu.memory_space<vmem>>, %arg14: memref<32x256xf32, #tpu.memory_space<vmem>>, %arg15: memref<1x32xf32, #tpu.memory_space<vmem>>, %arg16: memref<1x32xf32, #tpu.memory_space<vmem>>, %arg17: memref<4x8xf32, #tpu.memory_space<vmem>>, %arg18: memref<256x256xf32, #tpu.memory_space<vmem>>, %arg19: memref<4x256xf32, #tpu.memory_space<vmem>>, %arg20: memref<256x64xf32, #tpu.memory_space<vmem>>, %arg21: memref<64x256xf32, #tpu.memory_space<vmem>>, %arg22: memref<1x64xf32, #tpu.memory_space<vmem>>, %arg23: memref<1x64xf32, #tpu.memory_space<vmem>>, %arg24: memref<2x4xf32, #tpu.memory_space<vmem>>, %arg25: memref<256x256xf32, #tpu.memory_space<vmem>>, %arg26: memref<2x256xf32, #tpu.memory_space<vmem>>, %arg27: memref<256x128xf32, #tpu.memory_space<vmem>>, %arg28: memref<128x256xf32, #tpu.memory_space<vmem>>, %arg29: memref<1x128xf32, #tpu.memory_space<vmem>>, %arg30: memref<1x128xf32, #tpu.memory_space<vmem>>, %arg31: memref<1x2xf32, #tpu.memory_space<vmem>>, %arg32: memref<256x128xf32, #tpu.memory_space<vmem>>, %arg33: memref<1x128xf32, #tpu.memory_space<vmem>>, %arg34: memref<272x128xf32, #tpu.memory_space<vmem>>, %arg35: memref<272x1xf32, #tpu.memory_space<vmem>>, %arg36: memref<64x3xf32, #tpu.memory_space<vmem>>, %arg37: memref<64x1xf32, #tpu.memory_space<vmem>>, %arg38: memref<64x64xf32, #tpu.memory_space<vmem>>, %arg39: memref<64x1xf32, #tpu.memory_space<vmem>>, %arg40: memref<3x64xf32, #tpu.memory_space<vmem>>, %arg41: memref<3x1xf32, #tpu.memory_space<vmem>>, %arg42: memref<1x3x256xf32, #tpu.memory_space<vmem>>) attributes {dimension_semantics = [#tpu.dimension_semantics<parallel>], iteration_bounds = array<i64: 2>, scalar_prefetch = 0 : i64, scratch_operands = 0 : i64, tpu.core_type = #tpu.core_type<tc>, window_params = [{transform_indices = @transform_0, window_bounds = array<i64: 1, 32, 96>}, {transform_indices = @transform_1, window_bounds = array<i64: 1, 3, 256>}, {pipeline_mode = #tpu.pipeline_mode<synchronous>, transform_indices = @transform_2, window_bounds = array<i64: 16, 32>}, {pipeline_mode = #tpu.pipeline_mode<synchronous>, transform_indices = @transform_3, window_bounds = array<i64: 96, 256>}, {pipeline_mode = #tpu.pipeline_mode<synchronous>, transform_indices = @transform_4, window_bounds = array<i64: 16, 256>}, {pipeline_mode = #tpu.pipeline_mode<synchronous>, transform_indices = @transform_5, window_bounds = array<i64: 256, 16>}, {pipeline_mode = #tpu.pipeline_mode<synchronous>, transform_indices = @transform_6, window_bounds = array<i64: 16, 256>}, {pipeline_mode = #tpu.pipeline_mode<synchronous>, transform_indices = @transform_7, window_bounds = array<i64: 1, 16>}, {pipeline_mode = #tpu.pipeline_mode<synchronous>, transform_indices = @transform_8, window_bounds = array<i64: 1, 16>}, {pipeline_mode = #tpu.pipeline_mode<synchronous>, transform_indices = @transform_9, window_bounds = array<i64: 8, 16>}, {pipeline_mode = #tpu.pipeline_mode<synchronous>, transform_indices = @transform_10, window_bounds = array<i64: 256, 256>}, {pipeline_mode = #tpu.pipeline_mode<synchronous>, transform_indices = @transform_11, window_bounds = array<i64: 8, 256>}, {pipeline_mode = #tpu.pipeline_mode<synchronous>, transform_indices = @transform_12, window_bounds = array<i64: 256, 32>}, {pipeline_mode = #tpu.pipeline_mode<synchronous>, transform_indices = @transform_13, window_bounds = array<i64: 32, 256>}, {pipeline_mode = #tpu.pipeline_mode<synchronous>, transform_indices = @transform_14, window_bounds = array<i64: 1, 32>}, {pipeline_mode = #tpu.pipeline_mode<synchronous>, transform_indices = @transform_15, window_bounds = array<i64: 1, 32>}, {pipeline_mode = #tpu.pipeline_mode<synchronous>, transform_indices = @transform_16, window_bounds = array<i64: 4, 8>}, {pipeline_mode = #tpu.pipeline_mode<synchronous>, transform_indices = @transform_17, window_bounds = array<i64: 256, 256>}, {pipeline_mode = #tpu.pipeline_mode<synchronous>, transform_indices = @transform_18, window_bounds = array<i64: 4, 256>}, {pipeline_mode = #tpu.pipeline_mode<synchronous>, transform_indices = @transform_19, window_bounds = array<i64: 256, 64>}, {pipeline_mode = #tpu.pipeline_mode<synchronous>, transform_indices = @transform_20, window_bounds = array<i64: 64, 256>}, {pipeline_mode = #tpu.pipeline_mode<synchronous>, transform_indices = @transform_21, window_bounds = array<i64: 1, 64>}, {pipeline_mode = #tpu.pipeline_mode<synchronous>, transform_indices = @transform_22, window_bounds = array<i64: 1, 64>}, {pipeline_mode = #tpu.pipeline_mode<synchronous>, transform_indices = @transform_23, window_bounds = array<i64: 2, 4>}, {pipeline_mode = #tpu.pipeline_mode<synchronous>, transform_indices = @transform_24, window_bounds = array<i64: 256, 256>}, {pipeline_mode = #tpu.pipeline_mode<synchronous>, transform_indices = @transform_25, window_bounds = array<i64: 2, 256>}, {pipeline_mode = #tpu.pipeline_mode<synchronous>, transform_indices = @transform_26, window_bounds = array<i64: 256, 128>}, {pipeline_mode = #tpu.pipeline_mode<synchronous>, transform_indices = @transform_27, window_bounds = array<i64: 128, 256>}, {pipeline_mode = #tpu.pipeline_mode<synchronous>, transform_indices = @transform_28, window_bounds = array<i64: 1, 128>}, {pipeline_mode = #tpu.pipeline_mode<synchronous>, transform_indices = @transform_29, window_bounds = array<i64: 1, 128>}, {pipeline_mode = #tpu.pipeline_mode<synchronous>, transform_indices = @transform_30, window_bounds = array<i64: 1, 2>}, {pipeline_mode = #tpu.pipeline_mode<synchronous>, transform_indices = @transform_31, window_bounds = array<i64: 256, 128>}, {pipeline_mode = #tpu.pipeline_mode<synchronous>, transform_indices = @transform_32, window_bounds = array<i64: 1, 128>}, {pipeline_mode = #tpu.pipeline_mode<synchronous>, transform_indices = @transform_33, window_bounds = array<i64: 272, 128>}, {pipeline_mode = #tpu.pipeline_mode<synchronous>, transform_indices = @transform_34, window_bounds = array<i64: 272, 1>}, {pipeline_mode = #tpu.pipeline_mode<synchronous>, transform_indices = @transform_35, window_bounds = array<i64: 64, 3>}, {pipeline_mode = #tpu.pipeline_mode<synchronous>, transform_indices = @transform_36, window_bounds = array<i64: 64, 1>}, {pipeline_mode = #tpu.pipeline_mode<synchronous>, transform_indices = @transform_37, window_bounds = array<i64: 64, 64>}, {pipeline_mode = #tpu.pipeline_mode<synchronous>, transform_indices = @transform_38, window_bounds = array<i64: 64, 1>}, {pipeline_mode = #tpu.pipeline_mode<synchronous>, transform_indices = @transform_39, window_bounds = array<i64: 3, 64>}, {pipeline_mode = #tpu.pipeline_mode<synchronous>, transform_indices = @transform_40, window_bounds = array<i64: 3, 1>}, {transform_indices = @transform_41, window_bounds = array<i64: 1, 3, 256>}]} {
    %c0 = arith.constant 0 : index
    %c0_0 = arith.constant 0 : index
    %c0_1 = arith.constant 0 : index
    %0 = vector.load %arg1[%c0, %c0_0, %c0_1] : memref<1x32x96xf32, #tpu.memory_space<vmem>>, vector<1x32x96xf32>
    %1 = vector.shape_cast %0 : vector<1x32x96xf32> to vector<32x96xf32>
    %c0_2 = arith.constant 0 : index
    %c0_3 = arith.constant 0 : index
    %2 = vector.load %arg3[%c0_2, %c0_3] : memref<16x32xf32, #tpu.memory_space<vmem>>, vector<16x32xf32>
    %c0_4 = arith.constant 0 : index
    %c0_5 = arith.constant 0 : index
    %3 = vector.load %arg4[%c0_4, %c0_5] : memref<96x256xf32, #tpu.memory_space<vmem>>, vector<96x256xf32>
    %c0_6 = arith.constant 0 : index
    %c0_7 = arith.constant 0 : index
    %4 = vector.load %arg5[%c0_6, %c0_7] : memref<16x256xf32, #tpu.memory_space<vmem>>, vector<16x256xf32>
    %cst = arith.constant dense<0.000000e+00> : vector<16x96xf32>
    %5 = tpu.matmul %2, %1, %cst {dimension_numbers = #tpu.dot_dimension_numbers<[1], [0], [0], [1], [0, 0, 1, 1], [], []>} : vector<16x32xf32>, vector<32x96xf32>, vector<16x96xf32> -> vector<16x96xf32>
    %cst_8 = arith.constant dense<0.000000e+00> : vector<16x256xf32>
    %6 = tpu.matmul %5, %3, %cst_8 {dimension_numbers = #tpu.dot_dimension_numbers<[1], [0], [0], [1], [0, 0, 1, 1], [], []>} : vector<16x96xf32>, vector<96x256xf32>, vector<16x256xf32> -> vector<16x256xf32>
    %7 = arith.addf %6, %4 : vector<16x256xf32>
    %cst_9 = arith.constant 0.000000e+00 : f32
    %8 = vector.broadcast %cst_9 : f32 to vector<16x256xf32>
    %9 = arith.cmpf oge, %7, %8 : vector<16x256xf32>
    %cst_10 = arith.constant 2.000000e-01 : f32
    %10 = vector.broadcast %cst_10 : f32 to vector<16x256xf32>
    %11 = arith.mulf %10, %7 : vector<16x256xf32>
    %12 = arith.select %9, %7, %11 : vector<16x256xi1>, vector<16x256xf32>
    %c0_11 = arith.constant 0 : index
    %c0_12 = arith.constant 0 : index
    %13 = vector.load %arg6[%c0_11, %c0_12] : memref<256x16xf32, #tpu.memory_space<vmem>>, vector<256x16xf32>
    %c0_13 = arith.constant 0 : index
    %c0_14 = arith.constant 0 : index
    %14 = vector.load %arg7[%c0_13, %c0_14] : memref<16x256xf32, #tpu.memory_space<vmem>>, vector<16x256xf32>
    %c0_15 = arith.constant 0 : index
    %c0_16 = arith.constant 0 : index
    %15 = vector.load %arg8[%c0_15, %c0_16] : memref<1x16xf32, #tpu.memory_space<vmem>>, vector<1x16xf32>
    %c0_17 = arith.constant 0 : index
    %c0_18 = arith.constant 0 : index
    %16 = vector.load %arg9[%c0_17, %c0_18] : memref<1x16xf32, #tpu.memory_space<vmem>>, vector<1x16xf32>
    %cst_19 = arith.constant dense<0.000000e+00> : vector<256xf32>
    %17 = vector.multi_reduction <add>, %12, %cst_19 [0] : vector<16x256xf32> to vector<256xf32>
    %18 = vector.shape_cast %17 : vector<256xf32> to vector<1x256xf32>
    %cst_20 = arith.constant dense<0.000000e+00> : vector<1x16xf32>
    %19 = tpu.matmul %18, %13, %cst_20 {dimension_numbers = #tpu.dot_dimension_numbers<[1], [0], [0], [1], [0, 0, 1, 1], [], []>} : vector<1x256xf32>, vector<256x16xf32>, vector<1x16xf32> -> vector<1x16xf32>
    %cst_21 = arith.constant 3.906250e-03 : f32
    %20 = vector.broadcast %cst_21 : f32 to vector<1x16xf32>
    %21 = arith.mulf %19, %20 : vector<1x16xf32>
    %22 = arith.mulf %12, %12 : vector<16x256xf32>
    %cst_22 = arith.constant dense<0.000000e+00> : vector<256xf32>
    %23 = vector.multi_reduction <add>, %22, %cst_22 [0] : vector<16x256xf32> to vector<256xf32>
    %24 = vector.shape_cast %23 : vector<256xf32> to vector<1x256xf32>
    %cst_23 = arith.constant dense<0.000000e+00> : vector<1x16xf32>
    %25 = tpu.matmul %24, %13, %cst_23 {dimension_numbers = #tpu.dot_dimension_numbers<[1], [0], [0], [1], [0, 0, 1, 1], [], []>} : vector<1x256xf32>, vector<256x16xf32>, vector<1x16xf32> -> vector<1x16xf32>
    %cst_24 = arith.constant 3.906250e-03 : f32
    %26 = vector.broadcast %cst_24 : f32 to vector<1x16xf32>
    %27 = arith.mulf %25, %26 : vector<1x16xf32>
    %28 = arith.mulf %21, %21 : vector<1x16xf32>
    %29 = arith.subf %27, %28 : vector<1x16xf32>
    %cst_25 = arith.constant 0.000000e+00 : f32
    %30 = vector.broadcast %cst_25 : f32 to vector<1x16xf32>
    %31 = arith.maximumf %29, %30 : vector<1x16xf32>
    %cst_26 = arith.constant 9.99999974E-6 : f32
    %32 = vector.broadcast %cst_26 : f32 to vector<1x16xf32>
    %33 = arith.addf %31, %32 : vector<1x16xf32>
    %34 = math.rsqrt %33 : vector<1x16xf32>
    %35 = arith.mulf %15, %34 : vector<1x16xf32>
    %36 = arith.mulf %21, %35 : vector<1x16xf32>
    %37 = arith.subf %16, %36 : vector<1x16xf32>
    %cst_27 = arith.constant dense<0.000000e+00> : vector<1x256xf32>
    %38 = tpu.matmul %35, %14, %cst_27 {dimension_numbers = #tpu.dot_dimension_numbers<[1], [0], [0], [1], [0, 0, 1, 1], [], []>} : vector<1x16xf32>, vector<16x256xf32>, vector<1x256xf32> -> vector<1x256xf32>
    %39 = vector.broadcast %38 : vector<1x256xf32> to vector<16x256xf32>
    %40 = arith.mulf %12, %39 : vector<16x256xf32>
    %cst_28 = arith.constant dense<0.000000e+00> : vector<1x256xf32>
    %41 = tpu.matmul %37, %14, %cst_28 {dimension_numbers = #tpu.dot_dimension_numbers<[1], [0], [0], [1], [0, 0, 1, 1], [], []>} : vector<1x16xf32>, vector<16x256xf32>, vector<1x256xf32> -> vector<1x256xf32>
    %42 = vector.broadcast %41 : vector<1x256xf32> to vector<16x256xf32>
    %43 = arith.addf %40, %42 : vector<16x256xf32>
    %c0_29 = arith.constant 0 : index
    %c0_30 = arith.constant 0 : index
    %44 = vector.load %arg10[%c0_29, %c0_30] : memref<8x16xf32, #tpu.memory_space<vmem>>, vector<8x16xf32>
    %c0_31 = arith.constant 0 : index
    %c0_32 = arith.constant 0 : index
    %45 = vector.load %arg11[%c0_31, %c0_32] : memref<256x256xf32, #tpu.memory_space<vmem>>, vector<256x256xf32>
    %c0_33 = arith.constant 0 : index
    %c0_34 = arith.constant 0 : index
    %46 = vector.load %arg12[%c0_33, %c0_34] : memref<8x256xf32, #tpu.memory_space<vmem>>, vector<8x256xf32>
    %cst_35 = arith.constant dense<0.000000e+00> : vector<8x256xf32>
    %47 = tpu.matmul %44, %43, %cst_35 {dimension_numbers = #tpu.dot_dimension_numbers<[1], [0], [0], [1], [0, 0, 1, 1], [], []>} : vector<8x16xf32>, vector<16x256xf32>, vector<8x256xf32> -> vector<8x256xf32>
    %cst_36 = arith.constant dense<0.000000e+00> : vector<8x256xf32>
    %48 = tpu.matmul %47, %45, %cst_36 {dimension_numbers = #tpu.dot_dimension_numbers<[1], [0], [0], [1], [0, 0, 1, 1], [], []>} : vector<8x256xf32>, vector<256x256xf32>, vector<8x256xf32> -> vector<8x256xf32>
    %49 = arith.addf %48, %46 : vector<8x256xf32>
    %cst_37 = arith.constant 0.000000e+00 : f32
    %50 = vector.broadcast %cst_37 : f32 to vector<8x256xf32>
    %51 = arith.cmpf oge, %49, %50 : vector<8x256xf32>
    %cst_38 = arith.constant 2.000000e-01 : f32
    %52 = vector.broadcast %cst_38 : f32 to vector<8x256xf32>
    %53 = arith.mulf %52, %49 : vector<8x256xf32>
    %54 = arith.select %51, %49, %53 : vector<8x256xi1>, vector<8x256xf32>
    %c0_39 = arith.constant 0 : index
    %c0_40 = arith.constant 0 : index
    %55 = vector.load %arg13[%c0_39, %c0_40] : memref<256x32xf32, #tpu.memory_space<vmem>>, vector<256x32xf32>
    %c0_41 = arith.constant 0 : index
    %c0_42 = arith.constant 0 : index
    %56 = vector.load %arg14[%c0_41, %c0_42] : memref<32x256xf32, #tpu.memory_space<vmem>>, vector<32x256xf32>
    %c0_43 = arith.constant 0 : index
    %c0_44 = arith.constant 0 : index
    %57 = vector.load %arg15[%c0_43, %c0_44] : memref<1x32xf32, #tpu.memory_space<vmem>>, vector<1x32xf32>
    %c0_45 = arith.constant 0 : index
    %c0_46 = arith.constant 0 : index
    %58 = vector.load %arg16[%c0_45, %c0_46] : memref<1x32xf32, #tpu.memory_space<vmem>>, vector<1x32xf32>
    %cst_47 = arith.constant dense<0.000000e+00> : vector<256xf32>
    %59 = vector.multi_reduction <add>, %54, %cst_47 [0] : vector<8x256xf32> to vector<256xf32>
    %60 = vector.shape_cast %59 : vector<256xf32> to vector<1x256xf32>
    %cst_48 = arith.constant dense<0.000000e+00> : vector<1x32xf32>
    %61 = tpu.matmul %60, %55, %cst_48 {dimension_numbers = #tpu.dot_dimension_numbers<[1], [0], [0], [1], [0, 0, 1, 1], [], []>} : vector<1x256xf32>, vector<256x32xf32>, vector<1x32xf32> -> vector<1x32xf32>
    %cst_49 = arith.constant 1.562500e-02 : f32
    %62 = vector.broadcast %cst_49 : f32 to vector<1x32xf32>
    %63 = arith.mulf %61, %62 : vector<1x32xf32>
    %64 = arith.mulf %54, %54 : vector<8x256xf32>
    %cst_50 = arith.constant dense<0.000000e+00> : vector<256xf32>
    %65 = vector.multi_reduction <add>, %64, %cst_50 [0] : vector<8x256xf32> to vector<256xf32>
    %66 = vector.shape_cast %65 : vector<256xf32> to vector<1x256xf32>
    %cst_51 = arith.constant dense<0.000000e+00> : vector<1x32xf32>
    %67 = tpu.matmul %66, %55, %cst_51 {dimension_numbers = #tpu.dot_dimension_numbers<[1], [0], [0], [1], [0, 0, 1, 1], [], []>} : vector<1x256xf32>, vector<256x32xf32>, vector<1x32xf32> -> vector<1x32xf32>
    %cst_52 = arith.constant 1.562500e-02 : f32
    %68 = vector.broadcast %cst_52 : f32 to vector<1x32xf32>
    %69 = arith.mulf %67, %68 : vector<1x32xf32>
    %70 = arith.mulf %63, %63 : vector<1x32xf32>
    %71 = arith.subf %69, %70 : vector<1x32xf32>
    %cst_53 = arith.constant 0.000000e+00 : f32
    %72 = vector.broadcast %cst_53 : f32 to vector<1x32xf32>
    %73 = arith.maximumf %71, %72 : vector<1x32xf32>
    %cst_54 = arith.constant 9.99999974E-6 : f32
    %74 = vector.broadcast %cst_54 : f32 to vector<1x32xf32>
    %75 = arith.addf %73, %74 : vector<1x32xf32>
    %76 = math.rsqrt %75 : vector<1x32xf32>
    %77 = arith.mulf %57, %76 : vector<1x32xf32>
    %78 = arith.mulf %63, %77 : vector<1x32xf32>
    %79 = arith.subf %58, %78 : vector<1x32xf32>
    %cst_55 = arith.constant dense<0.000000e+00> : vector<1x256xf32>
    %80 = tpu.matmul %77, %56, %cst_55 {dimension_numbers = #tpu.dot_dimension_numbers<[1], [0], [0], [1], [0, 0, 1, 1], [], []>} : vector<1x32xf32>, vector<32x256xf32>, vector<1x256xf32> -> vector<1x256xf32>
    %81 = vector.broadcast %80 : vector<1x256xf32> to vector<8x256xf32>
    %82 = arith.mulf %54, %81 : vector<8x256xf32>
    %cst_56 = arith.constant dense<0.000000e+00> : vector<1x256xf32>
    %83 = tpu.matmul %79, %56, %cst_56 {dimension_numbers = #tpu.dot_dimension_numbers<[1], [0], [0], [1], [0, 0, 1, 1], [], []>} : vector<1x32xf32>, vector<32x256xf32>, vector<1x256xf32> -> vector<1x256xf32>
    %84 = vector.broadcast %83 : vector<1x256xf32> to vector<8x256xf32>
    %85 = arith.addf %82, %84 : vector<8x256xf32>
    %c0_57 = arith.constant 0 : index
    %c0_58 = arith.constant 0 : index
    %86 = vector.load %arg17[%c0_57, %c0_58] : memref<4x8xf32, #tpu.memory_space<vmem>>, vector<4x8xf32>
    %c0_59 = arith.constant 0 : index
    %c0_60 = arith.constant 0 : index
    %87 = vector.load %arg18[%c0_59, %c0_60] : memref<256x256xf32, #tpu.memory_space<vmem>>, vector<256x256xf32>
    %c0_61 = arith.constant 0 : index
    %c0_62 = arith.constant 0 : index
    %88 = vector.load %arg19[%c0_61, %c0_62] : memref<4x256xf32, #tpu.memory_space<vmem>>, vector<4x256xf32>
    %cst_63 = arith.constant dense<0.000000e+00> : vector<4x256xf32>
    %89 = tpu.matmul %86, %85, %cst_63 {dimension_numbers = #tpu.dot_dimension_numbers<[1], [0], [0], [1], [0, 0, 1, 1], [], []>} : vector<4x8xf32>, vector<8x256xf32>, vector<4x256xf32> -> vector<4x256xf32>
    %cst_64 = arith.constant dense<0.000000e+00> : vector<4x256xf32>
    %90 = tpu.matmul %89, %87, %cst_64 {dimension_numbers = #tpu.dot_dimension_numbers<[1], [0], [0], [1], [0, 0, 1, 1], [], []>} : vector<4x256xf32>, vector<256x256xf32>, vector<4x256xf32> -> vector<4x256xf32>
    %91 = arith.addf %90, %88 : vector<4x256xf32>
    %cst_65 = arith.constant 0.000000e+00 : f32
    %92 = vector.broadcast %cst_65 : f32 to vector<4x256xf32>
    %93 = arith.cmpf oge, %91, %92 : vector<4x256xf32>
    %cst_66 = arith.constant 2.000000e-01 : f32
    %94 = vector.broadcast %cst_66 : f32 to vector<4x256xf32>
    %95 = arith.mulf %94, %91 : vector<4x256xf32>
    %96 = arith.select %93, %91, %95 : vector<4x256xi1>, vector<4x256xf32>
    %c0_67 = arith.constant 0 : index
    %c0_68 = arith.constant 0 : index
    %97 = vector.load %arg20[%c0_67, %c0_68] : memref<256x64xf32, #tpu.memory_space<vmem>>, vector<256x64xf32>
    %c0_69 = arith.constant 0 : index
    %c0_70 = arith.constant 0 : index
    %98 = vector.load %arg21[%c0_69, %c0_70] : memref<64x256xf32, #tpu.memory_space<vmem>>, vector<64x256xf32>
    %c0_71 = arith.constant 0 : index
    %c0_72 = arith.constant 0 : index
    %99 = vector.load %arg22[%c0_71, %c0_72] : memref<1x64xf32, #tpu.memory_space<vmem>>, vector<1x64xf32>
    %c0_73 = arith.constant 0 : index
    %c0_74 = arith.constant 0 : index
    %100 = vector.load %arg23[%c0_73, %c0_74] : memref<1x64xf32, #tpu.memory_space<vmem>>, vector<1x64xf32>
    %cst_75 = arith.constant dense<0.000000e+00> : vector<256xf32>
    %101 = vector.multi_reduction <add>, %96, %cst_75 [0] : vector<4x256xf32> to vector<256xf32>
    %102 = vector.shape_cast %101 : vector<256xf32> to vector<1x256xf32>
    %cst_76 = arith.constant dense<0.000000e+00> : vector<1x64xf32>
    %103 = tpu.matmul %102, %97, %cst_76 {dimension_numbers = #tpu.dot_dimension_numbers<[1], [0], [0], [1], [0, 0, 1, 1], [], []>} : vector<1x256xf32>, vector<256x64xf32>, vector<1x64xf32> -> vector<1x64xf32>
    %cst_77 = arith.constant 6.250000e-02 : f32
    %104 = vector.broadcast %cst_77 : f32 to vector<1x64xf32>
    %105 = arith.mulf %103, %104 : vector<1x64xf32>
    %106 = arith.mulf %96, %96 : vector<4x256xf32>
    %cst_78 = arith.constant dense<0.000000e+00> : vector<256xf32>
    %107 = vector.multi_reduction <add>, %106, %cst_78 [0] : vector<4x256xf32> to vector<256xf32>
    %108 = vector.shape_cast %107 : vector<256xf32> to vector<1x256xf32>
    %cst_79 = arith.constant dense<0.000000e+00> : vector<1x64xf32>
    %109 = tpu.matmul %108, %97, %cst_79 {dimension_numbers = #tpu.dot_dimension_numbers<[1], [0], [0], [1], [0, 0, 1, 1], [], []>} : vector<1x256xf32>, vector<256x64xf32>, vector<1x64xf32> -> vector<1x64xf32>
    %cst_80 = arith.constant 6.250000e-02 : f32
    %110 = vector.broadcast %cst_80 : f32 to vector<1x64xf32>
    %111 = arith.mulf %109, %110 : vector<1x64xf32>
    %112 = arith.mulf %105, %105 : vector<1x64xf32>
    %113 = arith.subf %111, %112 : vector<1x64xf32>
    %cst_81 = arith.constant 0.000000e+00 : f32
    %114 = vector.broadcast %cst_81 : f32 to vector<1x64xf32>
    %115 = arith.maximumf %113, %114 : vector<1x64xf32>
    %cst_82 = arith.constant 9.99999974E-6 : f32
    %116 = vector.broadcast %cst_82 : f32 to vector<1x64xf32>
    %117 = arith.addf %115, %116 : vector<1x64xf32>
    %118 = math.rsqrt %117 : vector<1x64xf32>
    %119 = arith.mulf %99, %118 : vector<1x64xf32>
    %120 = arith.mulf %105, %119 : vector<1x64xf32>
    %121 = arith.subf %100, %120 : vector<1x64xf32>
    %cst_83 = arith.constant dense<0.000000e+00> : vector<1x256xf32>
    %122 = tpu.matmul %119, %98, %cst_83 {dimension_numbers = #tpu.dot_dimension_numbers<[1], [0], [0], [1], [0, 0, 1, 1], [], []>} : vector<1x64xf32>, vector<64x256xf32>, vector<1x256xf32> -> vector<1x256xf32>
    %123 = vector.broadcast %122 : vector<1x256xf32> to vector<4x256xf32>
    %124 = arith.mulf %96, %123 : vector<4x256xf32>
    %cst_84 = arith.constant dense<0.000000e+00> : vector<1x256xf32>
    %125 = tpu.matmul %121, %98, %cst_84 {dimension_numbers = #tpu.dot_dimension_numbers<[1], [0], [0], [1], [0, 0, 1, 1], [], []>} : vector<1x64xf32>, vector<64x256xf32>, vector<1x256xf32> -> vector<1x256xf32>
    %126 = vector.broadcast %125 : vector<1x256xf32> to vector<4x256xf32>
    %127 = arith.addf %124, %126 : vector<4x256xf32>
    %c0_85 = arith.constant 0 : index
    %c0_86 = arith.constant 0 : index
    %128 = vector.load %arg24[%c0_85, %c0_86] : memref<2x4xf32, #tpu.memory_space<vmem>>, vector<2x4xf32>
    %c0_87 = arith.constant 0 : index
    %c0_88 = arith.constant 0 : index
    %129 = vector.load %arg25[%c0_87, %c0_88] : memref<256x256xf32, #tpu.memory_space<vmem>>, vector<256x256xf32>
    %c0_89 = arith.constant 0 : index
    %c0_90 = arith.constant 0 : index
    %130 = vector.load %arg26[%c0_89, %c0_90] : memref<2x256xf32, #tpu.memory_space<vmem>>, vector<2x256xf32>
    %cst_91 = arith.constant dense<0.000000e+00> : vector<2x256xf32>
    %131 = tpu.matmul %128, %127, %cst_91 {dimension_numbers = #tpu.dot_dimension_numbers<[1], [0], [0], [1], [0, 0, 1, 1], [], []>} : vector<2x4xf32>, vector<4x256xf32>, vector<2x256xf32> -> vector<2x256xf32>
    %cst_92 = arith.constant dense<0.000000e+00> : vector<2x256xf32>
    %132 = tpu.matmul %131, %129, %cst_92 {dimension_numbers = #tpu.dot_dimension_numbers<[1], [0], [0], [1], [0, 0, 1, 1], [], []>} : vector<2x256xf32>, vector<256x256xf32>, vector<2x256xf32> -> vector<2x256xf32>
    %133 = arith.addf %132, %130 : vector<2x256xf32>
    %cst_93 = arith.constant 0.000000e+00 : f32
    %134 = vector.broadcast %cst_93 : f32 to vector<2x256xf32>
    %135 = arith.cmpf oge, %133, %134 : vector<2x256xf32>
    %cst_94 = arith.constant 2.000000e-01 : f32
    %136 = vector.broadcast %cst_94 : f32 to vector<2x256xf32>
    %137 = arith.mulf %136, %133 : vector<2x256xf32>
    %138 = arith.select %135, %133, %137 : vector<2x256xi1>, vector<2x256xf32>
    %c0_95 = arith.constant 0 : index
    %c0_96 = arith.constant 0 : index
    %139 = vector.load %arg27[%c0_95, %c0_96] : memref<256x128xf32, #tpu.memory_space<vmem>>, vector<256x128xf32>
    %c0_97 = arith.constant 0 : index
    %c0_98 = arith.constant 0 : index
    %140 = vector.load %arg28[%c0_97, %c0_98] : memref<128x256xf32, #tpu.memory_space<vmem>>, vector<128x256xf32>
    %c0_99 = arith.constant 0 : index
    %c0_100 = arith.constant 0 : index
    %141 = vector.load %arg29[%c0_99, %c0_100] : memref<1x128xf32, #tpu.memory_space<vmem>>, vector<1x128xf32>
    %c0_101 = arith.constant 0 : index
    %c0_102 = arith.constant 0 : index
    %142 = vector.load %arg30[%c0_101, %c0_102] : memref<1x128xf32, #tpu.memory_space<vmem>>, vector<1x128xf32>
    %cst_103 = arith.constant dense<0.000000e+00> : vector<256xf32>
    %143 = vector.multi_reduction <add>, %138, %cst_103 [0] : vector<2x256xf32> to vector<256xf32>
    %144 = vector.shape_cast %143 : vector<256xf32> to vector<1x256xf32>
    %cst_104 = arith.constant dense<0.000000e+00> : vector<1x128xf32>
    %145 = tpu.matmul %144, %139, %cst_104 {dimension_numbers = #tpu.dot_dimension_numbers<[1], [0], [0], [1], [0, 0, 1, 1], [], []>} : vector<1x256xf32>, vector<256x128xf32>, vector<1x128xf32> -> vector<1x128xf32>
    %cst_105 = arith.constant 2.500000e-01 : f32
    %146 = vector.broadcast %cst_105 : f32 to vector<1x128xf32>
    %147 = arith.mulf %145, %146 : vector<1x128xf32>
    %148 = arith.mulf %138, %138 : vector<2x256xf32>
    %cst_106 = arith.constant dense<0.000000e+00> : vector<256xf32>
    %149 = vector.multi_reduction <add>, %148, %cst_106 [0] : vector<2x256xf32> to vector<256xf32>
    %150 = vector.shape_cast %149 : vector<256xf32> to vector<1x256xf32>
    %cst_107 = arith.constant dense<0.000000e+00> : vector<1x128xf32>
    %151 = tpu.matmul %150, %139, %cst_107 {dimension_numbers = #tpu.dot_dimension_numbers<[1], [0], [0], [1], [0, 0, 1, 1], [], []>} : vector<1x256xf32>, vector<256x128xf32>, vector<1x128xf32> -> vector<1x128xf32>
    %cst_108 = arith.constant 2.500000e-01 : f32
    %152 = vector.broadcast %cst_108 : f32 to vector<1x128xf32>
    %153 = arith.mulf %151, %152 : vector<1x128xf32>
    %154 = arith.mulf %147, %147 : vector<1x128xf32>
    %155 = arith.subf %153, %154 : vector<1x128xf32>
    %cst_109 = arith.constant 0.000000e+00 : f32
    %156 = vector.broadcast %cst_109 : f32 to vector<1x128xf32>
    %157 = arith.maximumf %155, %156 : vector<1x128xf32>
    %cst_110 = arith.constant 9.99999974E-6 : f32
    %158 = vector.broadcast %cst_110 : f32 to vector<1x128xf32>
    %159 = arith.addf %157, %158 : vector<1x128xf32>
    %160 = math.rsqrt %159 : vector<1x128xf32>
    %161 = arith.mulf %141, %160 : vector<1x128xf32>
    %162 = arith.mulf %147, %161 : vector<1x128xf32>
    %163 = arith.subf %142, %162 : vector<1x128xf32>
    %cst_111 = arith.constant dense<0.000000e+00> : vector<1x256xf32>
    %164 = tpu.matmul %161, %140, %cst_111 {dimension_numbers = #tpu.dot_dimension_numbers<[1], [0], [0], [1], [0, 0, 1, 1], [], []>} : vector<1x128xf32>, vector<128x256xf32>, vector<1x256xf32> -> vector<1x256xf32>
    %165 = vector.broadcast %164 : vector<1x256xf32> to vector<2x256xf32>
    %166 = arith.mulf %138, %165 : vector<2x256xf32>
    %cst_112 = arith.constant dense<0.000000e+00> : vector<1x256xf32>
    %167 = tpu.matmul %163, %140, %cst_112 {dimension_numbers = #tpu.dot_dimension_numbers<[1], [0], [0], [1], [0, 0, 1, 1], [], []>} : vector<1x128xf32>, vector<128x256xf32>, vector<1x256xf32> -> vector<1x256xf32>
    %168 = vector.broadcast %167 : vector<1x256xf32> to vector<2x256xf32>
    %169 = arith.addf %166, %168 : vector<2x256xf32>
    %c0_113 = arith.constant 0 : index
    %c0_114 = arith.constant 0 : index
    %170 = vector.load %arg31[%c0_113, %c0_114] : memref<1x2xf32, #tpu.memory_space<vmem>>, vector<1x2xf32>
    %c0_115 = arith.constant 0 : index
    %c0_116 = arith.constant 0 : index
    %171 = vector.load %arg32[%c0_115, %c0_116] : memref<256x128xf32, #tpu.memory_space<vmem>>, vector<256x128xf32>
    %c0_117 = arith.constant 0 : index
    %c0_118 = arith.constant 0 : index
    %172 = vector.load %arg33[%c0_117, %c0_118] : memref<1x128xf32, #tpu.memory_space<vmem>>, vector<1x128xf32>
    %cst_119 = arith.constant dense<0.000000e+00> : vector<1x256xf32>
    %173 = tpu.matmul %170, %169, %cst_119 {dimension_numbers = #tpu.dot_dimension_numbers<[1], [0], [0], [1], [0, 0, 1, 1], [], []>} : vector<1x2xf32>, vector<2x256xf32>, vector<1x256xf32> -> vector<1x256xf32>
    %cst_120 = arith.constant dense<0.000000e+00> : vector<1x128xf32>
    %174 = tpu.matmul %173, %171, %cst_120 {dimension_numbers = #tpu.dot_dimension_numbers<[1], [0], [0], [1], [0, 0, 1, 1], [], []>} : vector<1x256xf32>, vector<256x128xf32>, vector<1x128xf32> -> vector<1x128xf32>
    %175 = arith.addf %174, %172 : vector<1x128xf32>
    %cst_121 = arith.constant 0.000000e+00 : f32
    %176 = vector.broadcast %cst_121 : f32 to vector<1x128xf32>
    %177 = arith.cmpf oge, %175, %176 : vector<1x128xf32>
    %cst_122 = arith.constant 2.000000e-01 : f32
    %178 = vector.broadcast %cst_122 : f32 to vector<1x128xf32>
    %179 = arith.mulf %178, %175 : vector<1x128xf32>
    %180 = arith.select %177, %175, %179 : vector<1x128xi1>, vector<1x128xf32>
    %c0_123 = arith.constant 0 : index
    %c0_124 = arith.constant 0 : index
    %181 = vector.load %arg34[%c0_123, %c0_124] : memref<272x128xf32, #tpu.memory_space<vmem>>, vector<272x128xf32>
    %c0_125 = arith.constant 0 : index
    %c0_126 = arith.constant 0 : index
    %182 = vector.load %arg35[%c0_125, %c0_126] : memref<272x1xf32, #tpu.memory_space<vmem>>, vector<272x1xf32>
    %cst_127 = arith.constant dense<0.000000e+00> : vector<128xf32>
    %183 = vector.multi_reduction <add>, %180, %cst_127 [0] : vector<1x128xf32> to vector<128xf32>
    %184 = vector.shape_cast %183 : vector<128xf32> to vector<1x128xf32>
    %185 = vector.broadcast %184 : vector<1x128xf32> to vector<272x128xf32>
    %186 = arith.mulf %181, %185 : vector<272x128xf32>
    %cst_128 = arith.constant dense<0.000000e+00> : vector<272xf32>
    %187 = vector.multi_reduction <add>, %186, %cst_128 [1] : vector<272x128xf32> to vector<272xf32>
    %188 = vector.shape_cast %187 : vector<272xf32> to vector<272x1xf32>
    %189 = arith.addf %188, %182 : vector<272x1xf32>
    %c0_129 = arith.constant 0 : index
    %c0_130 = arith.constant 0 : index
    %c0_131 = arith.constant 0 : index
    %190 = vector.load %arg2[%c0_129, %c0_130, %c0_131] : memref<1x3x256xf32, #tpu.memory_space<vmem>>, vector<1x3x256xf32>
    %191 = vector.shape_cast %190 : vector<1x3x256xf32> to vector<3x256xf32>
    %c0_132 = arith.constant 0 : index
    %c0_133 = arith.constant 0 : index
    %192 = vector.load %arg36[%c0_132, %c0_133] : memref<64x3xf32, #tpu.memory_space<vmem>>, vector<64x3xf32>
    %c0_134 = arith.constant 0 : index
    %c0_135 = arith.constant 0 : index
    %193 = vector.load %arg37[%c0_134, %c0_135] : memref<64x1xf32, #tpu.memory_space<vmem>>, vector<64x1xf32>
    %194 = vector.extract_strided_slice %189 {offsets = [0, 0], sizes = [64, 1], strides = [1, 1]} : vector<272x1xf32> to vector<64x1xf32>
    %cst_136 = arith.constant 1.000000e+00 : f32
    %195 = vector.broadcast %cst_136 : f32 to vector<64x1xf32>
    %196 = arith.addf %194, %195 : vector<64x1xf32>
    %197 = vector.broadcast %196 : vector<64x1xf32> to vector<64x3xf32>
    %198 = arith.mulf %192, %197 : vector<64x3xf32>
    %cst_137 = arith.constant dense<0.000000e+00> : vector<64x256xf32>
    %199 = tpu.matmul %198, %191, %cst_137 {dimension_numbers = #tpu.dot_dimension_numbers<[1], [0], [0], [1], [0, 0, 1, 1], [], []>} : vector<64x3xf32>, vector<3x256xf32>, vector<64x256xf32> -> vector<64x256xf32>
    %200 = arith.mulf %193, %196 : vector<64x1xf32>
    %201 = vector.extract_strided_slice %189 {offsets = [64, 0], sizes = [64, 1], strides = [1, 1]} : vector<272x1xf32> to vector<64x1xf32>
    %202 = arith.addf %200, %201 : vector<64x1xf32>
    %203 = vector.broadcast %202 : vector<64x1xf32> to vector<64x256xf32>
    %204 = arith.addf %199, %203 : vector<64x256xf32>
    %cst_138 = arith.constant 0.000000e+00 : f32
    %205 = vector.broadcast %cst_138 : f32 to vector<64x256xf32>
    %206 = arith.maximumf %204, %205 : vector<64x256xf32>
    %c0_139 = arith.constant 0 : index
    %c0_140 = arith.constant 0 : index
    %207 = vector.load %arg38[%c0_139, %c0_140] : memref<64x64xf32, #tpu.memory_space<vmem>>, vector<64x64xf32>
    %c0_141 = arith.constant 0 : index
    %c0_142 = arith.constant 0 : index
    %208 = vector.load %arg39[%c0_141, %c0_142] : memref<64x1xf32, #tpu.memory_space<vmem>>, vector<64x1xf32>
    %209 = vector.extract_strided_slice %189 {offsets = [128, 0], sizes = [64, 1], strides = [1, 1]} : vector<272x1xf32> to vector<64x1xf32>
    %cst_143 = arith.constant 1.000000e+00 : f32
    %210 = vector.broadcast %cst_143 : f32 to vector<64x1xf32>
    %211 = arith.addf %209, %210 : vector<64x1xf32>
    %212 = vector.broadcast %211 : vector<64x1xf32> to vector<64x64xf32>
    %213 = arith.mulf %207, %212 : vector<64x64xf32>
    %cst_144 = arith.constant dense<0.000000e+00> : vector<64x256xf32>
    %214 = tpu.matmul %213, %206, %cst_144 {dimension_numbers = #tpu.dot_dimension_numbers<[1], [0], [0], [1], [0, 0, 1, 1], [], []>} : vector<64x64xf32>, vector<64x256xf32>, vector<64x256xf32> -> vector<64x256xf32>
    %215 = arith.mulf %208, %211 : vector<64x1xf32>
    %216 = vector.extract_strided_slice %189 {offsets = [192, 0], sizes = [64, 1], strides = [1, 1]} : vector<272x1xf32> to vector<64x1xf32>
    %217 = arith.addf %215, %216 : vector<64x1xf32>
    %218 = vector.broadcast %217 : vector<64x1xf32> to vector<64x256xf32>
    %219 = arith.addf %214, %218 : vector<64x256xf32>
    %cst_145 = arith.constant 0.000000e+00 : f32
    %220 = vector.broadcast %cst_145 : f32 to vector<64x256xf32>
    %221 = arith.maximumf %219, %220 : vector<64x256xf32>
    %c0_146 = arith.constant 0 : index
    %c0_147 = arith.constant 0 : index
    %222 = vector.load %arg40[%c0_146, %c0_147] : memref<3x64xf32, #tpu.memory_space<vmem>>, vector<3x64xf32>
    %c0_148 = arith.constant 0 : index
    %c0_149 = arith.constant 0 : index
    %223 = vector.load %arg41[%c0_148, %c0_149] : memref<3x1xf32, #tpu.memory_space<vmem>>, vector<3x1xf32>
    %224 = vector.extract_strided_slice %189 {offsets = [256, 0], sizes = [3, 1], strides = [1, 1]} : vector<272x1xf32> to vector<3x1xf32>
    %cst_150 = arith.constant 1.000000e+00 : f32
    %225 = vector.broadcast %cst_150 : f32 to vector<3x1xf32>
    %226 = arith.addf %224, %225 : vector<3x1xf32>
    %227 = vector.broadcast %226 : vector<3x1xf32> to vector<3x64xf32>
    %228 = arith.mulf %222, %227 : vector<3x64xf32>
    %cst_151 = arith.constant dense<0.000000e+00> : vector<3x256xf32>
    %229 = tpu.matmul %228, %221, %cst_151 {dimension_numbers = #tpu.dot_dimension_numbers<[1], [0], [0], [1], [0, 0, 1, 1], [], []>} : vector<3x64xf32>, vector<64x256xf32>, vector<3x256xf32> -> vector<3x256xf32>
    %230 = arith.mulf %223, %226 : vector<3x1xf32>
    %231 = vector.extract_strided_slice %189 {offsets = [264, 0], sizes = [3, 1], strides = [1, 1]} : vector<272x1xf32> to vector<3x1xf32>
    %232 = arith.addf %230, %231 : vector<3x1xf32>
    %233 = vector.broadcast %232 : vector<3x1xf32> to vector<3x256xf32>
    %234 = arith.addf %229, %233 : vector<3x256xf32>
    %c0_152 = arith.constant 0 : index
    %c0_153 = arith.constant 0 : index
    %c0_154 = arith.constant 0 : index
    %235 = vector.load %arg42[%c0_152, %c0_153, %c0_154] : memref<1x3x256xf32, #tpu.memory_space<vmem>>, vector<1x3x256xf32>
    %236 = vector.shape_cast %235 : vector<1x3x256xf32> to vector<3x256xf32>
    %237 = vector.shape_cast %234 : vector<3x256xf32> to vector<1x3x256xf32>
    tpu.vector_store %arg42[%c0_152, %c0_153, %c0_154], %237 {strides = array<i32>} : memref<1x3x256xf32, #tpu.memory_space<vmem>>, vector<1x3x256xf32>,
    return
  }
  func.func @transform_0(%arg0: i32) -> (i32, i32, i32) {
    %c0_i32 = arith.constant 0 : i32
    %c0_i32_0 = arith.constant 0 : i32
    %c0_i32_1 = arith.constant 0 : i32
    return %arg0, %c0_i32, %c0_i32_0 : i32, i32, i32
  }
  func.func @transform_1(%arg0: i32) -> (i32, i32, i32) {
    %c0_i32 = arith.constant 0 : i32
    %c0_i32_0 = arith.constant 0 : i32
    %c0_i32_1 = arith.constant 0 : i32
    return %arg0, %c0_i32, %c0_i32_0 : i32, i32, i32
  }
  func.func @transform_2(%arg0: i32) -> (i32, i32) {
    %c0_i32 = arith.constant 0 : i32
    %c0_i32_0 = arith.constant 0 : i32
    %c0_i32_1 = arith.constant 0 : i32
    return %c0_i32, %c0_i32_0 : i32, i32
  }
  func.func @transform_3(%arg0: i32) -> (i32, i32) {
    %c0_i32 = arith.constant 0 : i32
    %c0_i32_0 = arith.constant 0 : i32
    %c0_i32_1 = arith.constant 0 : i32
    return %c0_i32, %c0_i32_0 : i32, i32
  }
  func.func @transform_4(%arg0: i32) -> (i32, i32) {
    %c0_i32 = arith.constant 0 : i32
    %c0_i32_0 = arith.constant 0 : i32
    %c0_i32_1 = arith.constant 0 : i32
    return %c0_i32, %c0_i32_0 : i32, i32
  }
  func.func @transform_5(%arg0: i32) -> (i32, i32) {
    %c0_i32 = arith.constant 0 : i32
    %c0_i32_0 = arith.constant 0 : i32
    %c0_i32_1 = arith.constant 0 : i32
    return %c0_i32, %c0_i32_0 : i32, i32
  }
  func.func @transform_6(%arg0: i32) -> (i32, i32) {
    %c0_i32 = arith.constant 0 : i32
    %c0_i32_0 = arith.constant 0 : i32
    %c0_i32_1 = arith.constant 0 : i32
    return %c0_i32, %c0_i32_0 : i32, i32
  }
  func.func @transform_7(%arg0: i32) -> (i32, i32) {
    %c0_i32 = arith.constant 0 : i32
    %c0_i32_0 = arith.constant 0 : i32
    %c0_i32_1 = arith.constant 0 : i32
    return %c0_i32, %c0_i32_0 : i32, i32
  }
  func.func @transform_8(%arg0: i32) -> (i32, i32) {
    %c0_i32 = arith.constant 0 : i32
    %c0_i32_0 = arith.constant 0 : i32
    %c0_i32_1 = arith.constant 0 : i32
    return %c0_i32, %c0_i32_0 : i32, i32
  }
  func.func @transform_9(%arg0: i32) -> (i32, i32) {
    %c0_i32 = arith.constant 0 : i32
    %c0_i32_0 = arith.constant 0 : i32
    %c0_i32_1 = arith.constant 0 : i32
    return %c0_i32, %c0_i32_0 : i32, i32
  }
  func.func @transform_10(%arg0: i32) -> (i32, i32) {
    %c0_i32 = arith.constant 0 : i32
    %c0_i32_0 = arith.constant 0 : i32
    %c0_i32_1 = arith.constant 0 : i32
    return %c0_i32, %c0_i32_0 : i32, i32
  }
  func.func @transform_11(%arg0: i32) -> (i32, i32) {
    %c0_i32 = arith.constant 0 : i32
    %c0_i32_0 = arith.constant 0 : i32
    %c0_i32_1 = arith.constant 0 : i32
    return %c0_i32, %c0_i32_0 : i32, i32
  }
  func.func @transform_12(%arg0: i32) -> (i32, i32) {
    %c0_i32 = arith.constant 0 : i32
    %c0_i32_0 = arith.constant 0 : i32
    %c0_i32_1 = arith.constant 0 : i32
    return %c0_i32, %c0_i32_0 : i32, i32
  }
  func.func @transform_13(%arg0: i32) -> (i32, i32) {
    %c0_i32 = arith.constant 0 : i32
    %c0_i32_0 = arith.constant 0 : i32
    %c0_i32_1 = arith.constant 0 : i32
    return %c0_i32, %c0_i32_0 : i32, i32
  }
  func.func @transform_14(%arg0: i32) -> (i32, i32) {
    %c0_i32 = arith.constant 0 : i32
    %c0_i32_0 = arith.constant 0 : i32
    %c0_i32_1 = arith.constant 0 : i32
    return %c0_i32, %c0_i32_0 : i32, i32
  }
  func.func @transform_15(%arg0: i32) -> (i32, i32) {
    %c0_i32 = arith.constant 0 : i32
    %c0_i32_0 = arith.constant 0 : i32
    %c0_i32_1 = arith.constant 0 : i32
    return %c0_i32, %c0_i32_0 : i32, i32
  }
  func.func @transform_16(%arg0: i32) -> (i32, i32) {
    %c0_i32 = arith.constant 0 : i32
    %c0_i32_0 = arith.constant 0 : i32
    %c0_i32_1 = arith.constant 0 : i32
    return %c0_i32, %c0_i32_0 : i32, i32
  }
  func.func @transform_17(%arg0: i32) -> (i32, i32) {
    %c0_i32 = arith.constant 0 : i32
    %c0_i32_0 = arith.constant 0 : i32
    %c0_i32_1 = arith.constant 0 : i32
    return %c0_i32, %c0_i32_0 : i32, i32
  }
  func.func @transform_18(%arg0: i32) -> (i32, i32) {
    %c0_i32 = arith.constant 0 : i32
    %c0_i32_0 = arith.constant 0 : i32
    %c0_i32_1 = arith.constant 0 : i32
    return %c0_i32, %c0_i32_0 : i32, i32
  }
  func.func @transform_19(%arg0: i32) -> (i32, i32) {
    %c0_i32 = arith.constant 0 : i32
    %c0_i32_0 = arith.constant 0 : i32
    %c0_i32_1 = arith.constant 0 : i32
    return %c0_i32, %c0_i32_0 : i32, i32
  }
  func.func @transform_20(%arg0: i32) -> (i32, i32) {
    %c0_i32 = arith.constant 0 : i32
    %c0_i32_0 = arith.constant 0 : i32
    %c0_i32_1 = arith.constant 0 : i32
    return %c0_i32, %c0_i32_0 : i32, i32
  }
  func.func @transform_21(%arg0: i32) -> (i32, i32) {
    %c0_i32 = arith.constant 0 : i32
    %c0_i32_0 = arith.constant 0 : i32
    %c0_i32_1 = arith.constant 0 : i32
    return %c0_i32, %c0_i32_0 : i32, i32
  }
  func.func @transform_22(%arg0: i32) -> (i32, i32) {
    %c0_i32 = arith.constant 0 : i32
    %c0_i32_0 = arith.constant 0 : i32
    %c0_i32_1 = arith.constant 0 : i32
    return %c0_i32, %c0_i32_0 : i32, i32
  }
  func.func @transform_23(%arg0: i32) -> (i32, i32) {
    %c0_i32 = arith.constant 0 : i32
    %c0_i32_0 = arith.constant 0 : i32
    %c0_i32_1 = arith.constant 0 : i32
    return %c0_i32, %c0_i32_0 : i32, i32
  }
  func.func @transform_24(%arg0: i32) -> (i32, i32) {
    %c0_i32 = arith.constant 0 : i32
    %c0_i32_0 = arith.constant 0 : i32
    %c0_i32_1 = arith.constant 0 : i32
    return %c0_i32, %c0_i32_0 : i32, i32
  }
  func.func @transform_25(%arg0: i32) -> (i32, i32) {
    %c0_i32 = arith.constant 0 : i32
    %c0_i32_0 = arith.constant 0 : i32
    %c0_i32_1 = arith.constant 0 : i32
    return %c0_i32, %c0_i32_0 : i32, i32
  }
  func.func @transform_26(%arg0: i32) -> (i32, i32) {
    %c0_i32 = arith.constant 0 : i32
    %c0_i32_0 = arith.constant 0 : i32
    %c0_i32_1 = arith.constant 0 : i32
    return %c0_i32, %c0_i32_0 : i32, i32
  }
  func.func @transform_27(%arg0: i32) -> (i32, i32) {
    %c0_i32 = arith.constant 0 : i32
    %c0_i32_0 = arith.constant 0 : i32
    %c0_i32_1 = arith.constant 0 : i32
    return %c0_i32, %c0_i32_0 : i32, i32
  }
  func.func @transform_28(%arg0: i32) -> (i32, i32) {
    %c0_i32 = arith.constant 0 : i32
    %c0_i32_0 = arith.constant 0 : i32
    %c0_i32_1 = arith.constant 0 : i32
    return %c0_i32, %c0_i32_0 : i32, i32
  }
  func.func @transform_29(%arg0: i32) -> (i32, i32) {
    %c0_i32 = arith.constant 0 : i32
    %c0_i32_0 = arith.constant 0 : i32
    %c0_i32_1 = arith.constant 0 : i32
    return %c0_i32, %c0_i32_0 : i32, i32
  }
  func.func @transform_30(%arg0: i32) -> (i32, i32) {
    %c0_i32 = arith.constant 0 : i32
    %c0_i32_0 = arith.constant 0 : i32
    %c0_i32_1 = arith.constant 0 : i32
    return %c0_i32, %c0_i32_0 : i32, i32
  }
  func.func @transform_31(%arg0: i32) -> (i32, i32) {
    %c0_i32 = arith.constant 0 : i32
    %c0_i32_0 = arith.constant 0 : i32
    %c0_i32_1 = arith.constant 0 : i32
    return %c0_i32, %c0_i32_0 : i32, i32
  }
  func.func @transform_32(%arg0: i32) -> (i32, i32) {
    %c0_i32 = arith.constant 0 : i32
    %c0_i32_0 = arith.constant 0 : i32
    %c0_i32_1 = arith.constant 0 : i32
    return %c0_i32, %c0_i32_0 : i32, i32
  }
  func.func @transform_33(%arg0: i32) -> (i32, i32) {
    %c0_i32 = arith.constant 0 : i32
    %c0_i32_0 = arith.constant 0 : i32
    %c0_i32_1 = arith.constant 0 : i32
    return %c0_i32, %c0_i32_0 : i32, i32
  }
  func.func @transform_34(%arg0: i32) -> (i32, i32) {
    %c0_i32 = arith.constant 0 : i32
    %c0_i32_0 = arith.constant 0 : i32
    %c0_i32_1 = arith.constant 0 : i32
    return %c0_i32, %c0_i32_0 : i32, i32
  }
  func.func @transform_35(%arg0: i32) -> (i32, i32) {
    %c0_i32 = arith.constant 0 : i32
    %c0_i32_0 = arith.constant 0 : i32
    %c0_i32_1 = arith.constant 0 : i32
    return %c0_i32, %c0_i32_0 : i32, i32
  }
  func.func @transform_36(%arg0: i32) -> (i32, i32) {
    %c0_i32 = arith.constant 0 : i32
    %c0_i32_0 = arith.constant 0 : i32
    %c0_i32_1 = arith.constant 0 : i32
    return %c0_i32, %c0_i32_0 : i32, i32
  }
  func.func @transform_37(%arg0: i32) -> (i32, i32) {
    %c0_i32 = arith.constant 0 : i32
    %c0_i32_0 = arith.constant 0 : i32
    %c0_i32_1 = arith.constant 0 : i32
    return %c0_i32, %c0_i32_0 : i32, i32
  }
  func.func @transform_38(%arg0: i32) -> (i32, i32) {
    %c0_i32 = arith.constant 0 : i32
    %c0_i32_0 = arith.constant 0 : i32
    %c0_i32_1 = arith.constant 0 : i32
    return %c0_i32, %c0_i32_0 : i32, i32
  }
  func.func @transform_39(%arg0: i32) -> (i32, i32) {
    %c0_i32 = arith.constant 0 : i32
    %c0_i32_0 = arith.constant 0 : i32
    %c0_i32_1 = arith.constant 0 : i32
    return %c0_i32, %c0_i32_0 : i32, i32
  }
  func.func @transform_40(%arg0: i32) -> (i32, i32) {
    %c0_i32 = arith.constant 0 : i32
    %c0_i32_0 = arith.constant 0 : i32
    %c0_i32_1 = arith.constant 0 : i32
    return %c0_i32, %c0_i32_0 : i32, i32
  }
  func.func @transform_41(%arg0: i32) -> (i32, i32, i32) {
    %c0_i32 = arith.constant 0 : i32
    %c0_i32_0 = arith.constant 0 : i32
    %c0_i32_1 = arith.constant 0 : i32
    return %arg0, %c0_i32, %c0_i32_0 : i32, i32, i32
  }
}

</mosaic_0001>

<llo_original>
// kernel: tpu_custom_call.1
$region0: #{tpu_custom_call.1}
  #allocation0 [shape = 'u32[]', space=smem, size = 0x4, offset = 0x4, fixed_abs, tag = 'smem constant byte address 0x4 - core index']
  #allocation1 [shape = 'u32[144,128]{1,0:T(1,128)}', space=vmem, size = 0x12000, scoped, tag = 'internal scratch']
  %s0 = inlined_call_operand.smem [shape: u32[42], index: -1, kind: input, shape index: {}]
  %s1 = sld [smem:[%s0]]
  %s2 = scalar_lea.smem %s0, 1
  %s3 = sld [smem:[%s2]]
  %s4 = scalar_lea.smem %s0, 2
  %s5 = sld [smem:[%s4]]
  %s6 = scalar_lea.smem %s0, 3
  %s7 = sld [smem:[%s6]]
  %s8 = scalar_lea.smem %s0, 4
  %s9 = sld [smem:[%s8]]
  %s10 = scalar_lea.smem %s0, 5
  %s11 = sld [smem:[%s10]]
  %s12 = scalar_lea.smem %s0, 6
  %s13 = sld [smem:[%s12]]
  %s14 = scalar_lea.smem %s0, 7
  %s15 = sld [smem:[%s14]]
  %s16 = scalar_lea.smem %s0, 8
  %s17 = sld [smem:[%s16]]
  %s18 = scalar_lea.smem %s0, 9
  %s19 = sld [smem:[%s18]]
  %s20 = scalar_lea.smem %s0, 10
  %s21 = sld [smem:[%s20]]
  %s22 = scalar_lea.smem %s0, 11
  %s23 = sld [smem:[%s22]]
  %s24 = scalar_lea.smem %s0, 12
  %s25 = sld [smem:[%s24]]
  %s26 = scalar_lea.smem %s0, 13
  %s27 = sld [smem:[%s26]]
  %s28 = scalar_lea.smem %s0, 14
  %s29 = sld [smem:[%s28]]
  %s30 = scalar_lea.smem %s0, 15
  %s31 = sld [smem:[%s30]]
  %s32 = scalar_lea.smem %s0, 16
  %s33 = sld [smem:[%s32]]
  %s34 = scalar_lea.smem %s0, 17
  %s35 = sld [smem:[%s34]]
  %s36 = scalar_lea.smem %s0, 18
  %s37 = sld [smem:[%s36]]
  %s38 = scalar_lea.smem %s0, 19
  %s39 = sld [smem:[%s38]]
  %s40 = scalar_lea.smem %s0, 20
  %s41 = sld [smem:[%s40]]
  %s42 = scalar_lea.smem %s0, 21
  %s43 = sld [smem:[%s42]]
  %s44 = scalar_lea.smem %s0, 22
  %s45 = sld [smem:[%s44]]
  %s46 = scalar_lea.smem %s0, 23
  %s47 = sld [smem:[%s46]]
  %s48 = scalar_lea.smem %s0, 24
  %s49 = sld [smem:[%s48]]
  %s50 = scalar_lea.smem %s0, 25
  %s51 = sld [smem:[%s50]]
  %s52 = scalar_lea.smem %s0, 26
  %s53 = sld [smem:[%s52]]
  %s54 = scalar_lea.smem %s0, 27
  %s55 = sld [smem:[%s54]]
  %s56 = scalar_lea.smem %s0, 28
  %s57 = sld [smem:[%s56]]
  %s58 = scalar_lea.smem %s0, 29
  %s59 = sld [smem:[%s58]]
  %s60 = scalar_lea.smem %s0, 30
  %s61 = sld [smem:[%s60]]
  %s62 = scalar_lea.smem %s0, 31
  %s63 = sld [smem:[%s62]]
  %s64 = scalar_lea.smem %s0, 32
  %s65 = sld [smem:[%s64]]
  %s66 = scalar_lea.smem %s0, 33
  %s67 = sld [smem:[%s66]]
  %s68 = scalar_lea.smem %s0, 34
  %s69 = sld [smem:[%s68]]
  %s70 = scalar_lea.smem %s0, 35
  %s71 = sld [smem:[%s70]]
  %s72 = scalar_lea.smem %s0, 36
  %s73 = sld [smem:[%s72]]
  %s74 = scalar_lea.smem %s0, 37
  %s75 = sld [smem:[%s74]]
  %s76 = scalar_lea.smem %s0, 38
  %s77 = sld [smem:[%s76]]
  %s78 = scalar_lea.smem %s0, 39
  %s79 = sld [smem:[%s78]]
  %s80 = scalar_lea.smem %s0, 40
  %s81 = sld [smem:[%s80]]
  %s82 = scalar_lea.smem %s0, 41
  %s83 = sld [smem:[%s82]]
  %s84 = sld [smem:[#allocation0]]
  $region305: #{tpu_custom_call.1} parent=0
    _
  %s86 = ssub.s32 1, %s84
  %s87 = scalar_select 0, %s86, %s84
  $region1: #{tpu_custom_call.1} parent=0
    #allocation2 [shape = 'u8[32768]{0}', space=vmem, size = 0x8000, scoped, tag = 'input window, operand 0']
    #allocation3 [shape = 's32[2]{0}', space=sflag, size = 0x8, scoped, tag = 'scoped memory for tpu_custom_call.1']
    #allocation4 [shape = 'u8[8192]{0}', space=vmem, size = 0x2000, scoped, tag = 'input window, operand 2, single buffered']
    #allocation5 [shape = 's32[1]{0}', space=sflag, size = 0x4, scoped, tag = 'scoped memory for tpu_custom_call.1']
    #allocation6 [shape = 'u8[98304]{0}', space=vmem, size = 0x18000, scoped, tag = 'input window, operand 3, single buffered']
    #allocation7 [shape = 'u8[16384]{0}', space=vmem, size = 0x4000, scoped, tag = 'input window, operand 4, single buffered']
    #allocation8 [shape = 's32[1]{0}', space=sflag, size = 0x4, scoped, tag = 'scoped memory for tpu_custom_call.1']
    #allocation9 [shape = 'u8[16384]{0}', space=vmem, size = 0x4000, scoped, tag = 'input window, operand 6, single buffered']
    #allocation10 [shape = 'u8[512]{0}', space=vmem, size = 0x400, scoped, tag = 'input window, operand 7, single buffered']
    #allocation11 [shape = 's32[1]{0}', space=sflag, size = 0x4, scoped, tag = 'scoped memory for tpu_custom_call.1']
    #allocation12 [shape = 'u8[512]{0}', space=vmem, size = 0x400, scoped, tag = 'input window, operand 8, single buffered']
    #allocation13 [shape = 'u8[4096]{0}', space=vmem, size = 0x1000, scoped, tag = 'input window, operand 9, single buffered']
    #allocation14 [shape = 's32[1]{0}', space=sflag, size = 0x4, scoped, tag = 'scoped memory for tpu_custom_call.1']
    #allocation15 [shape = 'u8[8192]{0}', space=vmem, size = 0x2000, scoped, tag = 'input window, operand 11, single buffered']
    #allocation16 [shape = 'u8[32768]{0}', space=vmem, size = 0x8000, scoped, tag = 'input window, operand 13, single buffered']
    #allocation17 [shape = 's32[1]{0}', space=sflag, size = 0x4, scoped, tag = 'scoped memory for tpu_custom_call.1']
    #allocation18 [shape = 'u8[512]{0}', space=vmem, size = 0x400, scoped, tag = 'input window, operand 14, single buffered']
    #allocation19 [shape = 'u8[512]{0}', space=vmem, size = 0x400, scoped, tag = 'input window, operand 15, single buffered']
    #allocation20 [shape = 's32[1]{0}', space=sflag, size = 0x4, scoped, tag = 'scoped memory for tpu_custom_call.1']
    #allocation21 [shape = 'u8[2048]{0}', space=vmem, size = 0x800, scoped, tag = 'input window, operand 16, single buffered']
    #allocation22 [shape = 'u8[4096]{0}', space=vmem, size = 0x1000, scoped, tag = 'input window, operand 18, single buffered']
    #allocation23 [shape = 's32[1]{0}', space=sflag, size = 0x4, scoped, tag = 'scoped memory for tpu_custom_call.1']
    #allocation24 [shape = 'u8[65536]{0}', space=vmem, size = 0x10000, scoped, tag = 'input window, operand 20, single buffered']
    #allocation25 [shape = 'u8[512]{0}', space=vmem, size = 0x400, scoped, tag = 'input window, operand 21, single buffered']
    #allocation26 [shape = 's32[1]{0}', space=sflag, size = 0x4, scoped, tag = 'scoped memory for tpu_custom_call.1']
    #allocation27 [shape = 'u8[512]{0}', space=vmem, size = 0x400, scoped, tag = 'input window, operand 22, single buffered']
    #allocation28 [shape = 'u8[1024]{0}', space=vmem, size = 0x400, scoped, tag = 'input window, operand 23, single buffered']
    #allocation29 [shape = 's32[1]{0}', space=sflag, size = 0x4, scoped, tag = 'scoped memory for tpu_custom_call.1']
    #allocation30 [shape = 'u8[2048]{0}', space=vmem, size = 0x800, scoped, tag = 'input window, operand 25, single buffered']
    #allocation31 [shape = 'u8[131072]{0}', space=vmem, size = 0x20000, scoped, tag = 'input window, operand 26, single buffered']
    #allocation32 [shape = 's32[1]{0}', space=sflag, size = 0x4, scoped, tag = 'scoped memory for tpu_custom_call.1']
    #allocation33 [shape = 'u8[131072]{0}', space=vmem, size = 0x20000, scoped, tag = 'input window, operand 27, single buffered']
    #allocation34 [shape = 'u8[512]{0}', space=vmem, size = 0x400, scoped, tag = 'input window, operand 28, single buffered']
    #allocation35 [shape = 's32[1]{0}', space=sflag, size = 0x4, scoped, tag = 'scoped memory for tpu_custom_call.1']
    #allocation36 [shape = 'u8[512]{0}', space=vmem, size = 0x400, scoped, tag = 'input window, operand 29, single buffered']
    #allocation37 [shape = 'u8[512]{0}', space=vmem, size = 0x400, scoped, tag = 'input window, operand 30, single buffered']
    #allocation38 [shape = 's32[1]{0}', space=sflag, size = 0x4, scoped, tag = 'scoped memory for tpu_custom_call.1']
    #allocation39 [shape = 'u8[131072]{0}', space=vmem, size = 0x20000, scoped, tag = 'input window, operand 31, single buffered']
    #allocation40 [shape = 'u8[512]{0}', space=vmem, size = 0x400, scoped, tag = 'input window, operand 32, single buffered']
    #allocation41 [shape = 's32[1]{0}', space=sflag, size = 0x4, scoped, tag = 'scoped memory for tpu_custom_call.1']
    #allocation42 [shape = 'u8[139264]{0}', space=vmem, size = 0x22000, scoped, tag = 'input window, operand 33, single buffered']
    %88 = vsyncpa [#allocation3], 0
    %s89 = scalar_lea.sflag [#allocation3], 1
    %90 = vsyncpa %s89, 0
    %91 = vsyncpa [#allocation5], 0
    %92 = vsyncpa [#allocation8], 0
    %93 = vsyncpa [#allocation11], 0
    %94 = vsyncpa [#allocation14], 0
    %95 = vsyncpa [#allocation17], 0
    %96 = vsyncpa [#allocation20], 0
    %97 = vsyncpa [#allocation23], 0
    %98 = vsyncpa [#allocation26], 0
    %99 = vsyncpa [#allocation29], 0
    %100 = vsyncpa [#allocation32], 0
    %101 = vsyncpa [#allocation35], 0
    %102 = vsyncpa [#allocation38], 0
    %103 = vsyncpa [#allocation41], 0
    loop: start=0, step=1, limit=4
    $region2: #{tpu_custom_call.1} parent=1 // loop_pre_header
      _
    $region3: #{tpu_custom_call.1} parent=1 // loop_header
      %s105 = sphi 0, %s109
      %p106 = scmp.ge.s32.totalorder %s105, 4
      %s115 = sphi 0, %s117
      %s118 = sphi 0, %s115
      %s119 = sphi 0, %s118
      %s135 = sphi 0, %s119
      %s141 = sphi 0, %s143
      %s144 = sphi 0, %s141
      %s145 = sphi 0, %s144
      %s161 = sphi 0, %s145
      %s165 = sphi 0, %s165
      %s167 = sphi 0, %s165
      %s168 = sphi 0, %s167
      %s182 = sphi 0, %s168
      %s186 = sphi 0, %s186
      %s188 = sphi 0, %s186
      %s189 = sphi 0, %s188
      %s203 = sphi 0, %s189
      %s207 = sphi 0, %s207
      %s209 = sphi 0, %s207
      %s210 = sphi 0, %s209
      %s224 = sphi 0, %s210
      %s228 = sphi 0, %s228
      %s230 = sphi 0, %s228
      %s231 = sphi 0, %s230
      %s245 = sphi 0, %s231
      %s249 = sphi 0, %s249
      %s251 = sphi 0, %s249
      %s252 = sphi 0, %s251
      %s266 = sphi 0, %s252
      %s270 = sphi 0, %s270
      %s272 = sphi 0, %s270
      %s273 = sphi 0, %s272
      %s287 = sphi 0, %s273
      %s291 = sphi 0, %s291
      %s293 = sphi 0, %s291
      %s294 = sphi 0, %s293
      %s308 = sphi 0, %s294
      %s312 = sphi 0, %s312
      %s314 = sphi 0, %s312
      %s315 = sphi 0, %s314
      %s329 = sphi 0, %s315
      %s333 = sphi 0, %s333
      %s335 = sphi 0, %s333
      %s336 = sphi 0, %s335
      %s350 = sphi 0, %s336
      %s354 = sphi 0, %s354
      %s356 = sphi 0, %s354
      %s357 = sphi 0, %s356
      %s371 = sphi 0, %s357
      %s375 = sphi 0, %s375
      %s377 = sphi 0, %s375
      %s378 = sphi 0, %s377
      %s392 = sphi 0, %s378
      %s396 = sphi 0, %s396
      %s398 = sphi 0, %s396
      %s399 = sphi 0, %s398
      %s413 = sphi 0, %s399
      %s417 = sphi 0, %s417
      %s419 = sphi 0, %s417
      %s420 = sphi 0, %s419
      %s434 = sphi 0, %s420
      %s438 = sphi 0, %s438
      %s440 = sphi 0, %s438
      %s441 = sphi 0, %s440
      %s455 = sphi 0, %s441
      %s459 = sphi 0, %s459
      %s461 = sphi 0, %s459
      %s462 = sphi 0, %s461
      %s476 = sphi 0, %s462
      %s480 = sphi 0, %s480
      %s482 = sphi 0, %s480
      %s483 = sphi 0, %s482
      %s497 = sphi 0, %s483
      %s501 = sphi 0, %s501
      %s503 = sphi 0, %s501
      %s504 = sphi 0, %s503
      %s518 = sphi 0, %s504
      %s522 = sphi 0, %s522
      %s524 = sphi 0, %s522
      %s525 = sphi 0, %s524
      %s539 = sphi 0, %s525
      %s543 = sphi 0, %s543
      %s545 = sphi 0, %s543
      %s546 = sphi 0, %s545
      %s560 = sphi 0, %s546
      %s564 = sphi 0, %s564
      %s566 = sphi 0, %s564
      %s567 = sphi 0, %s566
      %s581 = sphi 0, %s567
      %s585 = sphi 0, %s585
      %s587 = sphi 0, %s585
      %s588 = sphi 0, %s587
      %s602 = sphi 0, %s588
      %s606 = sphi 0, %s606
      %s608 = sphi 0, %s606
      %s609 = sphi 0, %s608
      %s623 = sphi 0, %s609
      %s627 = sphi 0, %s627
      %s629 = sphi 0, %s627
      %s630 = sphi 0, %s629
      %s644 = sphi 0, %s630
      %s648 = sphi 0, %s648
      %s650 = sphi 0, %s648
      %s651 = sphi 0, %s650
      %s665 = sphi 0, %s651
      %s669 = sphi 0, %s669
      %s671 = sphi 0, %s669
      %s672 = sphi 0, %s671
      %s686 = sphi 0, %s672
      %s690 = sphi 0, %s690
      %s692 = sphi 0, %s690
      %s693 = sphi 0, %s692
      %s707 = sphi 0, %s693
      %s711 = sphi 0, %s711
      %s713 = sphi 0, %s711
      %s714 = sphi 0, %s713
      %s728 = sphi 0, %s714
      %s732 = sphi 0, %s732
      %s734 = sphi 0, %s732
      %s735 = sphi 0, %s734
      %s749 = sphi 0, %s735
      %s753 = sphi 0, %s753
      %s755 = sphi 0, %s753
      %s756 = sphi 0, %s755
      %s770 = sphi 0, %s756
      %s774 = sphi 0, %s774
      %s776 = sphi 0, %s774
      %s777 = sphi 0, %s776
      %s791 = sphi 0, %s777
      %s795 = sphi 0, %s795
      %s797 = sphi 0, %s795
      %s798 = sphi 0, %s797
      %s812 = sphi 0, %s798
      %s816 = sphi 0, %s816
      %s818 = sphi 0, %s816
      %s819 = sphi 0, %s818
      %s833 = sphi 0, %s819
      %s837 = sphi 0, %s837
      %s839 = sphi 0, %s837
      %s840 = sphi 0, %s839
      %s854 = sphi 0, %s840
      %s858 = sphi 0, %s858
      %s860 = sphi 0, %s858
      %s861 = sphi 0, %s860
      %s875 = sphi 0, %s861
      %s879 = sphi 0, %s879
      %s881 = sphi 0, %s879
      %s882 = sphi 0, %s881
      %s896 = sphi 0, %s882
      %s900 = sphi 0, %s900
      %s902 = sphi 0, %s900
      %s903 = sphi 0, %s902
      %s917 = sphi 0, %s903
      %s921 = sphi 0, %s921
      %s923 = sphi 0, %s921
      %s924 = sphi 0, %s923
      %s938 = sphi 0, %s924
      %s942 = sphi 0, %s942
      %s944 = sphi 0, %s942
      %s945 = sphi 0, %s944
      %s959 = sphi 0, %s945
      %s963 = sphi 0, %s963
      %s965 = sphi 0, %s963
      %s966 = sphi 0, %s965
      %s980 = sphi 0, %s966
      %s986 = sphi 0, %s988
      %s989 = sphi 0, %s986
      %s990 = sphi 0, %s989
      %s1006 = sphi 0, %s990
    $region4: #{tpu_custom_call.1} parent=1 // loop_header_branch
      %108 = sbr.rel (%p106) target = $region8
    $region5: #{tpu_custom_call.1} parent=1 // loop_body
      %s110 = ssub.s32 %s105, 1
      %s111 = ssub.s32 %s105, 2
      %s112 = sadd.s32 %s105, 1
      %s113 = ssub.s32 %s105, %s112
      %p114 = scmp.eq.s32.totalorder %s113, 0
      %s116 = sadd.s32 %s115, 1
      %s117 = scalar_select %p114, %s115, %s116
      %p120 = pneg %p114
      %p121 = scmp.eq.s32.totalorder %s105, 1
      %p122 = por %p120, %p121
      %p123 = scmp.ne.s32.totalorder %s115, %s118
      %p124 = scmp.eq.s32.totalorder %s105, 0
      %p125 = por %p123, %p124
      %p126 = scmp.ne.s32.totalorder %s115, %s118
      %p127 = scmp.eq.s32.totalorder %s110, 1
      %p128 = por %p126, %p127
      %p129 = scmp.ne.s32.totalorder %s118, %s119
      %p130 = scmp.eq.s32.totalorder %s110, 0
      %p131 = por %p129, %p130
      %p132 = scmp.ne.s32.totalorder %s118, %s119
      %p133 = scmp.eq.s32.totalorder %s111, 1
      %p134 = por %p132, %p133
      %p136 = scmp.ne.s32.totalorder %s119, %s135
      %p137 = scmp.eq.s32.totalorder %s111, 0
      %p138 = por %p136, %p137
      %s139 = ssub.s32 %s105, %s112
      %p140 = scmp.eq.s32.totalorder %s139, 0
      %s142 = sadd.s32 %s141, 1
      %s143 = scalar_select %p140, %s141, %s142
      %p146 = pneg %p140
      %p147 = scmp.eq.s32.totalorder %s105, 1
      %p148 = por %p146, %p147
      %p149 = scmp.ne.s32.totalorder %s141, %s144
      %p150 = scmp.eq.s32.totalorder %s105, 0
      %p151 = por %p149, %p150
      %p152 = scmp.ne.s32.totalorder %s141, %s144
      %p153 = scmp.eq.s32.totalorder %s110, 1
      %p154 = por %p152, %p153
      %p155 = scmp.ne.s32.totalorder %s144, %s145
      %p156 = scmp.eq.s32.totalorder %s110, 0
      %p157 = por %p155, %p156
      %p158 = scmp.ne.s32.totalorder %s144, %s145
      %p159 = scmp.eq.s32.totalorder %s111, 1
      %p160 = por %p158, %p159
      %p162 = scmp.ne.s32.totalorder %s145, %s161
      %p163 = scmp.eq.s32.totalorder %s111, 0
      %p164 = por %p162, %p163
      %s166 = sadd.s32 %s165, 1
      %p169 = scmp.eq.s32.totalorder %s105, 1
      %p170 = scmp.ne.s32.totalorder %s165, %s167
      %p171 = scmp.eq.s32.totalorder %s105, 0
      %p172 = por %p170, %p171
      %p173 = scmp.ne.s32.totalorder %s165, %s167
      %p174 = scmp.eq.s32.totalorder %s110, 1
      %p175 = por %p173, %p174
      %p176 = scmp.ne.s32.totalorder %s167, %s168
      %p177 = scmp.eq.s32.totalorder %s110, 0
      %p178 = por %p176, %p177
      %p179 = scmp.ne.s32.totalorder %s167, %s168
      %p180 = scmp.eq.s32.totalorder %s111, 1
      %p181 = por %p179, %p180
      %p183 = scmp.ne.s32.totalorder %s168, %s182
      %p184 = scmp.eq.s32.totalorder %s111, 0
      %p185 = por %p183, %p184
      %s187 = sadd.s32 %s186, 1
      %p190 = scmp.eq.s32.totalorder %s105, 1
      %p191 = scmp.ne.s32.totalorder %s186, %s188
      %p192 = scmp.eq.s32.totalorder %s105, 0
      %p193 = por %p191, %p192
      %p194 = scmp.ne.s32.totalorder %s186, %s188
      %p195 = scmp.eq.s32.totalorder %s110, 1
      %p196 = por %p194, %p195
      %p197 = scmp.ne.s32.totalorder %s188, %s189
      %p198 = scmp.eq.s32.totalorder %s110, 0
      %p199 = por %p197, %p198
      %p200 = scmp.ne.s32.totalorder %s188, %s189
      %p201 = scmp.eq.s32.totalorder %s111, 1
      %p202 = por %p200, %p201
      %p204 = scmp.ne.s32.totalorder %s189, %s203
      %p205 = scmp.eq.s32.totalorder %s111, 0
      %p206 = por %p204, %p205
      %s208 = sadd.s32 %s207, 1
      %p211 = scmp.eq.s32.totalorder %s105, 1
      %p212 = scmp.ne.s32.totalorder %s207, %s209
      %p213 = scmp.eq.s32.totalorder %s105, 0
      %p214 = por %p212, %p213
      %p215 = scmp.ne.s32.totalorder %s207, %s209
      %p216 = scmp.eq.s32.totalorder %s110, 1
      %p217 = por %p215, %p216
      %p218 = scmp.ne.s32.totalorder %s209, %s210
      %p219 = scmp.eq.s32.totalorder %s110, 0
      %p220 = por %p218, %p219
      %p221 = scmp.ne.s32.totalorder %s209, %s210
      %p222 = scmp.eq.s32.totalorder %s111, 1
      %p223 = por %p221, %p222
      %p225 = scmp.ne.s32.totalorder %s210, %s224
      %p226 = scmp.eq.s32.totalorder %s111, 0
      %p227 = por %p225, %p226
      %s229 = sadd.s32 %s228, 1
      %p232 = scmp.eq.s32.totalorder %s105, 1
      %p233 = scmp.ne.s32.totalorder %s228, %s230
      %p234 = scmp.eq.s32.totalorder %s105, 0
      %p235 = por %p233, %p234
      %p236 = scmp.ne.s32.totalorder %s228, %s230
      %p237 = scmp.eq.s32.totalorder %s110, 1
      %p238 = por %p236, %p237
      %p239 = scmp.ne.s32.totalorder %s230, %s231
      %p240 = scmp.eq.s32.totalorder %s110, 0
      %p241 = por %p239, %p240
      %p242 = scmp.ne.s32.totalorder %s230, %s231
      %p243 = scmp.eq.s32.totalorder %s111, 1
      %p244 = por %p242, %p243
      %p246 = scmp.ne.s32.totalorder %s231, %s245
      %p247 = scmp.eq.s32.totalorder %s111, 0
      %p248 = por %p246, %p247
      %s250 = sadd.s32 %s249, 1
      %p253 = scmp.eq.s32.totalorder %s105, 1
      %p254 = scmp.ne.s32.totalorder %s249, %s251
      %p255 = scmp.eq.s32.totalorder %s105, 0
      %p256 = por %p254, %p255
      %p257 = scmp.ne.s32.totalorder %s249, %s251
      %p258 = scmp.eq.s32.totalorder %s110, 1
      %p259 = por %p257, %p258
      %p260 = scmp.ne.s32.totalorder %s251, %s252
      %p261 = scmp.eq.s32.totalorder %s110, 0
      %p262 = por %p260, %p261
      %p263 = scmp.ne.s32.totalorder %s251, %s252
      %p264 = scmp.eq.s32.totalorder %s111, 1
      %p265 = por %p263, %p264
      %p267 = scmp.ne.s32.totalorder %s252, %s266
      %p268 = scmp.eq.s32.totalorder %s111, 0
      %p269 = por %p267, %p268
      %s271 = sadd.s32 %s270, 1
      %p274 = scmp.eq.s32.totalorder %s105, 1
      %p275 = scmp.ne.s32.totalorder %s270, %s272
      %p276 = scmp.eq.s32.totalorder %s105, 0
      %p277 = por %p275, %p276
      %p278 = scmp.ne.s32.totalorder %s270, %s272
      %p279 = scmp.eq.s32.totalorder %s110, 1
      %p280 = por %p278, %p279
      %p281 = scmp.ne.s32.totalorder %s272, %s273
      %p282 = scmp.eq.s32.totalorder %s110, 0
      %p283 = por %p281, %p282
      %p284 = scmp.ne.s32.totalorder %s272, %s273
      %p285 = scmp.eq.s32.totalorder %s111, 1
      %p286 = por %p284, %p285
      %p288 = scmp.ne.s32.totalorder %s273, %s287
      %p289 = scmp.eq.s32.totalorder %s111, 0
      %p290 = por %p288, %p289
      %s292 = sadd.s32 %s291, 1
      %p295 = scmp.eq.s32.totalorder %s105, 1
      %p296 = scmp.ne.s32.totalorder %s291, %s293
      %p297 = scmp.eq.s32.totalorder %s105, 0
      %p298 = por %p296, %p297
      %p299 = scmp.ne.s32.totalorder %s291, %s293
      %p300 = scmp.eq.s32.totalorder %s110, 1
      %p301 = por %p299, %p300
      %p302 = scmp.ne.s32.totalorder %s293, %s294
      %p303 = scmp.eq.s32.totalorder %s110, 0
      %p304 = por %p302, %p303
      %p305 = scmp.ne.s32.totalorder %s293, %s294
      %p306 = scmp.eq.s32.totalorder %s111, 1
      %p307 = por %p305, %p306
      %p309 = scmp.ne.s32.totalorder %s294, %s308
      %p310 = scmp.eq.s32.totalorder %s111, 0
      %p311 = por %p309, %p310
      %s313 = sadd.s32 %s312, 1
      %p316 = scmp.eq.s32.totalorder %s105, 1
      %p317 = scmp.ne.s32.totalorder %s312, %s314
      %p318 = scmp.eq.s32.totalorder %s105, 0
      %p319 = por %p317, %p318
      %p320 = scmp.ne.s32.totalorder %s312, %s314
      %p321 = scmp.eq.s32.totalorder %s110, 1
      %p322 = por %p320, %p321
      %p323 = scmp.ne.s32.totalorder %s314, %s315
      %p324 = scmp.eq.s32.totalorder %s110, 0
      %p325 = por %p323, %p324
      %p326 = scmp.ne.s32.totalorder %s314, %s315
      %p327 = scmp.eq.s32.totalorder %s111, 1
      %p328 = por %p326, %p327
      %p330 = scmp.ne.s32.totalorder %s315, %s329
      %p331 = scmp.eq.s32.totalorder %s111, 0
      %p332 = por %p330, %p331
      %s334 = sadd.s32 %s333, 1
      %p337 = scmp.eq.s32.totalorder %s105, 1
      %p338 = scmp.ne.s32.totalorder %s333, %s335
      %p339 = scmp.eq.s32.totalorder %s105, 0
      %p340 = por %p338, %p339
      %p341 = scmp.ne.s32.totalorder %s333, %s335
      %p342 = scmp.eq.s32.totalorder %s110, 1
      %p343 = por %p341, %p342
      %p344 = scmp.ne.s32.totalorder %s335, %s336
      %p345 = scmp.eq.s32.totalorder %s110, 0
      %p346 = por %p344, %p345
      %p347 = scmp.ne.s32.totalorder %s335, %s336
      %p348 = scmp.eq.s32.totalorder %s111, 1
      %p349 = por %p347, %p348
      %p351 = scmp.ne.s32.totalorder %s336, %s350
      %p352 = scmp.eq.s32.totalorder %s111, 0
      %p353 = por %p351, %p352
      %s355 = sadd.s32 %s354, 1
      %p358 = scmp.eq.s32.totalorder %s105, 1
      %p359 = scmp.ne.s32.totalorder %s354, %s356
      %p360 = scmp.eq.s32.totalorder %s105, 0
      %p361 = por %p359, %p360
      %p362 = scmp.ne.s32.totalorder %s354, %s356
      %p363 = scmp.eq.s32.totalorder %s110, 1
      %p364 = por %p362, %p363
      %p365 = scmp.ne.s32.totalorder %s356, %s357
      %p366 = scmp.eq.s32.totalorder %s110, 0
      %p367 = por %p365, %p366
      %p368 = scmp.ne.s32.totalorder %s356, %s357
      %p369 = scmp.eq.s32.totalorder %s111, 1
      %p370 = por %p368, %p369
      %p372 = scmp.ne.s32.totalorder %s357, %s371
      %p373 = scmp.eq.s32.totalorder %s111, 0
      %p374 = por %p372, %p373
      %s376 = sadd.s32 %s375, 1
      %p379 = scmp.eq.s32.totalorder %s105, 1
      %p380 = scmp.ne.s32.totalorder %s375, %s377
      %p381 = scmp.eq.s32.totalorder %s105, 0
      %p382 = por %p380, %p381
      %p383 = scmp.ne.s32.totalorder %s375, %s377
      %p384 = scmp.eq.s32.totalorder %s110, 1
      %p385 = por %p383, %p384
      %p386 = scmp.ne.s32.totalorder %s377, %s378
      %p387 = scmp.eq.s32.totalorder %s110, 0
      %p388 = por %p386, %p387
      %p389 = scmp.ne.s32.totalorder %s377, %s378
      %p390 = scmp.eq.s32.totalorder %s111, 1
      %p391 = por %p389, %p390
      %p393 = scmp.ne.s32.totalorder %s378, %s392
      %p394 = scmp.eq.s32.totalorder %s111, 0
      %p395 = por %p393, %p394
      %s397 = sadd.s32 %s396, 1
      %p400 = scmp.eq.s32.totalorder %s105, 1
      %p401 = scmp.ne.s32.totalorder %s396, %s398
      %p402 = scmp.eq.s32.totalorder %s105, 0
      %p403 = por %p401, %p402
      %p404 = scmp.ne.s32.totalorder %s396, %s398
      %p405 = scmp.eq.s32.totalorder %s110, 1
      %p406 = por %p404, %p405
      %p407 = scmp.ne.s32.totalorder %s398, %s399
      %p408 = scmp.eq.s32.totalorder %s110, 0
      %p409 = por %p407, %p408
      %p410 = scmp.ne.s32.totalorder %s398, %s399
      %p411 = scmp.eq.s32.totalorder %s111, 1
      %p412 = por %p410, %p411
      %p414 = scmp.ne.s32.totalorder %s399, %s413
      %p415 = scmp.eq.s32.totalorder %s111, 0
      %p416 = por %p414, %p415
      %s418 = sadd.s32 %s417, 1
      %p421 = scmp.eq.s32.totalorder %s105, 1
      %p422 = scmp.ne.s32.totalorder %s417, %s419
      %p423 = scmp.eq.s32.totalorder %s105, 0
      %p424 = por %p422, %p423
      %p425 = scmp.ne.s32.totalorder %s417, %s419
      %p426 = scmp.eq.s32.totalorder %s110, 1
      %p427 = por %p425, %p426
      %p428 = scmp.ne.s32.totalorder %s419, %s420
      %p429 = scmp.eq.s32.totalorder %s110, 0
      %p430 = por %p428, %p429
      %p431 = scmp.ne.s32.totalorder %s419, %s420
      %p432 = scmp.eq.s32.totalorder %s111, 1
      %p433 = por %p431, %p432
      %p435 = scmp.ne.s32.totalorder %s420, %s434
      %p436 = scmp.eq.s32.totalorder %s111, 0
      %p437 = por %p435, %p436
      %s439 = sadd.s32 %s438, 1
      %p442 = scmp.eq.s32.totalorder %s105, 1
      %p443 = scmp.ne.s32.totalorder %s438, %s440
      %p444 = scmp.eq.s32.totalorder %s105, 0
      %p445 = por %p443, %p444
      %p446 = scmp.ne.s32.totalorder %s438, %s440
      %p447 = scmp.eq.s32.totalorder %s110, 1
      %p448 = por %p446, %p447
      %p449 = scmp.ne.s32.totalorder %s440, %s441
      %p450 = scmp.eq.s32.totalorder %s110, 0
      %p451 = por %p449, %p450
      %p452 = scmp.ne.s32.totalorder %s440, %s441
      %p453 = scmp.eq.s32.totalorder %s111, 1
      %p454 = por %p452, %p453
      %p456 = scmp.ne.s32.totalorder %s441, %s455
      %p457 = scmp.eq.s32.totalorder %s111, 0
      %p458 = por %p456, %p457
      %s460 = sadd.s32 %s459, 1
      %p463 = scmp.eq.s32.totalorder %s105, 1
      %p464 = scmp.ne.s32.totalorder %s459, %s461
      %p465 = scmp.eq.s32.totalorder %s105, 0
      %p466 = por %p464, %p465
      %p467 = scmp.ne.s32.totalorder %s459, %s461
      %p468 = scmp.eq.s32.totalorder %s110, 1
      %p469 = por %p467, %p468
      %p470 = scmp.ne.s32.totalorder %s461, %s462
      %p471 = scmp.eq.s32.totalorder %s110, 0
      %p472 = por %p470, %p471
      %p473 = scmp.ne.s32.totalorder %s461, %s462
      %p474 = scmp.eq.s32.totalorder %s111, 1
      %p475 = por %p473, %p474
      %p477 = scmp.ne.s32.totalorder %s462, %s476
      %p478 = scmp.eq.s32.totalorder %s111, 0
      %p479 = por %p477, %p478
      %s481 = sadd.s32 %s480, 1
      %p484 = scmp.eq.s32.totalorder %s105, 1
      %p485 = scmp.ne.s32.totalorder %s480, %s482
      %p486 = scmp.eq.s32.totalorder %s105, 0
      %p487 = por %p485, %p486
      %p488 = scmp.ne.s32.totalorder %s480, %s482
      %p489 = scmp.eq.s32.totalorder %s110, 1
      %p490 = por %p488, %p489
      %p491 = scmp.ne.s32.totalorder %s482, %s483
      %p492 = scmp.eq.s32.totalorder %s110, 0
      %p493 = por %p491, %p492
      %p494 = scmp.ne.s32.totalorder %s482, %s483
      %p495 = scmp.eq.s32.totalorder %s111, 1
      %p496 = por %p494, %p495
      %p498 = scmp.ne.s32.totalorder %s483, %s497
      %p499 = scmp.eq.s32.totalorder %s111, 0
      %p500 = por %p498, %p499
      %s502 = sadd.s32 %s501, 1
      %p505 = scmp.eq.s32.totalorder %s105, 1
      %p506 = scmp.ne.s32.totalorder %s501, %s503
      %p507 = scmp.eq.s32.totalorder %s105, 0
      %p508 = por %p506, %p507
      %p509 = scmp.ne.s32.totalorder %s501, %s503
      %p510 = scmp.eq.s32.totalorder %s110, 1
      %p511 = por %p509, %p510
      %p512 = scmp.ne.s32.totalorder %s503, %s504
      %p513 = scmp.eq.s32.totalorder %s110, 0
      %p514 = por %p512, %p513
      %p515 = scmp.ne.s32.totalorder %s503, %s504
      %p516 = scmp.eq.s32.totalorder %s111, 1
      %p517 = por %p515, %p516
      %p519 = scmp.ne.s32.totalorder %s504, %s518
      %p520 = scmp.eq.s32.totalorder %s111, 0
      %p521 = por %p519, %p520
      %s523 = sadd.s32 %s522, 1
      %p526 = scmp.eq.s32.totalorder %s105, 1
      %p527 = scmp.ne.s32.totalorder %s522, %s524
      %p528 = scmp.eq.s32.totalorder %s105, 0
      %p529 = por %p527, %p528
      %p530 = scmp.ne.s32.totalorder %s522, %s524
      %p531 = scmp.eq.s32.totalorder %s110, 1
      %p532 = por %p530, %p531
      %p533 = scmp.ne.s32.totalorder %s524, %s525
      %p534 = scmp.eq.s32.totalorder %s110, 0
      %p535 = por %p533, %p534
      %p536 = scmp.ne.s32.totalorder %s524, %s525
      %p537 = scmp.eq.s32.totalorder %s111, 1
      %p538 = por %p536, %p537
      %p540 = scmp.ne.s32.totalorder %s525, %s539
      %p541 = scmp.eq.s32.totalorder %s111, 0
      %p542 = por %p540, %p541
      %s544 = sadd.s32 %s543, 1
      %p547 = scmp.eq.s32.totalorder %s105, 1
      %p548 = scmp.ne.s32.totalorder %s543, %s545
      %p549 = scmp.eq.s32.totalorder %s105, 0
      %p550 = por %p548, %p549
      %p551 = scmp.ne.s32.totalorder %s543, %s545
      %p552 = scmp.eq.s32.totalorder %s110, 1
      %p553 = por %p551, %p552
      %p554 = scmp.ne.s32.totalorder %s545, %s546
      %p555 = scmp.eq.s32.totalorder %s110, 0
      %p556 = por %p554, %p555
      %p557 = scmp.ne.s32.totalorder %s545, %s546
      %p558 = scmp.eq.s32.totalorder %s111, 1
      %p559 = por %p557, %p558
      %p561 = scmp.ne.s32.totalorder %s546, %s560
      %p562 = scmp.eq.s32.totalorder %s111, 0
      %p563 = por %p561, %p562
      %s565 = sadd.s32 %s564, 1
      %p568 = scmp.eq.s32.totalorder %s105, 1
      %p569 = scmp.ne.s32.totalorder %s564, %s566
      %p570 = scmp.eq.s32.totalorder %s105, 0
      %p571 = por %p569, %p570
      %p572 = scmp.ne.s32.totalorder %s564, %s566
      %p573 = scmp.eq.s32.totalorder %s110, 1
      %p574 = por %p572, %p573
      %p575 = scmp.ne.s32.totalorder %s566, %s567
      %p576 = scmp.eq.s32.totalorder %s110, 0
      %p577 = por %p575, %p576
      %p578 = scmp.ne.s32.totalorder %s566, %s567
      %p579 = scmp.eq.s32.totalorder %s111, 1
      %p580 = por %p578, %p579
      %p582 = scmp.ne.s32.totalorder %s567, %s581
      %p583 = scmp.eq.s32.totalorder %s111, 0
      %p584 = por %p582, %p583
      %s586 = sadd.s32 %s585, 1
      %p589 = scmp.eq.s32.totalorder %s105, 1
      %p590 = scmp.ne.s32.totalorder %s585, %s587
      %p591 = scmp.eq.s32.totalorder %s105, 0
      %p592 = por %p590, %p591
      %p593 = scmp.ne.s32.totalorder %s585, %s587
      %p594 = scmp.eq.s32.totalorder %s110, 1
      %p595 = por %p593, %p594
      %p596 = scmp.ne.s32.totalorder %s587, %s588
      %p597 = scmp.eq.s32.totalorder %s110, 0
      %p598 = por %p596, %p597
      %p599 = scmp.ne.s32.totalorder %s587, %s588
      %p600 = scmp.eq.s32.totalorder %s111, 1
      %p601 = por %p599, %p600
      %p603 = scmp.ne.s32.totalorder %s588, %s602
      %p604 = scmp.eq.s32.totalorder %s111, 0
      %p605 = por %p603, %p604
      %s607 = sadd.s32 %s606, 1
      %p610 = scmp.eq.s32.totalorder %s105, 1
      %p611 = scmp.ne.s32.totalorder %s606, %s608
      %p612 = scmp.eq.s32.totalorder %s105, 0
      %p613 = por %p611, %p612
      %p614 = scmp.ne.s32.totalorder %s606, %s608
      %p615 = scmp.eq.s32.totalorder %s110, 1
      %p616 = por %p614, %p615
      %p617 = scmp.ne.s32.totalorder %s608, %s609
      %p618 = scmp.eq.s32.totalorder %s110, 0
      %p619 = por %p617, %p618
      %p620 = scmp.ne.s32.totalorder %s608, %s609
      %p621 = scmp.eq.s32.totalorder %s111, 1
      %p622 = por %p620, %p621
      %p624 = scmp.ne.s32.totalorder %s609, %s623
      %p625 = scmp.eq.s32.totalorder %s111, 0
      %p626 = por %p624, %p625
      %s628 = sadd.s32 %s627, 1
      %p631 = scmp.eq.s32.totalorder %s105, 1
      %p632 = scmp.ne.s32.totalorder %s627, %s629
      %p633 = scmp.eq.s32.totalorder %s105, 0
      %p634 = por %p632, %p633
      %p635 = scmp.ne.s32.totalorder %s627, %s629
      %p636 = scmp.eq.s32.totalorder %s110, 1
      %p637 = por %p635, %p636
      %p638 = scmp.ne.s32.totalorder %s629, %s630
      %p639 = scmp.eq.s32.totalorder %s110, 0
      %p640 = por %p638, %p639
      %p641 = scmp.ne.s32.totalorder %s629, %s630
      %p642 = scmp.eq.s32.totalorder %s111, 1
      %p643 = por %p641, %p642
      %p645 = scmp.ne.s32.totalorder %s630, %s644
      %p646 = scmp.eq.s32.totalorder %s111, 0
      %p647 = por %p645, %p646
      %s649 = sadd.s32 %s648, 1
      %p652 = scmp.eq.s32.totalorder %s105, 1
      %p653 = scmp.ne.s32.totalorder %s648, %s650
      %p654 = scmp.eq.s32.totalorder %s105, 0
      %p655 = por %p653, %p654
      %p656 = scmp.ne.s32.totalorder %s648, %s650
      %p657 = scmp.eq.s32.totalorder %s110, 1
      %p658 = por %p656, %p657
      %p659 = scmp.ne.s32.totalorder %s650, %s651
      %p660 = scmp.eq.s32.totalorder %s110, 0
      %p661 = por %p659, %p660
      %p662 = scmp.ne.s32.totalorder %s650, %s651
      %p663 = scmp.eq.s32.totalorder %s111, 1
      %p664 = por %p662, %p663
      %p666 = scmp.ne.s32.totalorder %s651, %s665
      %p667 = scmp.eq.s32.totalorder %s111, 0
      %p668 = por %p666, %p667
      %s670 = sadd.s32 %s669, 1
      %p673 = scmp.eq.s32.totalorder %s105, 1
      %p674 = scmp.ne.s32.totalorder %s669, %s671
      %p675 = scmp.eq.s32.totalorder %s105, 0
      %p676 = por %p674, %p675
      %p677 = scmp.ne.s32.totalorder %s669, %s671
      %p678 = scmp.eq.s32.totalorder %s110, 1
      %p679 = por %p677, %p678
      %p680 = scmp.ne.s32.totalorder %s671, %s672
      %p681 = scmp.eq.s32.totalorder %s110, 0
      %p682 = por %p680, %p681
      %p683 = scmp.ne.s32.totalorder %s671, %s672
      %p684 = scmp.eq.s32.totalorder %s111, 1
      %p685 = por %p683, %p684
      %p687 = scmp.ne.s32.totalorder %s672, %s686
      %p688 = scmp.eq.s32.totalorder %s111, 0
      %p689 = por %p687, %p688
      %s691 = sadd.s32 %s690, 1
      %p694 = scmp.eq.s32.totalorder %s105, 1
      %p695 = scmp.ne.s32.totalorder %s690, %s692
      %p696 = scmp.eq.s32.totalorder %s105, 0
      %p697 = por %p695, %p696
      %p698 = scmp.ne.s32.totalorder %s690, %s692
      %p699 = scmp.eq.s32.totalorder %s110, 1
      %p700 = por %p698, %p699
      %p701 = scmp.ne.s32.totalorder %s692, %s693
      %p702 = scmp.eq.s32.totalorder %s110, 0
      %p703 = por %p701, %p702
      %p704 = scmp.ne.s32.totalorder %s692, %s693
      %p705 = scmp.eq.s32.totalorder %s111, 1
      %p706 = por %p704, %p705
      %p708 = scmp.ne.s32.totalorder %s693, %s707
      %p709 = scmp.eq.s32.totalorder %s111, 0
      %p710 = por %p708, %p709
      %s712 = sadd.s32 %s711, 1
      %p715 = scmp.eq.s32.totalorder %s105, 1
      %p716 = scmp.ne.s32.totalorder %s711, %s713
      %p717 = scmp.eq.s32.totalorder %s105, 0
      %p718 = por %p716, %p717
      %p719 = scmp.ne.s32.totalorder %s711, %s713
      %p720 = scmp.eq.s32.totalorder %s110, 1
      %p721 = por %p719, %p720
      %p722 = scmp.ne.s32.totalorder %s713, %s714
      %p723 = scmp.eq.s32.totalorder %s110, 0
      %p724 = por %p722, %p723
      %p725 = scmp.ne.s32.totalorder %s713, %s714
      %p726 = scmp.eq.s32.totalorder %s111, 1
      %p727 = por %p725, %p726
      %p729 = scmp.ne.s32.totalorder %s714, %s728
      %p730 = scmp.eq.s32.totalorder %s111, 0
      %p731 = por %p729, %p730
      %s733 = sadd.s32 %s732, 1
      %p736 = scmp.eq.s32.totalorder %s105, 1
      %p737 = scmp.ne.s32.totalorder %s732, %s734
      %p738 = scmp.eq.s32.totalorder %s105, 0
      %p739 = por %p737, %p738
      %p740 = scmp.ne.s32.totalorder %s732, %s734
      %p741 = scmp.eq.s32.totalorder %s110, 1
      %p742 = por %p740, %p741
      %p743 = scmp.ne.s32.totalorder %s734, %s735
      %p744 = scmp.eq.s32.totalorder %s110, 0
      %p745 = por %p743, %p744
      %p746 = scmp.ne.s32.totalorder %s734, %s735
      %p747 = scmp.eq.s32.totalorder %s111, 1
      %p748 = por %p746, %p747
      %p750 = scmp.ne.s32.totalorder %s735, %s749
      %p751 = scmp.eq.s32.totalorder %s111, 0
      %p752 = por %p750, %p751
      %s754 = sadd.s32 %s753, 1
      %p757 = scmp.eq.s32.totalorder %s105, 1
      %p758 = scmp.ne.s32.totalorder %s753, %s755
      %p759 = scmp.eq.s32.totalorder %s105, 0
      %p760 = por %p758, %p759
      %p761 = scmp.ne.s32.totalorder %s753, %s755
      %p762 = scmp.eq.s32.totalorder %s110, 1
      %p763 = por %p761, %p762
      %p764 = scmp.ne.s32.totalorder %s755, %s756
      %p765 = scmp.eq.s32.totalorder %s110, 0
      %p766 = por %p764, %p765
      %p767 = scmp.ne.s32.totalorder %s755, %s756
      %p768 = scmp.eq.s32.totalorder %s111, 1
      %p769 = por %p767, %p768
      %p771 = scmp.ne.s32.totalorder %s756, %s770
      %p772 = scmp.eq.s32.totalorder %s111, 0
      %p773 = por %p771, %p772
      %s775 = sadd.s32 %s774, 1
      %p778 = scmp.eq.s32.totalorder %s105, 1
      %p779 = scmp.ne.s32.totalorder %s774, %s776
      %p780 = scmp.eq.s32.totalorder %s105, 0
      %p781 = por %p779, %p780
      %p782 = scmp.ne.s32.totalorder %s774, %s776
      %p783 = scmp.eq.s32.totalorder %s110, 1
      %p784 = por %p782, %p783
      %p785 = scmp.ne.s32.totalorder %s776, %s777
      %p786 = scmp.eq.s32.totalorder %s110, 0
      %p787 = por %p785, %p786
      %p788 = scmp.ne.s32.totalorder %s776, %s777
      %p789 = scmp.eq.s32.totalorder %s111, 1
      %p790 = por %p788, %p789
      %p792 = scmp.ne.s32.totalorder %s777, %s791
      %p793 = scmp.eq.s32.totalorder %s111, 0
      %p794 = por %p792, %p793
      %s796 = sadd.s32 %s795, 1
      %p799 = scmp.eq.s32.totalorder %s105, 1
      %p800 = scmp.ne.s32.totalorder %s795, %s797
      %p801 = scmp.eq.s32.totalorder %s105, 0
      %p802 = por %p800, %p801
      %p803 = scmp.ne.s32.totalorder %s795, %s797
      %p804 = scmp.eq.s32.totalorder %s110, 1
      %p805 = por %p803, %p804
      %p806 = scmp.ne.s32.totalorder %s797, %s798
      %p807 = scmp.eq.s32.totalorder %s110, 0
      %p808 = por %p806, %p807
      %p809 = scmp.ne.s32.totalorder %s797, %s798
      %p810 = scmp.eq.s32.totalorder %s111, 1
      %p811 = por %p809, %p810
      %p813 = scmp.ne.s32.totalorder %s798, %s812
      %p814 = scmp.eq.s32.totalorder %s111, 0
      %p815 = por %p813, %p814
      %s817 = sadd.s32 %s816, 1
      %p820 = scmp.eq.s32.totalorder %s105, 1
      %p821 = scmp.ne.s32.totalorder %s816, %s818
      %p822 = scmp.eq.s32.totalorder %s105, 0
      %p823 = por %p821, %p822
      %p824 = scmp.ne.s32.totalorder %s816, %s818
      %p825 = scmp.eq.s32.totalorder %s110, 1
      %p826 = por %p824, %p825
      %p827 = scmp.ne.s32.totalorder %s818, %s819
      %p828 = scmp.eq.s32.totalorder %s110, 0
      %p829 = por %p827, %p828
      %p830 = scmp.ne.s32.totalorder %s818, %s819
      %p831 = scmp.eq.s32.totalorder %s111, 1
      %p832 = por %p830, %p831
      %p834 = scmp.ne.s32.totalorder %s819, %s833
      %p835 = scmp.eq.s32.totalorder %s111, 0
      %p836 = por %p834, %p835
      %s838 = sadd.s32 %s837, 1
      %p841 = scmp.eq.s32.totalorder %s105, 1
      %p842 = scmp.ne.s32.totalorder %s837, %s839
      %p843 = scmp.eq.s32.totalorder %s105, 0
      %p844 = por %p842, %p843
      %p845 = scmp.ne.s32.totalorder %s837, %s839
      %p846 = scmp.eq.s32.totalorder %s110, 1
      %p847 = por %p845, %p846
      %p848 = scmp.ne.s32.totalorder %s839, %s840
      %p849 = scmp.eq.s32.totalorder %s110, 0
      %p850 = por %p848, %p849
      %p851 = scmp.ne.s32.totalorder %s839, %s840
      %p852 = scmp.eq.s32.totalorder %s111, 1
      %p853 = por %p851, %p852
      %p855 = scmp.ne.s32.totalorder %s840, %s854
      %p856 = scmp.eq.s32.totalorder %s111, 0
      %p857 = por %p855, %p856
      %s859 = sadd.s32 %s858, 1
      %p862 = scmp.eq.s32.totalorder %s105, 1
      %p863 = scmp.ne.s32.totalorder %s858, %s860
      %p864 = scmp.eq.s32.totalorder %s105, 0
      %p865 = por %p863, %p864
      %p866 = scmp.ne.s32.totalorder %s858, %s860
      %p867 = scmp.eq.s32.totalorder %s110, 1
      %p868 = por %p866, %p867
      %p869 = scmp.ne.s32.totalorder %s860, %s861
      %p870 = scmp.eq.s32.totalorder %s110, 0
      %p871 = por %p869, %p870
      %p872 = scmp.ne.s32.totalorder %s860, %s861
      %p873 = scmp.eq.s32.totalorder %s111, 1
      %p874 = por %p872, %p873
      %p876 = scmp.ne.s32.totalorder %s861, %s875
      %p877 = scmp.eq.s32.totalorder %s111, 0
      %p878 = por %p876, %p877
      %s880 = sadd.s32 %s879, 1
      %p883 = scmp.eq.s32.totalorder %s105, 1
      %p884 = scmp.ne.s32.totalorder %s879, %s881
      %p885 = scmp.eq.s32.totalorder %s105, 0
      %p886 = por %p884, %p885
      %p887 = scmp.ne.s32.totalorder %s879, %s881
      %p888 = scmp.eq.s32.totalorder %s110, 1
      %p889 = por %p887, %p888
      %p890 = scmp.ne.s32.totalorder %s881, %s882
      %p891 = scmp.eq.s32.totalorder %s110, 0
      %p892 = por %p890, %p891
      %p893 = scmp.ne.s32.totalorder %s881, %s882
      %p894 = scmp.eq.s32.totalorder %s111, 1
      %p895 = por %p893, %p894
      %p897 = scmp.ne.s32.totalorder %s882, %s896
      %p898 = scmp.eq.s32.totalorder %s111, 0
      %p899 = por %p897, %p898
      %s901 = sadd.s32 %s900, 1
      %p904 = scmp.eq.s32.totalorder %s105, 1
      %p905 = scmp.ne.s32.totalorder %s900, %s902
      %p906 = scmp.eq.s32.totalorder %s105, 0
      %p907 = por %p905, %p906
      %p908 = scmp.ne.s32.totalorder %s900, %s902
      %p909 = scmp.eq.s32.totalorder %s110, 1
      %p910 = por %p908, %p909
      %p911 = scmp.ne.s32.totalorder %s902, %s903
      %p912 = scmp.eq.s32.totalorder %s110, 0
      %p913 = por %p911, %p912
      %p914 = scmp.ne.s32.totalorder %s902, %s903
      %p915 = scmp.eq.s32.totalorder %s111, 1
      %p916 = por %p914, %p915
      %p918 = scmp.ne.s32.totalorder %s903, %s917
      %p919 = scmp.eq.s32.totalorder %s111, 0
      %p920 = por %p918, %p919
      %s922 = sadd.s32 %s921, 1
      %p925 = scmp.eq.s32.totalorder %s105, 1
      %p926 = scmp.ne.s32.totalorder %s921, %s923
      %p927 = scmp.eq.s32.totalorder %s105, 0
      %p928 = por %p926, %p927
      %p929 = scmp.ne.s32.totalorder %s921, %s923
      %p930 = scmp.eq.s32.totalorder %s110, 1
      %p931 = por %p929, %p930
      %p932 = scmp.ne.s32.totalorder %s923, %s924
      %p933 = scmp.eq.s32.totalorder %s110, 0
      %p934 = por %p932, %p933
      %p935 = scmp.ne.s32.totalorder %s923, %s924
      %p936 = scmp.eq.s32.totalorder %s111, 1
      %p937 = por %p935, %p936
      %p939 = scmp.ne.s32.totalorder %s924, %s938
      %p940 = scmp.eq.s32.totalorder %s111, 0
      %p941 = por %p939, %p940
      %s943 = sadd.s32 %s942, 1
      %p946 = scmp.eq.s32.totalorder %s105, 1
      %p947 = scmp.ne.s32.totalorder %s942, %s944
      %p948 = scmp.eq.s32.totalorder %s105, 0
      %p949 = por %p947, %p948
      %p950 = scmp.ne.s32.totalorder %s942, %s944
      %p951 = scmp.eq.s32.totalorder %s110, 1
      %p952 = por %p950, %p951
      %p953 = scmp.ne.s32.totalorder %s944, %s945
      %p954 = scmp.eq.s32.totalorder %s110, 0
      %p955 = por %p953, %p954
      %p956 = scmp.ne.s32.totalorder %s944, %s945
      %p957 = scmp.eq.s32.totalorder %s111, 1
      %p958 = por %p956, %p957
      %p960 = scmp.ne.s32.totalorder %s945, %s959
      %p961 = scmp.eq.s32.totalorder %s111, 0
      %p962 = por %p960, %p961
      %s964 = sadd.s32 %s963, 1
      %p967 = scmp.eq.s32.totalorder %s105, 1
      %p968 = scmp.ne.s32.totalorder %s963, %s965
      %p969 = scmp.eq.s32.totalorder %s105, 0
      %p970 = por %p968, %p969
      %p971 = scmp.ne.s32.totalorder %s963, %s965
      %p972 = scmp.eq.s32.totalorder %s110, 1
      %p973 = por %p971, %p972
      %p974 = scmp.ne.s32.totalorder %s965, %s966
      %p975 = scmp.eq.s32.totalorder %s110, 0
      %p976 = por %p974, %p975
      %p977 = scmp.ne.s32.totalorder %s965, %s966
      %p978 = scmp.eq.s32.totalorder %s111, 1
      %p979 = por %p977, %p978
      %p981 = scmp.ne.s32.totalorder %s966, %s980
      %p982 = scmp.eq.s32.totalorder %s111, 0
      %p983 = por %p981, %p982
      %s984 = ssub.s32 %s105, %s112
      %p985 = scmp.eq.s32.totalorder %s984, 0
      %s987 = sadd.s32 %s986, 1
      %s988 = scalar_select %p985, %s986, %s987
      %p991 = pneg %p985
      %p992 = scmp.eq.s32.totalorder %s105, 1
      %p993 = por %p991, %p992
      %p994 = scmp.ne.s32.totalorder %s986, %s989
      %p995 = scmp.eq.s32.totalorder %s105, 0
      %p996 = por %p994, %p995
      %p997 = scmp.ne.s32.totalorder %s986, %s989
      %p998 = scmp.eq.s32.totalorder %s110, 1
      %p999 = por %p997, %p998
      %p1000 = scmp.ne.s32.totalorder %s989, %s990
      %p1001 = scmp.eq.s32.totalorder %s110, 0
      %p1002 = por %p1000, %p1001
      %p1003 = scmp.ne.s32.totalorder %s989, %s990
      %p1004 = scmp.eq.s32.totalorder %s111, 1
      %p1005 = por %p1003, %p1004
      %p1007 = scmp.ne.s32.totalorder %s990, %s1006
      %p1008 = scmp.eq.s32.totalorder %s111, 0
      %p1009 = por %p1007, %p1008
      %p1010 = scmp.le.s32.totalorder 1, %s105
      %p1011 = scmp.lt.s32.totalorder %s105, 3
      %p1012 = pnand %p1010, %p1011
      %p1013 = pneg %p1012
      // Predicated region
      $region9: #{tpu_custom_call.1} parent=5 // pred_check
        _
      $region10: #{tpu_custom_call.1} parent=5 // pred_check_branch
        %1015 = sbr.rel (%p1012) target = $region12
      $region11: #{tpu_custom_call.1} parent=5 // pred_region
        %s1016 = ssub.s32 %s105, 1
        // Predicated region
        $region13: #{tpu_custom_call.1} parent=11 // pred_check
          %p1017 = pneg %p178
        $region14: #{tpu_custom_call.1} parent=11 // pred_check_branch
          %1019 = sbr.rel (%p1017) target = $region16
        $region15: #{tpu_custom_call.1} parent=11 // pred_region
          %s1021 = ssub.s32 256, 256
          %1022 = vsyncadd [#allocation5], %s1021
          %s1023 = sshll.u32 [#allocation4], 4
          %s1024 = int_to_ptr.vmem [resolvable:$true] %s1023
          %1029 = dma.hbm_to_vmem [thread:$0]  %s5, 256, %s1024, [#allocation5], 128, 128, 8
        $region16: #{tpu_custom_call.1} parent=11 // pred_fallthru
          _
        // Predicated region
        $region17: #{tpu_custom_call.1} parent=11 // pred_check
          %p1030 = pneg %p199
        $region18: #{tpu_custom_call.1} parent=11 // pred_check_branch
          %1032 = sbr.rel (%p1030) target = $region20
        $region19: #{tpu_custom_call.1} parent=11 // pred_region
          %s1034 = ssub.s32 3072, 3072
          %1035 = vsyncadd [#allocation5], %s1034
          %s1036 = sshll.u32 [#allocation6], 4
          %s1037 = int_to_ptr.vmem [resolvable:$true] %s1036
          %1042 = dma.hbm_to_vmem [thread:$0]  %s7, 3072, %s1037, [#allocation5], 256, 256, 16
        $region20: #{tpu_custom_call.1} parent=11 // pred_fallthru
          _
        // Predicated region
        $region21: #{tpu_custom_call.1} parent=11 // pred_check
          %p1043 = pneg %p220
        $region22: #{tpu_custom_call.1} parent=11 // pred_check_branch
          %1045 = sbr.rel (%p1043) target = $region24
        $region23: #{tpu_custom_call.1} parent=11 // pred_region
          %s1047 = ssub.s32 512, 512
          %1048 = vsyncadd [#allocation8], %s1047
          %s1049 = sshll.u32 [#allocation7], 4
          %s1050 = int_to_ptr.vmem [resolvable:$true] %s1049
          %1055 = dma.hbm_to_vmem [thread:$0]  %s9, 512, %s1050, [#allocation8], 256, 256, 16
        $region24: #{tpu_custom_call.1} parent=11 // pred_fallthru
          _
        // Predicated region
        $region25: #{tpu_custom_call.1} parent=11 // pred_check
          %p1056 = pneg %p241
        $region26: #{tpu_custom_call.1} parent=11 // pred_check_branch
          %1058 = sbr.rel (%p1056) target = $region28
        $region27: #{tpu_custom_call.1} parent=11 // pred_region
          _
        $region28: #{tpu_custom_call.1} parent=11 // pred_fallthru
          _
        // Predicated region
        $region29: #{tpu_custom_call.1} parent=11 // pred_check
          %p1059 = pneg %p262
        $region30: #{tpu_custom_call.1} parent=11 // pred_check_branch
          %1061 = sbr.rel (%p1059) target = $region32
        $region31: #{tpu_custom_call.1} parent=11 // pred_region
          %s1063 = ssub.s32 512, 512
          %1064 = vsyncadd [#allocation8], %s1063
          %s1065 = sshll.u32 [#allocation9], 4
          %s1066 = int_to_ptr.vmem [resolvable:$true] %s1065
          %1071 = dma.hbm_to_vmem [thread:$0]  %s13, 512, %s1066, [#allocation8], 256, 256, 16
        $region32: #{tpu_custom_call.1} parent=11 // pred_fallthru
          _
        // Predicated region
        $region33: #{tpu_custom_call.1} parent=11 // pred_check
          %p1072 = pneg %p283
        $region34: #{tpu_custom_call.1} parent=11 // pred_check_branch
          %1074 = sbr.rel (%p1072) target = $region36
        $region35: #{tpu_custom_call.1} parent=11 // pred_region
          %s1076 = ssub.s32 16, 16
          %1077 = vsyncadd [#allocation11], %s1076
          %s1079 = sshll.u32 [#allocation10], 4
          %s1080 = int_to_ptr.vmem [resolvable:$true] %s1079
          %1082 = dma.hbm_to_vmem [thread:$0]  %s15, 16, %s1080, [#allocation11]
        $region36: #{tpu_custom_call.1} parent=11 // pred_fallthru
          _
        // Predicated region
        $region37: #{tpu_custom_call.1} parent=11 // pred_check
          %p1083 = pneg %p304
        $region38: #{tpu_custom_call.1} parent=11 // pred_check_branch
          %1085 = sbr.rel (%p1083) target = $region40
        $region39: #{tpu_custom_call.1} parent=11 // pred_region
          %s1087 = ssub.s32 16, 16
          %1088 = vsyncadd [#allocation11], %s1087
          %s1090 = sshll.u32 [#allocation12], 4
          %s1091 = int_to_ptr.vmem [resolvable:$true] %s1090
          %1093 = dma.hbm_to_vmem [thread:$0]  %s17, 16, %s1091, [#allocation11]
        $region40: #{tpu_custom_call.1} parent=11 // pred_fallthru
          _
        // Predicated region
        $region41: #{tpu_custom_call.1} parent=11 // pred_check
          %p1094 = pneg %p325
        $region42: #{tpu_custom_call.1} parent=11 // pred_check_branch
          %1096 = sbr.rel (%p1094) target = $region44
        $region43: #{tpu_custom_call.1} parent=11 // pred_region
          %s1098 = ssub.s32 128, 128
          %1099 = vsyncadd [#allocation14], %s1098
          %s1101 = sshll.u32 [#allocation13], 4
          %s1102 = int_to_ptr.vmem [resolvable:$true] %s1101
          %1104 = dma.hbm_to_vmem [thread:$0]  %s19, 128, %s1102, [#allocation14]
        $region44: #{tpu_custom_call.1} parent=11 // pred_fallthru
          _
        // Predicated region
        $region45: #{tpu_custom_call.1} parent=11 // pred_check
          %p1105 = pneg %p346
        $region46: #{tpu_custom_call.1} parent=11 // pred_check_branch
          %1107 = sbr.rel (%p1105) target = $region48
        $region47: #{tpu_custom_call.1} parent=11 // pred_region
          _
        $region48: #{tpu_custom_call.1} parent=11 // pred_fallthru
          _
        // Predicated region
        $region49: #{tpu_custom_call.1} parent=11 // pred_check
          %p1108 = pneg %p367
        $region50: #{tpu_custom_call.1} parent=11 // pred_check_branch
          %1110 = sbr.rel (%p1108) target = $region52
        $region51: #{tpu_custom_call.1} parent=11 // pred_region
          %s1112 = ssub.s32 256, 256
          %1113 = vsyncadd [#allocation14], %s1112
          %s1115 = sshll.u32 [#allocation15], 4
          %s1116 = int_to_ptr.vmem [resolvable:$true] %s1115
          %1118 = dma.hbm_to_vmem [thread:$0]  %s23, 256, %s1116, [#allocation14]
        $region52: #{tpu_custom_call.1} parent=11 // pred_fallthru
          _
        // Predicated region
        $region53: #{tpu_custom_call.1} parent=11 // pred_check
          %p1119 = pneg %p388
        $region54: #{tpu_custom_call.1} parent=11 // pred_check_branch
          %1121 = sbr.rel (%p1119) target = $region56
        $region55: #{tpu_custom_call.1} parent=11 // pred_region
          _
        $region56: #{tpu_custom_call.1} parent=11 // pred_fallthru
          _
        // Predicated region
        $region57: #{tpu_custom_call.1} parent=11 // pred_check
          %p1122 = pneg %p409
        $region58: #{tpu_custom_call.1} parent=11 // pred_check_branch
          %1124 = sbr.rel (%p1122) target = $region60
        $region59: #{tpu_custom_call.1} parent=11 // pred_region
          %s1126 = ssub.s32 1024, 1024
          %1127 = vsyncadd [#allocation17], %s1126
          %s1128 = sshll.u32 [#allocation16], 4
          %s1129 = int_to_ptr.vmem [resolvable:$true] %s1128
          %1134 = dma.hbm_to_vmem [thread:$0]  %s27, 1024, %s1129, [#allocation17], 256, 256, 16
        $region60: #{tpu_custom_call.1} parent=11 // pred_fallthru
          _
        // Predicated region
        $region61: #{tpu_custom_call.1} parent=11 // pred_check
          %p1135 = pneg %p430
        $region62: #{tpu_custom_call.1} parent=11 // pred_check_branch
          %1137 = sbr.rel (%p1135) target = $region64
        $region63: #{tpu_custom_call.1} parent=11 // pred_region
          %s1139 = ssub.s32 16, 16
          %1140 = vsyncadd [#allocation17], %s1139
          %s1142 = sshll.u32 [#allocation18], 4
          %s1143 = int_to_ptr.vmem [resolvable:$true] %s1142
          %1145 = dma.hbm_to_vmem [thread:$0]  %s29, 16, %s1143, [#allocation17]
        $region64: #{tpu_custom_call.1} parent=11 // pred_fallthru
          _
        // Predicated region
        $region65: #{tpu_custom_call.1} parent=11 // pred_check
          %p1146 = pneg %p451
        $region66: #{tpu_custom_call.1} parent=11 // pred_check_branch
          %1148 = sbr.rel (%p1146) target = $region68
        $region67: #{tpu_custom_call.1} parent=11 // pred_region
          %s1150 = ssub.s32 16, 16
          %1151 = vsyncadd [#allocation20], %s1150
          %s1153 = sshll.u32 [#allocation19], 4
          %s1154 = int_to_ptr.vmem [resolvable:$true] %s1153
          %1156 = dma.hbm_to_vmem [thread:$0]  %s31, 16, %s1154, [#allocation20]
        $region68: #{tpu_custom_call.1} parent=11 // pred_fallthru
          _
        // Predicated region
        $region69: #{tpu_custom_call.1} parent=11 // pred_check
          %p1157 = pneg %p472
        $region70: #{tpu_custom_call.1} parent=11 // pred_check_branch
          %1159 = sbr.rel (%p1157) target = $region72
        $region71: #{tpu_custom_call.1} parent=11 // pred_region
          %s1161 = ssub.s32 64, 64
          %1162 = vsyncadd [#allocation20], %s1161
          %s1164 = sshll.u32 [#allocation21], 4
          %s1165 = int_to_ptr.vmem [resolvable:$true] %s1164
          %1167 = dma.hbm_to_vmem [thread:$0]  %s33, 64, %s1165, [#allocation20]
        $region72: #{tpu_custom_call.1} parent=11 // pred_fallthru
          _
        // Predicated region
        $region73: #{tpu_custom_call.1} parent=11 // pred_check
          %p1168 = pneg %p493
        $region74: #{tpu_custom_call.1} parent=11 // pred_check_branch
          %1170 = sbr.rel (%p1168) target = $region76
        $region75: #{tpu_custom_call.1} parent=11 // pred_region
          _
        $region76: #{tpu_custom_call.1} parent=11 // pred_fallthru
          _
        // Predicated region
        $region77: #{tpu_custom_call.1} parent=11 // pred_check
          %p1171 = pneg %p514
        $region78: #{tpu_custom_call.1} parent=11 // pred_check_branch
          %1173 = sbr.rel (%p1171) target = $region80
        $region79: #{tpu_custom_call.1} parent=11 // pred_region
          %s1175 = ssub.s32 128, 128
          %1176 = vsyncadd [#allocation23], %s1175
          %s1178 = sshll.u32 [#allocation22], 4
          %s1179 = int_to_ptr.vmem [resolvable:$true] %s1178
          %1181 = dma.hbm_to_vmem [thread:$0]  %s37, 128, %s1179, [#allocation23]
        $region80: #{tpu_custom_call.1} parent=11 // pred_fallthru
          _
        // Predicated region
        $region81: #{tpu_custom_call.1} parent=11 // pred_check
          %p1182 = pneg %p535
        $region82: #{tpu_custom_call.1} parent=11 // pred_check_branch
          %1184 = sbr.rel (%p1182) target = $region84
        $region83: #{tpu_custom_call.1} parent=11 // pred_region
          _
        $region84: #{tpu_custom_call.1} parent=11 // pred_fallthru
          _
        // Predicated region
        $region85: #{tpu_custom_call.1} parent=11 // pred_check
          %p1185 = pneg %p556
        $region86: #{tpu_custom_call.1} parent=11 // pred_check_branch
          %1187 = sbr.rel (%p1185) target = $region88
        $region87: #{tpu_custom_call.1} parent=11 // pred_region
          %s1189 = ssub.s32 2048, 2048
          %1190 = vsyncadd [#allocation23], %s1189
          %s1191 = sshll.u32 [#allocation24], 4
          %s1192 = int_to_ptr.vmem [resolvable:$true] %s1191
          %1197 = dma.hbm_to_vmem [thread:$0]  %s41, 2048, %s1192, [#allocation23], 256, 256, 16
        $region88: #{tpu_custom_call.1} parent=11 // pred_fallthru
          _
        // Predicated region
        $region89: #{tpu_custom_call.1} parent=11 // pred_check
          %p1198 = pneg %p577
        $region90: #{tpu_custom_call.1} parent=11 // pred_check_branch
          %1200 = sbr.rel (%p1198) target = $region92
        $region91: #{tpu_custom_call.1} parent=11 // pred_region
          %s1202 = ssub.s32 16, 16
          %1203 = vsyncadd [#allocation26], %s1202
          %s1205 = sshll.u32 [#allocation25], 4
          %s1206 = int_to_ptr.vmem [resolvable:$true] %s1205
          %1208 = dma.hbm_to_vmem [thread:$0]  %s43, 16, %s1206, [#allocation26]
        $region92: #{tpu_custom_call.1} parent=11 // pred_fallthru
          _
        // Predicated region
        $region93: #{tpu_custom_call.1} parent=11 // pred_check
          %p1209 = pneg %p598
        $region94: #{tpu_custom_call.1} parent=11 // pred_check_branch
          %1211 = sbr.rel (%p1209) target = $region96
        $region95: #{tpu_custom_call.1} parent=11 // pred_region
          %s1213 = ssub.s32 16, 16
          %1214 = vsyncadd [#allocation26], %s1213
          %s1216 = sshll.u32 [#allocation27], 4
          %s1217 = int_to_ptr.vmem [resolvable:$true] %s1216
          %1219 = dma.hbm_to_vmem [thread:$0]  %s45, 16, %s1217, [#allocation26]
        $region96: #{tpu_custom_call.1} parent=11 // pred_fallthru
          _
        // Predicated region
        $region97: #{tpu_custom_call.1} parent=11 // pred_check
          %p1220 = pneg %p619
        $region98: #{tpu_custom_call.1} parent=11 // pred_check_branch
          %1222 = sbr.rel (%p1220) target = $region100
        $region99: #{tpu_custom_call.1} parent=11 // pred_region
          %s1224 = ssub.s32 32, 32
          %1225 = vsyncadd [#allocation29], %s1224
          %s1227 = sshll.u32 [#allocation28], 4
          %s1228 = int_to_ptr.vmem [resolvable:$true] %s1227
          %1230 = dma.hbm_to_vmem [thread:$0]  %s47, 32, %s1228, [#allocation29]
        $region100: #{tpu_custom_call.1} parent=11 // pred_fallthru
          _
        // Predicated region
        $region101: #{tpu_custom_call.1} parent=11 // pred_check
          %p1231 = pneg %p640
        $region102: #{tpu_custom_call.1} parent=11 // pred_check_branch
          %1233 = sbr.rel (%p1231) target = $region104
        $region103: #{tpu_custom_call.1} parent=11 // pred_region
          _
        $region104: #{tpu_custom_call.1} parent=11 // pred_fallthru
          _
        // Predicated region
        $region105: #{tpu_custom_call.1} parent=11 // pred_check
          %p1234 = pneg %p661
        $region106: #{tpu_custom_call.1} parent=11 // pred_check_branch
          %1236 = sbr.rel (%p1234) target = $region108
        $region107: #{tpu_custom_call.1} parent=11 // pred_region
          %s1238 = ssub.s32 64, 64
          %1239 = vsyncadd [#allocation29], %s1238
          %s1241 = sshll.u32 [#allocation30], 4
          %s1242 = int_to_ptr.vmem [resolvable:$true] %s1241
          %1244 = dma.hbm_to_vmem [thread:$0]  %s51, 64, %s1242, [#allocation29]
        $region108: #{tpu_custom_call.1} parent=11 // pred_fallthru
          _
        // Predicated region
        $region109: #{tpu_custom_call.1} parent=11 // pred_check
          %p1245 = pneg %p682
        $region110: #{tpu_custom_call.1} parent=11 // pred_check_branch
          %1247 = sbr.rel (%p1245) target = $region112
        $region111: #{tpu_custom_call.1} parent=11 // pred_region
          %s1249 = ssub.s32 4096, 4096
          %1250 = vsyncadd [#allocation32], %s1249
          %s1251 = sshll.u32 [#allocation31], 4
          %s1252 = int_to_ptr.vmem [resolvable:$true] %s1251
          %1257 = dma.hbm_to_vmem [thread:$0]  %s53, 4096, %s1252, [#allocation32], 128, 128, 8
        $region112: #{tpu_custom_call.1} parent=11 // pred_fallthru
          _
        // Predicated region
        $region113: #{tpu_custom_call.1} parent=11 // pred_check
          %p1258 = pneg %p703
        $region114: #{tpu_custom_call.1} parent=11 // pred_check_branch
          %1260 = sbr.rel (%p1258) target = $region116
        $region115: #{tpu_custom_call.1} parent=11 // pred_region
          %s1262 = ssub.s32 4096, 4096
          %1263 = vsyncadd [#allocation32], %s1262
          %s1264 = sshll.u32 [#allocation33], 4
          %s1265 = int_to_ptr.vmem [resolvable:$true] %s1264
          %1270 = dma.hbm_to_vmem [thread:$0]  %s55, 4096, %s1265, [#allocation32], 256, 256, 16
        $region116: #{tpu_custom_call.1} parent=11 // pred_fallthru
          _
        // Predicated region
        $region117: #{tpu_custom_call.1} parent=11 // pred_check
          %p1271 = pneg %p724
        $region118: #{tpu_custom_call.1} parent=11 // pred_check_branch
          %1273 = sbr.rel (%p1271) target = $region120
        $region119: #{tpu_custom_call.1} parent=11 // pred_region
          %s1275 = ssub.s32 16, 16
          %1276 = vsyncadd [#allocation35], %s1275
          %s1278 = sshll.u32 [#allocation34], 4
          %s1279 = int_to_ptr.vmem [resolvable:$true] %s1278
          %1281 = dma.hbm_to_vmem [thread:$0]  %s57, 16, %s1279, [#allocation35]
        $region120: #{tpu_custom_call.1} parent=11 // pred_fallthru
          _
        // Predicated region
        $region121: #{tpu_custom_call.1} parent=11 // pred_check
          %p1282 = pneg %p745
        $region122: #{tpu_custom_call.1} parent=11 // pred_check_branch
          %1284 = sbr.rel (%p1282) target = $region124
        $region123: #{tpu_custom_call.1} parent=11 // pred_region
          %s1286 = ssub.s32 16, 16
          %1287 = vsyncadd [#allocation35], %s1286
          %s1289 = sshll.u32 [#allocation36], 4
          %s1290 = int_to_ptr.vmem [resolvable:$true] %s1289
          %1292 = dma.hbm_to_vmem [thread:$0]  %s59, 16, %s1290, [#allocation35]
        $region124: #{tpu_custom_call.1} parent=11 // pred_fallthru
          _
        // Predicated region
        $region125: #{tpu_custom_call.1} parent=11 // pred_check
          %p1293 = pneg %p766
        $region126: #{tpu_custom_call.1} parent=11 // pred_check_branch
          %1295 = sbr.rel (%p1293) target = $region128
        $region127: #{tpu_custom_call.1} parent=11 // pred_region
          %s1297 = ssub.s32 16, 16
          %1298 = vsyncadd [#allocation38], %s1297
          %s1300 = sshll.u32 [#allocation37], 4
          %s1301 = int_to_ptr.vmem [resolvable:$true] %s1300
          %1303 = dma.hbm_to_vmem [thread:$0]  %s61, 16, %s1301, [#allocation38]
        $region128: #{tpu_custom_call.1} parent=11 // pred_fallthru
          _
        // Predicated region
        $region129: #{tpu_custom_call.1} parent=11 // pred_check
          %p1304 = pneg %p787
        $region130: #{tpu_custom_call.1} parent=11 // pred_check_branch
          %1306 = sbr.rel (%p1304) target = $region132
        $region131: #{tpu_custom_call.1} parent=11 // pred_region
          %s1308 = ssub.s32 4096, 4096
          %1309 = vsyncadd [#allocation38], %s1308
          %s1310 = sshll.u32 [#allocation39], 4
          %s1311 = int_to_ptr.vmem [resolvable:$true] %s1310
          %1316 = dma.hbm_to_vmem [thread:$0]  %s63, 4096, %s1311, [#allocation38], 128, 128, 8
        $region132: #{tpu_custom_call.1} parent=11 // pred_fallthru
          _
        // Predicated region
        $region133: #{tpu_custom_call.1} parent=11 // pred_check
          %p1317 = pneg %p808
        $region134: #{tpu_custom_call.1} parent=11 // pred_check_branch
          %1319 = sbr.rel (%p1317) target = $region136
        $region135: #{tpu_custom_call.1} parent=11 // pred_region
          %s1321 = ssub.s32 16, 16
          %1322 = vsyncadd [#allocation41], %s1321
          %s1324 = sshll.u32 [#allocation40], 4
          %s1325 = int_to_ptr.vmem [resolvable:$true] %s1324
          %1327 = dma.hbm_to_vmem [thread:$0]  %s65, 16, %s1325, [#allocation41]
        $region136: #{tpu_custom_call.1} parent=11 // pred_fallthru
          _
        // Predicated region
        $region137: #{tpu_custom_call.1} parent=11 // pred_check
          %p1328 = pneg %p829
        $region138: #{tpu_custom_call.1} parent=11 // pred_check_branch
          %1330 = sbr.rel (%p1328) target = $region140
        $region139: #{tpu_custom_call.1} parent=11 // pred_region
          %s1332 = ssub.s32 4352, 4352
          %1333 = vsyncadd [#allocation41], %s1332
          %s1334 = sshll.u32 [#allocation42], 4
          %s1335 = int_to_ptr.vmem [resolvable:$true] %s1334
          %1340 = dma.hbm_to_vmem [thread:$0]  %s67, 4352, %s1335, [#allocation41], 128, 128, 8
        $region140: #{tpu_custom_call.1} parent=11 // pred_fallthru
          _
        // Predicated region
        $region141: #{tpu_custom_call.1} parent=11 // pred_check
          %p1341 = pneg %p850
        $region142: #{tpu_custom_call.1} parent=11 // pred_check_branch
          %1343 = sbr.rel (%p1341) target = $region144
        $region143: #{tpu_custom_call.1} parent=11 // pred_region
          _
        $region144: #{tpu_custom_call.1} parent=11 // pred_fallthru
          _
        // Predicated region
        $region145: #{tpu_custom_call.1} parent=11 // pred_check
          %p1344 = pneg %p871
        $region146: #{tpu_custom_call.1} parent=11 // pred_check_branch
          %1346 = sbr.rel (%p1344) target = $region148
        $region147: #{tpu_custom_call.1} parent=11 // pred_region
          _
        $region148: #{tpu_custom_call.1} parent=11 // pred_fallthru
          _
        // Predicated region
        $region149: #{tpu_custom_call.1} parent=11 // pred_check
          %p1347 = pneg %p892
        $region150: #{tpu_custom_call.1} parent=11 // pred_check_branch
          %1349 = sbr.rel (%p1347) target = $region152
        $region151: #{tpu_custom_call.1} parent=11 // pred_region
          _
        $region152: #{tpu_custom_call.1} parent=11 // pred_fallthru
          _
        // Predicated region
        $region153: #{tpu_custom_call.1} parent=11 // pred_check
          %p1350 = pneg %p913
        $region154: #{tpu_custom_call.1} parent=11 // pred_check_branch
          %1352 = sbr.rel (%p1350) target = $region156
        $region155: #{tpu_custom_call.1} parent=11 // pred_region
          _
        $region156: #{tpu_custom_call.1} parent=11 // pred_fallthru
          _
        // Predicated region
        $region157: #{tpu_custom_call.1} parent=11 // pred_check
          %p1353 = pneg %p934
        $region158: #{tpu_custom_call.1} parent=11 // pred_check_branch
          %1355 = sbr.rel (%p1353) target = $region160
        $region159: #{tpu_custom_call.1} parent=11 // pred_region
          _
        $region160: #{tpu_custom_call.1} parent=11 // pred_fallthru
          _
        // Predicated region
        $region161: #{tpu_custom_call.1} parent=11 // pred_check
          %p1356 = pneg %p955
        $region162: #{tpu_custom_call.1} parent=11 // pred_check_branch
          %1358 = sbr.rel (%p1356) target = $region164
        $region163: #{tpu_custom_call.1} parent=11 // pred_region
          _
        $region164: #{tpu_custom_call.1} parent=11 // pred_fallthru
          _
        // Predicated region
        $region165: #{tpu_custom_call.1} parent=11 // pred_check
          %p1359 = pneg %p976
        $region166: #{tpu_custom_call.1} parent=11 // pred_check_branch
          %1361 = sbr.rel (%p1359) target = $region168
        $region167: #{tpu_custom_call.1} parent=11 // pred_region
          _
        $region168: #{tpu_custom_call.1} parent=11 // pred_fallthru
          _
      $region12: #{tpu_custom_call.1} parent=5 // pred_fallthru
        _
      %p1362 = scmp.lt.s32.totalorder %s105, 2
      // Predicated region
      $region169: #{tpu_custom_call.1} parent=5 // pred_check
        %p1363 = pneg %p1362
      $region170: #{tpu_custom_call.1} parent=5 // pred_check_branch
        %1365 = sbr.rel (%p1363) target = $region172
      $region171: #{tpu_custom_call.1} parent=5 // pred_region
        // Predicated region
        $region173: #{tpu_custom_call.1} parent=171 // pred_check
          %p1366 = pneg %p125
        $region174: #{tpu_custom_call.1} parent=171 // pred_check_branch
          %1368 = sbr.rel (%p1366) target = $region176
        $region175: #{tpu_custom_call.1} parent=171 // pred_region
          %s1369 = sand.u32 %s115, 1
          %s1370 = scalar_lea.sflag [#allocation3], %s1369
          %s1371 = sand.u32 %s115, 1
          %s1372 = smul.addr %s1371, 32
          %s1373 = scalar_lea.vmem [#allocation2], %s1372
          %s1375 = ssub.s32 512, 512
          %1376 = vsyncadd %s1370, %s1375
          %s1377 = smul.addr %s105, 4
          %s1378 = smul.addr %s1377, 128
          %s1379 = scalar_lea.hbm %s1, %s1378
          %s1380 = sshll.u32 %s1373, 4
          %s1381 = int_to_ptr.vmem [resolvable:$true] %s1380
          %1386 = dma.hbm_to_vmem [thread:$0]  %s1379, 512, %s1381, %s1370, 128, 128, 8
        $region176: #{tpu_custom_call.1} parent=171 // pred_fallthru
          _
        // Predicated region
        $region177: #{tpu_custom_call.1} parent=171 // pred_check
          %p1387 = pneg %p151
        $region178: #{tpu_custom_call.1} parent=171 // pred_check_branch
          %1389 = sbr.rel (%p1387) target = $region180
        $region179: #{tpu_custom_call.1} parent=171 // pred_region
          %p1390 = scmp.lt.s32.totalorder %s105, 1
          %s1391 = scalar_select %p1390, %s105, 1
          %s1392 = smul.addr %s1391, 2
          %s1393 = smul.addr %s1392, 4
          %s1394 = scalar_lea.vmem %s3, %s1393
        $region180: #{tpu_custom_call.1} parent=171 // pred_fallthru
          _
      $region172: #{tpu_custom_call.1} parent=5 // pred_fallthru
        _
      %p1395 = scmp.le.s32.totalorder 1, %s105
      %p1396 = scmp.lt.s32.totalorder %s105, 3
      %p1397 = pnand %p1395, %p1396
      %p1398 = pneg %p1397
      // Predicated region
      $region181: #{tpu_custom_call.1} parent=5 // pred_check
        _
      $region182: #{tpu_custom_call.1} parent=5 // pred_check_branch
        %1400 = sbr.rel (%p1397) target = $region184
      $region183: #{tpu_custom_call.1} parent=5 // pred_region
        %s1401 = ssub.s32 %s105, 1
        %s1402 = sand.u32 %s118, 1
        %s1403 = scalar_lea.sflag [#allocation3], %s1402
        %s1404 = sand.u32 %s118, 1
        %s1405 = smul.addr %s1404, 32
        %s1406 = scalar_lea.vmem [#allocation2], %s1405
        // Predicated region
        $region185: #{tpu_custom_call.1} parent=183 // pred_check
          %p1407 = pneg %p131
        $region186: #{tpu_custom_call.1} parent=183 // pred_check_branch
          %1409 = sbr.rel (%p1407) target = $region188
        $region187: #{tpu_custom_call.1} parent=183 // pred_region
          %1410 = dma.done %s1403, 512
        $region188: #{tpu_custom_call.1} parent=183 // pred_fallthru
          _
        // Predicated region
        $region189: #{tpu_custom_call.1} parent=183 // pred_check
          %p1411 = pneg %p178
        $region190: #{tpu_custom_call.1} parent=183 // pred_check_branch
          %1413 = sbr.rel (%p1411) target = $region192
        $region191: #{tpu_custom_call.1} parent=183 // pred_region
          %1414 = dma.done [#allocation5], 256
        $region192: #{tpu_custom_call.1} parent=183 // pred_fallthru
          _
        // Predicated region
        $region193: #{tpu_custom_call.1} parent=183 // pred_check
          %p1415 = pneg %p199
        $region194: #{tpu_custom_call.1} parent=183 // pred_check_branch
          %1417 = sbr.rel (%p1415) target = $region196
        $region195: #{tpu_custom_call.1} parent=183 // pred_region
          %1418 = dma.done [#allocation5], 3072
        $region196: #{tpu_custom_call.1} parent=183 // pred_fallthru
          _
        // Predicated region
        $region197: #{tpu_custom_call.1} parent=183 // pred_check
          %p1419 = pneg %p220
        $region198: #{tpu_custom_call.1} parent=183 // pred_check_branch
          %1421 = sbr.rel (%p1419) target = $region200
        $region199: #{tpu_custom_call.1} parent=183 // pred_region
          %1422 = dma.done [#allocation8], 512
        $region200: #{tpu_custom_call.1} parent=183 // pred_fallthru
          _
        // Predicated region
        $region201: #{tpu_custom_call.1} parent=183 // pred_check
          %p1423 = pneg %p262
        $region202: #{tpu_custom_call.1} parent=183 // pred_check_branch
          %1425 = sbr.rel (%p1423) target = $region204
        $region203: #{tpu_custom_call.1} parent=183 // pred_region
          %1426 = dma.done [#allocation8], 512
        $region204: #{tpu_custom_call.1} parent=183 // pred_fallthru
          _
        // Predicated region
        $region205: #{tpu_custom_call.1} parent=183 // pred_check
          %p1427 = pneg %p283
        $region206: #{tpu_custom_call.1} parent=183 // pred_check_branch
          %1429 = sbr.rel (%p1427) target = $region208
        $region207: #{tpu_custom_call.1} parent=183 // pred_region
          %1430 = dma.done [#allocation11], 16
        $region208: #{tpu_custom_call.1} parent=183 // pred_fallthru
          _
        // Predicated region
        $region209: #{tpu_custom_call.1} parent=183 // pred_check
          %p1431 = pneg %p304
        $region210: #{tpu_custom_call.1} parent=183 // pred_check_branch
          %1433 = sbr.rel (%p1431) target = $region212
        $region211: #{tpu_custom_call.1} parent=183 // pred_region
          %1434 = dma.done [#allocation11], 16
        $region212: #{tpu_custom_call.1} parent=183 // pred_fallthru
          _
        // Predicated region
        $region213: #{tpu_custom_call.1} parent=183 // pred_check
          %p1435 = pneg %p325
        $region214: #{tpu_custom_call.1} parent=183 // pred_check_branch
          %1437 = sbr.rel (%p1435) target = $region216
        $region215: #{tpu_custom_call.1} parent=183 // pred_region
          %1438 = dma.done [#allocation14], 128
        $region216: #{tpu_custom_call.1} parent=183 // pred_fallthru
          _
        // Predicated region
        $region217: #{tpu_custom_call.1} parent=183 // pred_check
          %p1439 = pneg %p367
        $region218: #{tpu_custom_call.1} parent=183 // pred_check_branch
          %1441 = sbr.rel (%p1439) target = $region220
        $region219: #{tpu_custom_call.1} parent=183 // pred_region
          %1442 = dma.done [#allocation14], 256
        $region220: #{tpu_custom_call.1} parent=183 // pred_fallthru
          _
        // Predicated region
        $region221: #{tpu_custom_call.1} parent=183 // pred_check
          %p1443 = pneg %p409
        $region222: #{tpu_custom_call.1} parent=183 // pred_check_branch
          %1445 = sbr.rel (%p1443) target = $region224
        $region223: #{tpu_custom_call.1} parent=183 // pred_region
          %1446 = dma.done [#allocation17], 1024
        $region224: #{tpu_custom_call.1} parent=183 // pred_fallthru
          _
        // Predicated region
        $region225: #{tpu_custom_call.1} parent=183 // pred_check
          %p1447 = pneg %p430
        $region226: #{tpu_custom_call.1} parent=183 // pred_check_branch
          %1449 = sbr.rel (%p1447) target = $region228
        $region227: #{tpu_custom_call.1} parent=183 // pred_region
          %1450 = dma.done [#allocation17], 16
        $region228: #{tpu_custom_call.1} parent=183 // pred_fallthru
          _
        // Predicated region
        $region229: #{tpu_custom_call.1} parent=183 // pred_check
          %p1451 = pneg %p451
        $region230: #{tpu_custom_call.1} parent=183 // pred_check_branch
          %1453 = sbr.rel (%p1451) target = $region232
        $region231: #{tpu_custom_call.1} parent=183 // pred_region
          %1454 = dma.done [#allocation20], 16
        $region232: #{tpu_custom_call.1} parent=183 // pred_fallthru
          _
        // Predicated region
        $region233: #{tpu_custom_call.1} parent=183 // pred_check
          %p1455 = pneg %p472
        $region234: #{tpu_custom_call.1} parent=183 // pred_check_branch
          %1457 = sbr.rel (%p1455) target = $region236
        $region235: #{tpu_custom_call.1} parent=183 // pred_region
          %1458 = dma.done [#allocation20], 64
        $region236: #{tpu_custom_call.1} parent=183 // pred_fallthru
          _
        // Predicated region
        $region237: #{tpu_custom_call.1} parent=183 // pred_check
          %p1459 = pneg %p514
        $region238: #{tpu_custom_call.1} parent=183 // pred_check_branch
          %1461 = sbr.rel (%p1459) target = $region240
        $region239: #{tpu_custom_call.1} parent=183 // pred_region
          %1462 = dma.done [#allocation23], 128
        $region240: #{tpu_custom_call.1} parent=183 // pred_fallthru
          _
        // Predicated region
        $region241: #{tpu_custom_call.1} parent=183 // pred_check
          %p1463 = pneg %p556
        $region242: #{tpu_custom_call.1} parent=183 // pred_check_branch
          %1465 = sbr.rel (%p1463) target = $region244
        $region243: #{tpu_custom_call.1} parent=183 // pred_region
          %1466 = dma.done [#allocation23], 2048
        $region244: #{tpu_custom_call.1} parent=183 // pred_fallthru
          _
        // Predicated region
        $region245: #{tpu_custom_call.1} parent=183 // pred_check
          %p1467 = pneg %p577
        $region246: #{tpu_custom_call.1} parent=183 // pred_check_branch
          %1469 = sbr.rel (%p1467) target = $region248
        $region247: #{tpu_custom_call.1} parent=183 // pred_region
          %1470 = dma.done [#allocation26], 16
        $region248: #{tpu_custom_call.1} parent=183 // pred_fallthru
          _
        // Predicated region
        $region249: #{tpu_custom_call.1} parent=183 // pred_check
          %p1471 = pneg %p598
        $region250: #{tpu_custom_call.1} parent=183 // pred_check_branch
          %1473 = sbr.rel (%p1471) target = $region252
        $region251: #{tpu_custom_call.1} parent=183 // pred_region
          %1474 = dma.done [#allocation26], 16
        $region252: #{tpu_custom_call.1} parent=183 // pred_fallthru
          _
        // Predicated region
        $region253: #{tpu_custom_call.1} parent=183 // pred_check
          %p1475 = pneg %p619
        $region254: #{tpu_custom_call.1} parent=183 // pred_check_branch
          %1477 = sbr.rel (%p1475) target = $region256
        $region255: #{tpu_custom_call.1} parent=183 // pred_region
          %1478 = dma.done [#allocation29], 32
        $region256: #{tpu_custom_call.1} parent=183 // pred_fallthru
          _
        // Predicated region
        $region257: #{tpu_custom_call.1} parent=183 // pred_check
          %p1479 = pneg %p661
        $region258: #{tpu_custom_call.1} parent=183 // pred_check_branch
          %1481 = sbr.rel (%p1479) target = $region260
        $region259: #{tpu_custom_call.1} parent=183 // pred_region
          %1482 = dma.done [#allocation29], 64
        $region260: #{tpu_custom_call.1} parent=183 // pred_fallthru
          _
        // Predicated region
        $region261: #{tpu_custom_call.1} parent=183 // pred_check
          %p1483 = pneg %p682
        $region262: #{tpu_custom_call.1} parent=183 // pred_check_branch
          %1485 = sbr.rel (%p1483) target = $region264
        $region263: #{tpu_custom_call.1} parent=183 // pred_region
          %1486 = dma.done [#allocation32], 4096
        $region264: #{tpu_custom_call.1} parent=183 // pred_fallthru
          _
        // Predicated region
        $region265: #{tpu_custom_call.1} parent=183 // pred_check
          %p1487 = pneg %p703
        $region266: #{tpu_custom_call.1} parent=183 // pred_check_branch
          %1489 = sbr.rel (%p1487) target = $region268
        $region267: #{tpu_custom_call.1} parent=183 // pred_region
          %1490 = dma.done [#allocation32], 4096
        $region268: #{tpu_custom_call.1} parent=183 // pred_fallthru
          _
        // Predicated region
        $region269: #{tpu_custom_call.1} parent=183 // pred_check
          %p1491 = pneg %p724
        $region270: #{tpu_custom_call.1} parent=183 // pred_check_branch
          %1493 = sbr.rel (%p1491) target = $region272
        $region271: #{tpu_custom_call.1} parent=183 // pred_region
          %1494 = dma.done [#allocation35], 16
        $region272: #{tpu_custom_call.1} parent=183 // pred_fallthru
          _
        // Predicated region
        $region273: #{tpu_custom_call.1} parent=183 // pred_check
          %p1495 = pneg %p745
        $region274: #{tpu_custom_call.1} parent=183 // pred_check_branch
          %1497 = sbr.rel (%p1495) target = $region276
        $region275: #{tpu_custom_call.1} parent=183 // pred_region
          %1498 = dma.done [#allocation35], 16
        $region276: #{tpu_custom_call.1} parent=183 // pred_fallthru
          _
        // Predicated region
        $region277: #{tpu_custom_call.1} parent=183 // pred_check
          %p1499 = pneg %p766
        $region278: #{tpu_custom_call.1} parent=183 // pred_check_branch
          %1501 = sbr.rel (%p1499) target = $region280
        $region279: #{tpu_custom_call.1} parent=183 // pred_region
          %1502 = dma.done [#allocation38], 16
        $region280: #{tpu_custom_call.1} parent=183 // pred_fallthru
          _
        // Predicated region
        $region281: #{tpu_custom_call.1} parent=183 // pred_check
          %p1503 = pneg %p787
        $region282: #{tpu_custom_call.1} parent=183 // pred_check_branch
          %1505 = sbr.rel (%p1503) target = $region284
        $region283: #{tpu_custom_call.1} parent=183 // pred_region
          %1506 = dma.done [#allocation38], 4096
        $region284: #{tpu_custom_call.1} parent=183 // pred_fallthru
          _
        // Predicated region
        $region285: #{tpu_custom_call.1} parent=183 // pred_check
          %p1507 = pneg %p808
        $region286: #{tpu_custom_call.1} parent=183 // pred_check_branch
          %1509 = sbr.rel (%p1507) target = $region288
        $region287: #{tpu_custom_call.1} parent=183 // pred_region
          %1510 = dma.done [#allocation41], 16
        $region288: #{tpu_custom_call.1} parent=183 // pred_fallthru
          _
        // Predicated region
        $region289: #{tpu_custom_call.1} parent=183 // pred_check
          %p1511 = pneg %p829
        $region290: #{tpu_custom_call.1} parent=183 // pred_check_branch
          %1513 = sbr.rel (%p1511) target = $region292
        $region291: #{tpu_custom_call.1} parent=183 // pred_region
          %1514 = dma.done [#allocation41], 4352
        $region292: #{tpu_custom_call.1} parent=183 // pred_fallthru
          _
        %s1515 = sand.u32 %s118, 1
        %s1516 = scalar_lea.sflag [#allocation3], %s1515
        %s1517 = sand.u32 %s118, 1
        %s1518 = smul.addr %s1517, 32
        %s1519 = scalar_lea.vmem [#allocation2], %s1518
        %p1520 = pneg %p131
        %p1521 = pneg %p128
        %p1522 = scmp.lt.s32.totalorder %s110, 1
        %s1523 = scalar_select %p1522, %s110, 1
        %s1524 = smul.addr %s1523, 2
        %s1525 = smul.addr %s1524, 4
        %s1526 = scalar_lea.vmem %s3, %s1525
        %p1527 = pneg %p157
        %p1528 = pneg %p154
        %p1529 = pneg %p178
        %p1530 = pneg %p175
        %p1531 = pneg %p199
        %p1532 = pneg %p196
        %p1533 = pneg %p220
        %p1534 = pneg %p217
        %p1535 = pneg %p241
        %p1536 = pneg %p238
        %p1537 = pneg %p262
        %p1538 = pneg %p259
        %p1539 = pneg %p283
        %p1540 = pneg %p280
        %p1541 = pneg %p304
        %p1542 = pneg %p301
        %p1543 = pneg %p325
        %p1544 = pneg %p322
        %p1545 = pneg %p346
        %p1546 = pneg %p343
        %p1547 = pneg %p367
        %p1548 = pneg %p364
        %p1549 = pneg %p388
        %p1550 = pneg %p385
        %p1551 = pneg %p409
        %p1552 = pneg %p406
        %p1553 = pneg %p430
        %p1554 = pneg %p427
        %p1555 = pneg %p451
        %p1556 = pneg %p448
        %p1557 = pneg %p472
        %p1558 = pneg %p469
        %p1559 = pneg %p493
        %p1560 = pneg %p490
        %p1561 = pneg %p514
        %p1562 = pneg %p511
        %p1563 = pneg %p535
        %p1564 = pneg %p532
        %p1565 = pneg %p556
        %p1566 = pneg %p553
        %p1567 = pneg %p577
        %p1568 = pneg %p574
        %p1569 = pneg %p598
        %p1570 = pneg %p595
        %p1571 = pneg %p619
        %p1572 = pneg %p616
        %p1573 = pneg %p640
        %p1574 = pneg %p637
        %p1575 = pneg %p661
        %p1576 = pneg %p658
        %p1577 = pneg %p682
        %p1578 = pneg %p679
        %p1579 = pneg %p703
        %p1580 = pneg %p700
        %p1581 = pneg %p724
        %p1582 = pneg %p721
        %p1583 = pneg %p745
        %p1584 = pneg %p742
        %p1585 = pneg %p766
        %p1586 = pneg %p763
        %p1587 = pneg %p787
        %p1588 = pneg %p784
        %p1589 = pneg %p808
        %p1590 = pneg %p805
        %p1591 = pneg %p829
        %p1592 = pneg %p826
        %p1593 = pneg %p850
        %p1594 = pneg %p847
        %p1595 = pneg %p871
        %p1596 = pneg %p868
        %p1597 = pneg %p892
        %p1598 = pneg %p889
        %p1599 = pneg %p913
        %p1600 = pneg %p910
        %p1601 = pneg %p934
        %p1602 = pneg %p931
        %p1603 = pneg %p955
        %p1604 = pneg %p952
        %p1605 = pneg %p976
        %p1606 = pneg %p973
        %p1607 = pneg %p1002
        %p1608 = pneg %p999
        %p1609 = scmp.lt.s32.totalorder %s110, 1
        %s1610 = scalar_select %p1609, %s110, 1
        %s1611 = smul.addr %s1610, 2
        %s1612 = smul.addr %s1611, 4
        %s1613 = scalar_lea.vmem %s83, %s1612
        %p1614 = scmp.lt.s32.totalorder %s110, 1
        %s1615 = scalar_select %p1614, %s110, 1
        %s1616 = smul.addr %s1615, 2
        %s1617 = smul.addr %s1616, 4
        %s1618 = scalar_lea.vmem %s3, %s1617
        %p1619 = scmp.lt.s32.totalorder %s110, 1
        %s1620 = scalar_select %p1619, %s110, 1
        %s1621 = smul.addr %s1620, 2
        %s1622 = smul.addr %s1621, 4
        %s1623 = scalar_lea.vmem %s83, %s1622
        %v1624 = vld [vmem:[%s1406] sm:$0xff]
        %v1625 = vld [vmem:[%s1406 + $0x8] sm:$0xff]
        %v1626 = vld [vmem:[%s1406 + $0x10] sm:$0xff]
        %v1627 = vld [vmem:[%s1406 + $0x18] sm:$0xff]
        %v1628 = vld [vmem:[#allocation4] sm:$0xff]
        %v1629 = vld [vmem:[#allocation4 + $0x8] sm:$0xff]
        %v1630 = vld [vmem:[#allocation6] sm:$0xff]
        %v1631 = vld [vmem:[#allocation6 + $0x8] sm:$0xff]
        %v1632 = vld [vmem:[#allocation6 + $0x10] sm:$0xff]
        %v1633 = vld [vmem:[#allocation6 + $0x18] sm:$0xff]
        %v1634 = vld [vmem:[#allocation6 + $0x20] sm:$0xff]
        %v1635 = vld [vmem:[#allocation6 + $0x28] sm:$0xff]
        %v1636 = vld [vmem:[#allocation6 + $0x30] sm:$0xff]
        %v1637 = vld [vmem:[#allocation6 + $0x38] sm:$0xff]
        %v1638 = vld [vmem:[#allocation6 + $0x40] sm:$0xff]
        %v1639 = vld [vmem:[#allocation6 + $0x48] sm:$0xff]
        %v1640 = vld [vmem:[#allocation6 + $0x50] sm:$0xff]
        %v1641 = vld [vmem:[#allocation6 + $0x58] sm:$0xff]
        %v1642 = vld [vmem:[#allocation6 + $0x60] sm:$0xff]
        %v1643 = vld [vmem:[#allocation6 + $0x68] sm:$0xff]
        %v1644 = vld [vmem:[#allocation6 + $0x70] sm:$0xff]
        %v1645 = vld [vmem:[#allocation6 + $0x78] sm:$0xff]
        %v1646 = vld [vmem:[#allocation6 + $0x80] sm:$0xff]
        %v1647 = vld [vmem:[#allocation6 + $0x88] sm:$0xff]
        %v1648 = vld [vmem:[#allocation6 + $0x90] sm:$0xff]
        %v1649 = vld [vmem:[#allocation6 + $0x98] sm:$0xff]
        %v1650 = vld [vmem:[#allocation6 + $0xa0] sm:$0xff]
        %v1651 = vld [vmem:[#allocation6 + $0xa8] sm:$0xff]
        %v1652 = vld [vmem:[#allocation6 + $0xb0] sm:$0xff]
        %v1653 = vld [vmem:[#allocation6 + $0xb8] sm:$0xff]
        %v1654 = vld [vmem:[#allocation7] sm:$0xff]
        %v1655 = vld [vmem:[#allocation7 + $0x8] sm:$0xff]
        %v1656 = vld [vmem:[#allocation7 + $0x10] sm:$0xff]
        %v1657 = vld [vmem:[#allocation7 + $0x18] sm:$0xff]
        %vm1658 = vcmask 261120
        %v1660 = vsel %vm1658, %v1628, 0
        %v1663 = vsel %vm1658, %v1629, 0
        %1665 = vmatprep.subr.mxu0 0.0
        %1666 = vmatpush1.msra.mxu0 %v1624
        %1667 = vmatprep.subr.mxu0 0.0
        %1668 = vmatpush1.msra.mxu0 %v1625
        %1669 = vmatprep.subr.mxu0 0.0
        %1670 = vmatpush1.msra.mxu0 %v1626
        %1671 = vmatprep.subr.mxu0 0.0
        %1672 = vmatpush1.msra.mxu0 %v1627
        %1673 = vmatprep.subr.mxu0 0.0
        %1674 = vmatpush1.msra.mxu0 0.0
        %1675 = vmatprep.subr.mxu0 0.0
        %1676 = vmatpush1.msra.mxu0 0.0
        %1677 = vmatprep.subr.mxu0 0.0
        %1678 = vmatpush1.msra.mxu0 0.0
        %1679 = vmatprep.subr.mxu0 0.0
        %1680 = vmatpush1.msra.mxu0 0.0
        %1681 = vmatprep.subr.mxu0 0.0
        %1682 = vmatpush1.msra.mxu0 0.0
        %1683 = vmatprep.subr.mxu0 0.0
        %1684 = vmatpush1.msra.mxu0 0.0
        %1685 = vmatprep.subr.mxu0 0.0
        %1686 = vmatpush1.msra.mxu0 0.0
        %1687 = vmatprep.subr.mxu0 0.0
        %1688 = vmatpush1.msra.mxu0 0.0
        %1689 = vmatprep.subr.mxu0 0.0
        %1690 = vmatpush1.msra.mxu0 0.0
        %1691 = vmatprep.subr.mxu0 0.0
        %1692 = vmatpush1.msra.mxu0 0.0
        %1693 = vmatprep.subr.mxu0 0.0
        %1694 = vmatpush1.msra.mxu0 0.0
        %1695 = vmatprep.subr.mxu0 0.0
        %1696 = vmatpush1.msra.mxu0 0.0
        %1697 = vmatprep.subr.mxu0 0.0
        %1698 = vmatpush1.msra.mxu0 0.0
        %1699 = vmatprep.subr.mxu0 0.0
        %1700 = vmatpush1.msra.mxu0 0.0
        %1701 = vmatprep.subr.mxu0 0.0
        %1702 = vmatpush1.msra.mxu0 0.0
        %1703 = vmatprep.subr.mxu0 0.0
        %1704 = vmatpush1.msra.mxu0 0.0
        %1705 = vmatprep.subr.mxu0 0.0
        %1706 = vmatpush1.msra.mxu0 0.0
        %1707 = vmatprep.subr.mxu0 0.0
        %1708 = vmatpush1.msra.mxu0 0.0
        %1709 = vmatprep.subr.mxu0 0.0
        %1710 = vmatpush1.msra.mxu0 0.0
        %1711 = vmatprep.subr.mxu0 0.0
        %1712 = vmatpush1.msra.mxu0 0.0
        %1713 = vmatprep.subr.mxu0 0.0
        %1714 = vmatpush1.msra.mxu0 0.0
        %1715 = vmatprep.subr.mxu0 0.0
        %1716 = vmatpush1.msra.mxu0 0.0
        %1717 = vmatprep.subr.mxu0 0.0
        %1718 = vmatpush1.msra.mxu0 0.0
        %1719 = vmatprep.subr.mxu0 0.0
        %1720 = vmatpush1.msra.mxu0 0.0
        %1721 = vmatprep.subr.mxu0 0.0
        %1722 = vmatpush1.msra.mxu0 0.0
        %1723 = vmatprep.subr.mxu0 0.0
        %1724 = vmatpush1.msra.mxu0 0.0
        %1725 = vmatprep.subr.mxu0 0.0
        %1726 = vmatpush1.msra.mxu0 0.0
        %1727 = vmatprep.subr.mxu0 0.0
        %1728 = vmatpush1.msra.mxu0 0.0
        %1729 = vmatprep.mubr.f32.mxu0 0.0
        %1730 = vmatmul.mubr.f32.gmra.mrb[0].mxu0 %v1660
        %v1731 = vpop.f32.mrb[0].mxu0
        %v1732 = vadd.f32 0.0, %v1731
        %v1733 = vpop.f32.mrb[0].mxu0
        %1734 = vmatprep.mubr.f32.mxu0 0.0
        %1735 = vmatmul.mubr.f32.gmra.mrb[0].mxu0 %v1663
        %v1736 = vpop.f32.mrb[0].mxu0
        %v1737 = vadd.f32 0.0, %v1736
        %v1738 = vpop.f32.mrb[0].mxu0
        %1739 = vdwg.mxu0
        %vm1740 = vcmask 785408
        %v1742 = vsel %vm1740, %v1732, 0
        %v1745 = vsel %vm1740, %v1737, 0
        %1747 = vmatprep.subr.mxu0 %v1631
        %1748 = vmatpush1.msra.mxu0 %v1630
        %1749 = vmatprep.subr.mxu0 %v1633
        %1750 = vmatpush1.msra.mxu0 %v1632
        %1751 = vmatprep.subr.mxu0 %v1635
        %1752 = vmatpush1.msra.mxu0 %v1634
        %1753 = vmatprep.subr.mxu0 %v1637
        %1754 = vmatpush1.msra.mxu0 %v1636
        %1755 = vmatprep.subr.mxu0 %v1639
        %1756 = vmatpush1.msra.mxu0 %v1638
        %1757 = vmatprep.subr.mxu0 %v1641
        %1758 = vmatpush1.msra.mxu0 %v1640
        %1759 = vmatprep.subr.mxu0 %v1643
        %1760 = vmatpush1.msra.mxu0 %v1642
        %1761 = vmatprep.subr.mxu0 %v1645
        %1762 = vmatpush1.msra.mxu0 %v1644
        %1763 = vmatprep.subr.mxu0 %v1647
        %1764 = vmatpush1.msra.mxu0 %v1646
        %1765 = vmatprep.subr.mxu0 %v1649
        %1766 = vmatpush1.msra.mxu0 %v1648
        %1767 = vmatprep.subr.mxu0 %v1651
        %1768 = vmatpush1.msra.mxu0 %v1650
        %1769 = vmatprep.subr.mxu0 %v1653
        %1770 = vmatpush1.msra.mxu0 %v1652
        %1771 = vmatprep.subr.mxu0 0.0
        %1772 = vmatpush1.msra.mxu0 0.0
        %1773 = vmatprep.subr.mxu0 0.0
        %1774 = vmatpush1.msra.mxu0 0.0
        %1775 = vmatprep.subr.mxu0 0.0
        %1776 = vmatpush1.msra.mxu0 0.0
        %1777 = vmatprep.subr.mxu0 0.0
        %1778 = vmatpush1.msra.mxu0 0.0
        %1779 = vmatprep.subr.mxu0 0.0
        %1780 = vmatpush1.msra.mxu0 0.0
        %1781 = vmatprep.subr.mxu0 0.0
        %1782 = vmatpush1.msra.mxu0 0.0
        %1783 = vmatprep.subr.mxu0 0.0
        %1784 = vmatpush1.msra.mxu0 0.0
        %1785 = vmatprep.subr.mxu0 0.0
        %1786 = vmatpush1.msra.mxu0 0.0
        %1787 = vmatprep.subr.mxu0 0.0
        %1788 = vmatpush1.msra.mxu0 0.0
        %1789 = vmatprep.subr.mxu0 0.0
        %1790 = vmatpush1.msra.mxu0 0.0
        %1791 = vmatprep.subr.mxu0 0.0
        %1792 = vmatpush1.msra.mxu0 0.0
        %1793 = vmatprep.subr.mxu0 0.0
        %1794 = vmatpush1.msra.mxu0 0.0
        %1795 = vmatprep.subr.mxu0 0.0
        %1796 = vmatpush1.msra.mxu0 0.0
        %1797 = vmatprep.subr.mxu0 0.0
        %1798 = vmatpush1.msra.mxu0 0.0
        %1799 = vmatprep.subr.mxu0 0.0
        %1800 = vmatpush1.msra.mxu0 0.0
        %1801 = vmatprep.subr.mxu0 0.0
        %1802 = vmatpush1.msra.mxu0 0.0
        %1803 = vmatprep.subr.mxu0 0.0
        %1804 = vmatpush1.msra.mxu0 0.0
        %1805 = vmatprep.subr.mxu0 0.0
        %1806 = vmatpush1.msra.mxu0 0.0
        %1807 = vmatprep.subr.mxu0 0.0
        %1808 = vmatpush1.msra.mxu0 0.0
        %1809 = vmatprep.subr.mxu0 0.0
        %1810 = vmatpush1.msra.mxu0 0.0
        %1811 = vmatprep.mubr.f32.mxu0 0.0
        %1812 = vmatmul.mubr.f32.gmra.mrb[0].mxu0 %v1742
        %v1813 = vpop.f32.mrb[0].mxu0
        %v1814 = vadd.f32 %v1654, %v1813
        %v1815 = vpop.f32.mrb[0].mxu0
        %v1816 = vadd.f32 %v1655, %v1815
        %1817 = vmatprep.mubr.f32.mxu0 0.0
        %1818 = vmatmul.mubr.f32.gmra.mrb[0].mxu0 %v1745
        %v1819 = vpop.f32.mrb[0].mxu0
        %v1820 = vadd.f32 %v1656, %v1819
        %v1821 = vpop.f32.mrb[0].mxu0
        %v1822 = vadd.f32 %v1657, %v1821
        %1823 = vdwg.mxu0
        %vm1824 = vcmp.ge.f32.partialorder %v1814, 0.0
        %vm1825 = vcmp.ge.f32.partialorder %v1816, 0.0
        %vm1826 = vcmp.ge.f32.partialorder %v1820, 0.0
        %vm1827 = vcmp.ge.f32.partialorder %v1822, 0.0
        %v1828 = vmul.f32 %v1814, 0.2
        %v1829 = vmul.f32 %v1816, 0.2
        %v1830 = vmul.f32 %v1820, 0.2
        %v1831 = vmul.f32 %v1822, 0.2
        %v1832 = vsel %vm1824, %v1814, %v1828
        %v1833 = vsel %vm1825, %v1816, %v1829
        %v1834 = vsel %vm1826, %v1820, %v1830
        %v1835 = vsel %vm1827, %v1822, %v1831
        %v1836 = vld [vmem:[%s11] sm:$0xff]
        %v1837 = vld [vmem:[%s11 + $0x8] sm:$0xff]
        %v1838 = vld [vmem:[%s11 + $0x10] sm:$0xff]
        %v1839 = vld [vmem:[%s11 + $0x18] sm:$0xff]
        %v1840 = vld [vmem:[%s11 + $0x20] sm:$0xff]
        %v1841 = vld [vmem:[%s11 + $0x28] sm:$0xff]
        %v1842 = vld [vmem:[%s11 + $0x30] sm:$0xff]
        %v1843 = vld [vmem:[%s11 + $0x38] sm:$0xff]
        %v1844 = vld [vmem:[%s11 + $0x40] sm:$0xff]
        %v1845 = vld [vmem:[%s11 + $0x48] sm:$0xff]
        %v1846 = vld [vmem:[%s11 + $0x50] sm:$0xff]
        %v1847 = vld [vmem:[%s11 + $0x58] sm:$0xff]
        %v1848 = vld [vmem:[%s11 + $0x60] sm:$0xff]
        %v1849 = vld [vmem:[%s11 + $0x68] sm:$0xff]
        %v1850 = vld [vmem:[%s11 + $0x70] sm:$0xff]
        %v1851 = vld [vmem:[%s11 + $0x78] sm:$0xff]
        %v1852 = vld [vmem:[%s11 + $0x80] sm:$0xff]
        %v1853 = vld [vmem:[%s11 + $0x88] sm:$0xff]
        %v1854 = vld [vmem:[%s11 + $0x90] sm:$0xff]
        %v1855 = vld [vmem:[%s11 + $0x98] sm:$0xff]
        %v1856 = vld [vmem:[%s11 + $0xa0] sm:$0xff]
        %v1857 = vld [vmem:[%s11 + $0xa8] sm:$0xff]
        %v1858 = vld [vmem:[%s11 + $0xb0] sm:$0xff]
        %v1859 = vld [vmem:[%s11 + $0xb8] sm:$0xff]
        %v1860 = vld [vmem:[%s11 + $0xc0] sm:$0xff]
        %v1861 = vld [vmem:[%s11 + $0xc8] sm:$0xff]
        %v1862 = vld [vmem:[%s11 + $0xd0] sm:$0xff]
        %v1863 = vld [vmem:[%s11 + $0xd8] sm:$0xff]
        %v1864 = vld [vmem:[%s11 + $0xe0] sm:$0xff]
        %v1865 = vld [vmem:[%s11 + $0xe8] sm:$0xff]
        %v1866 = vld [vmem:[%s11 + $0xf0] sm:$0xff]
        %v1867 = vld [vmem:[%s11 + $0xf8] sm:$0xff]
        %v1868 = vld [vmem:[#allocation9] sm:$0xff]
        %v1869 = vld [vmem:[#allocation9 + $0x8] sm:$0xff]
        %v1870 = vld [vmem:[#allocation9 + $0x10] sm:$0xff]
        %v1871 = vld [vmem:[#allocation9 + $0x18] sm:$0xff]
        %v1872 = vld [vmem:[#allocation10] sm:$0x1]
        %v1873 = vld [vmem:[#allocation12] sm:$0x1]
        %v1874 = vadd.f32 %v1832, %v1834
        %v1875 = vrot.slane %v1874, 4
        %v1876 = vadd.f32 %v1874, %v1875
        %v1877 = vrot.slane %v1876, 2
        %v1878 = vadd.f32 %v1876, %v1877
        %v1879 = vrot.slane %v1878, 1
        %v1880 = vadd.f32 %v1878, %v1879
        %v1881 = vadd.f32 %v1833, %v1835
        %v1882 = vrot.slane %v1881, 4
        %v1883 = vadd.f32 %v1881, %v1882
        %v1884 = vrot.slane %v1883, 2
        %v1885 = vadd.f32 %v1883, %v1884
        %v1886 = vrot.slane %v1885, 1
        %v1887 = vadd.f32 %v1885, %v1886
        %1888 = vmatprep.subr.mxu0 0.0
        %1889 = vmatpush1.msra.mxu0 %v1836
        %1890 = vmatprep.subr.mxu0 0.0
        %1891 = vmatpush1.msra.mxu0 %v1837
        %1892 = vmatprep.subr.mxu0 0.0
        %1893 = vmatpush1.msra.mxu0 %v1838
        %1894 = vmatprep.subr.mxu0 0.0
        %1895 = vmatpush1.msra.mxu0 %v1839
        %1896 = vmatprep.subr.mxu0 0.0
        %1897 = vmatpush1.msra.mxu0 %v1840
        %1898 = vmatprep.subr.mxu0 0.0
        %1899 = vmatpush1.msra.mxu0 %v1841
        %1900 = vmatprep.subr.mxu0 0.0
        %1901 = vmatpush1.msra.mxu0 %v1842
        %1902 = vmatprep.subr.mxu0 0.0
        %1903 = vmatpush1.msra.mxu0 %v1843
        %1904 = vmatprep.subr.mxu0 0.0
        %1905 = vmatpush1.msra.mxu0 %v1844
        %1906 = vmatprep.subr.mxu0 0.0
        %1907 = vmatpush1.msra.mxu0 %v1845
        %1908 = vmatprep.subr.mxu0 0.0
        %1909 = vmatpush1.msra.mxu0 %v1846
        %1910 = vmatprep.subr.mxu0 0.0
        %1911 = vmatpush1.msra.mxu0 %v1847
        %1912 = vmatprep.subr.mxu0 0.0
        %1913 = vmatpush1.msra.mxu0 %v1848
        %1914 = vmatprep.subr.mxu0 0.0
        %1915 = vmatpush1.msra.mxu0 %v1849
        %1916 = vmatprep.subr.mxu0 0.0
        %1917 = vmatpush1.msra.mxu0 %v1850
        %1918 = vmatprep.subr.mxu0 0.0
        %1919 = vmatpush1.msra.mxu0 %v1851
        %1920 = vmatprep.subr.mxu0 0.0
        %1921 = vmatpush1.msra.mxu0 %v1852
        %1922 = vmatprep.subr.mxu0 0.0
        %1923 = vmatpush1.msra.mxu0 %v1853
        %1924 = vmatprep.subr.mxu0 0.0
        %1925 = vmatpush1.msra.mxu0 %v1854
        %1926 = vmatprep.subr.mxu0 0.0
        %1927 = vmatpush1.msra.mxu0 %v1855
        %1928 = vmatprep.subr.mxu0 0.0
        %1929 = vmatpush1.msra.mxu0 %v1856
        %1930 = vmatprep.subr.mxu0 0.0
        %1931 = vmatpush1.msra.mxu0 %v1857
        %1932 = vmatprep.subr.mxu0 0.0
        %1933 = vmatpush1.msra.mxu0 %v1858
        %1934 = vmatprep.subr.mxu0 0.0
        %1935 = vmatpush1.msra.mxu0 %v1859
        %1936 = vmatprep.subr.mxu0 0.0
        %1937 = vmatpush1.msra.mxu0 %v1860
        %1938 = vmatprep.subr.mxu0 0.0
        %1939 = vmatpush1.msra.mxu0 %v1861
        %1940 = vmatprep.subr.mxu0 0.0
        %1941 = vmatpush1.msra.mxu0 %v1862
        %1942 = vmatprep.subr.mxu0 0.0
        %1943 = vmatpush1.msra.mxu0 %v1863
        %1944 = vmatprep.subr.mxu0 0.0
        %1945 = vmatpush1.msra.mxu0 %v1864
        %1946 = vmatprep.subr.mxu0 0.0
        %1947 = vmatpush1.msra.mxu0 %v1865
        %1948 = vmatprep.subr.mxu0 0.0
        %1949 = vmatpush1.msra.mxu0 %v1866
        %1950 = vmatprep.subr.mxu0 0.0
        %1951 = vmatpush1.msra.mxu0 %v1867
        %1952 = vmatprep.mubr.f32.mxu0 %v1887
        %1953 = vmatmul.mubr.f32.gmra.mrb[0].mxu0 %v1880
        %v1954 = vpop.f32.mrb[0].mxu0
        %v1955 = vadd.f32 0.0, %v1954
        %v1956 = vpop.f32.mrb[0].mxu0
        %1957 = vdwg.mxu0
        %v1958 = vmul.f32 %v1955, 0.00390625
        %v1959 = vmul.f32 %v1832, %v1832
        %v1960 = vmul.f32 %v1833, %v1833
        %v1961 = vmul.f32 %v1834, %v1834
        %v1962 = vmul.f32 %v1835, %v1835
        %v1963 = vadd.f32 %v1959, %v1961
        %v1964 = vrot.slane %v1963, 4
        %v1965 = vadd.f32 %v1963, %v1964
        %v1966 = vrot.slane %v1965, 2
        %v1967 = vadd.f32 %v1965, %v1966
        %v1968 = vrot.slane %v1967, 1
        %v1969 = vadd.f32 %v1967, %v1968
        %v1970 = vadd.f32 %v1960, %v1962
        %v1971 = vrot.slane %v1970, 4
        %v1972 = vadd.f32 %v1970, %v1971
        %v1973 = vrot.slane %v1972, 2
        %v1974 = vadd.f32 %v1972, %v1973
        %v1975 = vrot.slane %v1974, 1
        %v1976 = vadd.f32 %v1974, %v1975
        %1977 = vmatprep.subr.mxu0 0.0
        %1978 = vmatpush1.msra.mxu0 %v1836
        %1979 = vmatprep.subr.mxu0 0.0
        %1980 = vmatpush1.msra.mxu0 %v1837
        %1981 = vmatprep.subr.mxu0 0.0
        %1982 = vmatpush1.msra.mxu0 %v1838
        %1983 = vmatprep.subr.mxu0 0.0
        %1984 = vmatpush1.msra.mxu0 %v1839
        %1985 = vmatprep.subr.mxu0 0.0
        %1986 = vmatpush1.msra.mxu0 %v1840
        %1987 = vmatprep.subr.mxu0 0.0
        %1988 = vmatpush1.msra.mxu0 %v1841
        %1989 = vmatprep.subr.mxu0 0.0
        %1990 = vmatpush1.msra.mxu0 %v1842
        %1991 = vmatprep.subr.mxu0 0.0
        %1992 = vmatpush1.msra.mxu0 %v1843
        %1993 = vmatprep.subr.mxu0 0.0
        %1994 = vmatpush1.msra.mxu0 %v1844
        %1995 = vmatprep.subr.mxu0 0.0
        %1996 = vmatpush1.msra.mxu0 %v1845
        %1997 = vmatprep.subr.mxu0 0.0
        %1998 = vmatpush1.msra.mxu0 %v1846
        %1999 = vmatprep.subr.mxu0 0.0
        %2000 = vmatpush1.msra.mxu0 %v1847
        %2001 = vmatprep.subr.mxu0 0.0
        %2002 = vmatpush1.msra.mxu0 %v1848
        %2003 = vmatprep.subr.mxu0 0.0
        %2004 = vmatpush1.msra.mxu0 %v1849
        %2005 = vmatprep.subr.mxu0 0.0
        %2006 = vmatpush1.msra.mxu0 %v1850
        %2007 = vmatprep.subr.mxu0 0.0
        %2008 = vmatpush1.msra.mxu0 %v1851
        %2009 = vmatprep.subr.mxu0 0.0
        %2010 = vmatpush1.msra.mxu0 %v1852
        %2011 = vmatprep.subr.mxu0 0.0
        %2012 = vmatpush1.msra.mxu0 %v1853
        %2013 = vmatprep.subr.mxu0 0.0
        %2014 = vmatpush1.msra.mxu0 %v1854
        %2015 = vmatprep.subr.mxu0 0.0
        %2016 = vmatpush1.msra.mxu0 %v1855
        %2017 = vmatprep.subr.mxu0 0.0
        %2018 = vmatpush1.msra.mxu0 %v1856
        %2019 = vmatprep.subr.mxu0 0.0
        %2020 = vmatpush1.msra.mxu0 %v1857
        %2021 = vmatprep.subr.mxu0 0.0
        %2022 = vmatpush1.msra.mxu0 %v1858
        %2023 = vmatprep.subr.mxu0 0.0
        %2024 = vmatpush1.msra.mxu0 %v1859
        %2025 = vmatprep.subr.mxu0 0.0
        %2026 = vmatpush1.msra.mxu0 %v1860
        %2027 = vmatprep.subr.mxu0 0.0
        %2028 = vmatpush1.msra.mxu0 %v1861
        %2029 = vmatprep.subr.mxu0 0.0
        %2030 = vmatpush1.msra.mxu0 %v1862
        %2031 = vmatprep.subr.mxu0 0.0
        %2032 = vmatpush1.msra.mxu0 %v1863
        %2033 = vmatprep.subr.mxu0 0.0
        %2034 = vmatpush1.msra.mxu0 %v1864
        %2035 = vmatprep.subr.mxu0 0.0
        %2036 = vmatpush1.msra.mxu0 %v1865
        %2037 = vmatprep.subr.mxu0 0.0
        %2038 = vmatpush1.msra.mxu0 %v1866
        %2039 = vmatprep.subr.mxu0 0.0
        %2040 = vmatpush1.msra.mxu0 %v1867
        %2041 = vmatprep.mubr.f32.mxu0 %v1976
        %2042 = vmatmul.mubr.f32.gmra.mrb[0].mxu0 %v1969
        %v2043 = vpop.f32.mrb[0].mxu0
        %v2044 = vadd.f32 0.0, %v2043
        %v2045 = vpop.f32.mrb[0].mxu0
        %2046 = vdwg.mxu0
        %v2047 = vmul.f32 %v2044, 0.00390625
        %v2048 = vmul.f32 %v1958, %v1958
        %v2049 = vsub.f32 %v2047, %v2048
        %v2050 = vmax.f32 %v2049, 0.0
        %v2051 = vadd.f32 %v2050, 1e-05
        %v2052 = vrsqrt.pop %v2051
        %v2053 = vmul.f32 %v1872, %v2052
        %v2054 = vmul.f32 %v1958, %v2053
        %v2055 = vsub.f32 %v1873, %v2054
        %vm2056 = vcmask 130048
        %v2058 = vsel %vm2056, %v2053, 0
        %2060 = vmatprep.subr.mxu0 %v1869
        %2061 = vmatpush1.msra.mxu0 %v1868
        %2062 = vmatprep.subr.mxu0 %v1871
        %2063 = vmatpush1.msra.mxu0 %v1870
        %2064 = vmatprep.subr.mxu0 0.0
        %2065 = vmatpush1.msra.mxu0 0.0
        %2066 = vmatprep.subr.mxu0 0.0
        %2067 = vmatpush1.msra.mxu0 0.0
        %2068 = vmatprep.subr.mxu0 0.0
        %2069 = vmatpush1.msra.mxu0 0.0
        %2070 = vmatprep.subr.mxu0 0.0
        %2071 = vmatpush1.msra.mxu0 0.0
        %2072 = vmatprep.subr.mxu0 0.0
        %2073 = vmatpush1.msra.mxu0 0.0
        %2074 = vmatprep.subr.mxu0 0.0
        %2075 = vmatpush1.msra.mxu0 0.0
        %2076 = vmatprep.subr.mxu0 0.0
        %2077 = vmatpush1.msra.mxu0 0.0
        %2078 = vmatprep.subr.mxu0 0.0
        %2079 = vmatpush1.msra.mxu0 0.0
        %2080 = vmatprep.subr.mxu0 0.0
        %2081 = vmatpush1.msra.mxu0 0.0
        %2082 = vmatprep.subr.mxu0 0.0
        %2083 = vmatpush1.msra.mxu0 0.0
        %2084 = vmatprep.subr.mxu0 0.0
        %2085 = vmatpush1.msra.mxu0 0.0
        %2086 = vmatprep.subr.mxu0 0.0
        %2087 = vmatpush1.msra.mxu0 0.0
        %2088 = vmatprep.subr.mxu0 0.0
        %2089 = vmatpush1.msra.mxu0 0.0
        %2090 = vmatprep.subr.mxu0 0.0
        %2091 = vmatpush1.msra.mxu0 0.0
        %2092 = vmatprep.subr.mxu0 0.0
        %2093 = vmatpush1.msra.mxu0 0.0
        %2094 = vmatprep.subr.mxu0 0.0
        %2095 = vmatpush1.msra.mxu0 0.0
        %2096 = vmatprep.subr.mxu0 0.0
        %2097 = vmatpush1.msra.mxu0 0.0
        %2098 = vmatprep.subr.mxu0 0.0
        %2099 = vmatpush1.msra.mxu0 0.0
        %2100 = vmatprep.subr.mxu0 0.0
        %2101 = vmatpush1.msra.mxu0 0.0
        %2102 = vmatprep.subr.mxu0 0.0
        %2103 = vmatpush1.msra.mxu0 0.0
        %2104 = vmatprep.subr.mxu0 0.0
        %2105 = vmatpush1.msra.mxu0 0.0
        %2106 = vmatprep.subr.mxu0 0.0
        %2107 = vmatpush1.msra.mxu0 0.0
        %2108 = vmatprep.subr.mxu0 0.0
        %2109 = vmatpush1.msra.mxu0 0.0
        %2110 = vmatprep.subr.mxu0 0.0
        %2111 = vmatpush1.msra.mxu0 0.0
        %2112 = vmatprep.subr.mxu0 0.0
        %2113 = vmatpush1.msra.mxu0 0.0
        %2114 = vmatprep.subr.mxu0 0.0
        %2115 = vmatpush1.msra.mxu0 0.0
        %2116 = vmatprep.subr.mxu0 0.0
        %2117 = vmatpush1.msra.mxu0 0.0
        %2118 = vmatprep.subr.mxu0 0.0
        %2119 = vmatpush1.msra.mxu0 0.0
        %2120 = vmatprep.subr.mxu0 0.0
        %2121 = vmatpush1.msra.mxu0 0.0
        %2122 = vmatprep.subr.mxu0 0.0
        %2123 = vmatpush1.msra.mxu0 0.0
        %2124 = vmatprep.mubr.f32.mxu0 0.0
        %2125 = vmatmul.mubr.f32.gmra.mrb[0].mxu0 %v2058
        %v2126 = vpop.f32.mrb[0].mxu0
        %v2127 = vadd.f32 0.0, %v2126
        %v2128 = vpop.f32.mrb[0].mxu0
        %v2129 = vadd.f32 0.0, %v2128
        %2130 = vdwg.mxu0
        %v2131 = vlaneseq
        %v2132 = vshrl.u32 %v2131, 7
        %v2133 = vsub.s32 0, %v2132
        %v2134 = vrot.slane %v2127, %v2133
        %v2135 = vlaneseq
        %v2136 = vshrl.u32 %v2135, 7
        %v2137 = vsub.s32 0, %v2136
        %v2138 = vrot.slane %v2129, %v2137
        %v2139 = vmul.f32 %v1832, %v2134
        %v2140 = vmul.f32 %v1833, %v2138
        %v2141 = vmul.f32 %v1834, %v2134
        %v2142 = vmul.f32 %v1835, %v2138
        %v2144 = vsel %vm2056, %v2055, 0
        %2146 = vmatprep.subr.mxu0 %v1869
        %2147 = vmatpush1.msra.mxu0 %v1868
        %2148 = vmatprep.subr.mxu0 %v1871
        %2149 = vmatpush1.msra.mxu0 %v1870
        %2150 = vmatprep.subr.mxu0 0.0
        %2151 = vmatpush1.msra.mxu0 0.0
        %2152 = vmatprep.subr.mxu0 0.0
        %2153 = vmatpush1.msra.mxu0 0.0
        %2154 = vmatprep.subr.mxu0 0.0
        %2155 = vmatpush1.msra.mxu0 0.0
        %2156 = vmatprep.subr.mxu0 0.0
        %2157 = vmatpush1.msra.mxu0 0.0
        %2158 = vmatprep.subr.mxu0 0.0
        %2159 = vmatpush1.msra.mxu0 0.0
        %2160 = vmatprep.subr.mxu0 0.0
        %2161 = vmatpush1.msra.mxu0 0.0
        %2162 = vmatprep.subr.mxu0 0.0
        %2163 = vmatpush1.msra.mxu0 0.0
        %2164 = vmatprep.subr.mxu0 0.0
        %2165 = vmatpush1.msra.mxu0 0.0
        %2166 = vmatprep.subr.mxu0 0.0
        %2167 = vmatpush1.msra.mxu0 0.0
        %2168 = vmatprep.subr.mxu0 0.0
        %2169 = vmatpush1.msra.mxu0 0.0
        %2170 = vmatprep.subr.mxu0 0.0
        %2171 = vmatpush1.msra.mxu0 0.0
        %2172 = vmatprep.subr.mxu0 0.0
        %2173 = vmatpush1.msra.mxu0 0.0
        %2174 = vmatprep.subr.mxu0 0.0
        %2175 = vmatpush1.msra.mxu0 0.0
        %2176 = vmatprep.subr.mxu0 0.0
        %2177 = vmatpush1.msra.mxu0 0.0
        %2178 = vmatprep.subr.mxu0 0.0
        %2179 = vmatpush1.msra.mxu0 0.0
        %2180 = vmatprep.subr.mxu0 0.0
        %2181 = vmatpush1.msra.mxu0 0.0
        %2182 = vmatprep.subr.mxu0 0.0
        %2183 = vmatpush1.msra.mxu0 0.0
        %2184 = vmatprep.subr.mxu0 0.0
        %2185 = vmatpush1.msra.mxu0 0.0
        %2186 = vmatprep.subr.mxu0 0.0
        %2187 = vmatpush1.msra.mxu0 0.0
        %2188 = vmatprep.subr.mxu0 0.0
        %2189 = vmatpush1.msra.mxu0 0.0
        %2190 = vmatprep.subr.mxu0 0.0
        %2191 = vmatpush1.msra.mxu0 0.0
        %2192 = vmatprep.subr.mxu0 0.0
        %2193 = vmatpush1.msra.mxu0 0.0
        %2194 = vmatprep.subr.mxu0 0.0
        %2195 = vmatpush1.msra.mxu0 0.0
        %2196 = vmatprep.subr.mxu0 0.0
        %2197 = vmatpush1.msra.mxu0 0.0
        %2198 = vmatprep.subr.mxu0 0.0
        %2199 = vmatpush1.msra.mxu0 0.0
        %2200 = vmatprep.subr.mxu0 0.0
        %2201 = vmatpush1.msra.mxu0 0.0
        %2202 = vmatprep.subr.mxu0 0.0
        %2203 = vmatpush1.msra.mxu0 0.0
        %2204 = vmatprep.subr.mxu0 0.0
        %2205 = vmatpush1.msra.mxu0 0.0
        %2206 = vmatprep.subr.mxu0 0.0
        %2207 = vmatpush1.msra.mxu0 0.0
        %2208 = vmatprep.subr.mxu0 0.0
        %2209 = vmatpush1.msra.mxu0 0.0
        %2210 = vmatprep.mubr.f32.mxu0 0.0
        %2211 = vmatmul.mubr.f32.gmra.mrb[0].mxu0 %v2144
        %v2212 = vpop.f32.mrb[0].mxu0
        %v2213 = vadd.f32 0.0, %v2212
        %v2214 = vpop.f32.mrb[0].mxu0
        %v2215 = vadd.f32 0.0, %v2214
        %2216 = vdwg.mxu0
        %v2217 = vlaneseq
        %v2218 = vshrl.u32 %v2217, 7
        %v2219 = vsub.s32 0, %v2218
        %v2220 = vrot.slane %v2213, %v2219
        %v2221 = vlaneseq
        %v2222 = vshrl.u32 %v2221, 7
        %v2223 = vsub.s32 0, %v2222
        %v2224 = vrot.slane %v2215, %v2223
        %v2225 = vadd.f32 %v2139, %v2220
        %v2226 = vadd.f32 %v2140, %v2224
        %v2227 = vadd.f32 %v2141, %v2220
        %v2228 = vadd.f32 %v2142, %v2224
        %v2229 = vld [vmem:[#allocation13] sm:$0xff]
        %v2230 = vld [vmem:[%s21] sm:$0xff]
        %v2231 = vld [vmem:[%s21 + $0x8] sm:$0xff]
        %v2232 = vld [vmem:[%s21 + $0x10] sm:$0xff]
        %v2233 = vld [vmem:[%s21 + $0x18] sm:$0xff]
        %v2234 = vld [vmem:[%s21 + $0x20] sm:$0xff]
        %v2235 = vld [vmem:[%s21 + $0x28] sm:$0xff]
        %v2236 = vld [vmem:[%s21 + $0x30] sm:$0xff]
        %v2237 = vld [vmem:[%s21 + $0x38] sm:$0xff]
        %v2238 = vld [vmem:[%s21 + $0x40] sm:$0xff]
        %v2239 = vld [vmem:[%s21 + $0x48] sm:$0xff]
        %v2240 = vld [vmem:[%s21 + $0x50] sm:$0xff]
        %v2241 = vld [vmem:[%s21 + $0x58] sm:$0xff]
        %v2242 = vld [vmem:[%s21 + $0x60] sm:$0xff]
        %v2243 = vld [vmem:[%s21 + $0x68] sm:$0xff]
        %v2244 = vld [vmem:[%s21 + $0x70] sm:$0xff]
        %v2245 = vld [vmem:[%s21 + $0x78] sm:$0xff]
        %v2246 = vld [vmem:[%s21 + $0x80] sm:$0xff]
        %v2247 = vld [vmem:[%s21 + $0x88] sm:$0xff]
        %v2248 = vld [vmem:[%s21 + $0x90] sm:$0xff]
        %v2249 = vld [vmem:[%s21 + $0x98] sm:$0xff]
        %v2250 = vld [vmem:[%s21 + $0xa0] sm:$0xff]
        %v2251 = vld [vmem:[%s21 + $0xa8] sm:$0xff]
        %v2252 = vld [vmem:[%s21 + $0xb0] sm:$0xff]
        %v2253 = vld [vmem:[%s21 + $0xb8] sm:$0xff]
        %v2254 = vld [vmem:[%s21 + $0xc0] sm:$0xff]
        %v2255 = vld [vmem:[%s21 + $0xc8] sm:$0xff]
        %v2256 = vld [vmem:[%s21 + $0xd0] sm:$0xff]
        %v2257 = vld [vmem:[%s21 + $0xd8] sm:$0xff]
        %v2258 = vld [vmem:[%s21 + $0xe0] sm:$0xff]
        %v2259 = vld [vmem:[%s21 + $0xe8] sm:$0xff]
        %v2260 = vld [vmem:[%s21 + $0xf0] sm:$0xff]
        %v2261 = vld [vmem:[%s21 + $0xf8] sm:$0xff]
        %v2262 = vld [vmem:[%s21 + $0x100] sm:$0xff]
        %v2263 = vld [vmem:[%s21 + $0x108] sm:$0xff]
        %v2264 = vld [vmem:[%s21 + $0x110] sm:$0xff]
        %v2265 = vld [vmem:[%s21 + $0x118] sm:$0xff]
        %v2266 = vld [vmem:[%s21 + $0x120] sm:$0xff]
        %v2267 = vld [vmem:[%s21 + $0x128] sm:$0xff]
        %v2268 = vld [vmem:[%s21 + $0x130] sm:$0xff]
        %v2269 = vld [vmem:[%s21 + $0x138] sm:$0xff]
        %v2270 = vld [vmem:[%s21 + $0x140] sm:$0xff]
        %v2271 = vld [vmem:[%s21 + $0x148] sm:$0xff]
        %v2272 = vld [vmem:[%s21 + $0x150] sm:$0xff]
        %v2273 = vld [vmem:[%s21 + $0x158] sm:$0xff]
        %v2274 = vld [vmem:[%s21 + $0x160] sm:$0xff]
        %v2275 = vld [vmem:[%s21 + $0x168] sm:$0xff]
        %v2276 = vld [vmem:[%s21 + $0x170] sm:$0xff]
        %v2277 = vld [vmem:[%s21 + $0x178] sm:$0xff]
        %v2278 = vld [vmem:[%s21 + $0x180] sm:$0xff]
        %v2279 = vld [vmem:[%s21 + $0x188] sm:$0xff]
        %v2280 = vld [vmem:[%s21 + $0x190] sm:$0xff]
        %v2281 = vld [vmem:[%s21 + $0x198] sm:$0xff]
        %v2282 = vld [vmem:[%s21 + $0x1a0] sm:$0xff]
        %v2283 = vld [vmem:[%s21 + $0x1a8] sm:$0xff]
        %v2284 = vld [vmem:[%s21 + $0x1b0] sm:$0xff]
        %v2285 = vld [vmem:[%s21 + $0x1b8] sm:$0xff]
        %v2286 = vld [vmem:[%s21 + $0x1c0] sm:$0xff]
        %v2287 = vld [vmem:[%s21 + $0x1c8] sm:$0xff]
        %v2288 = vld [vmem:[%s21 + $0x1d0] sm:$0xff]
        %v2289 = vld [vmem:[%s21 + $0x1d8] sm:$0xff]
        %v2290 = vld [vmem:[%s21 + $0x1e0] sm:$0xff]
        %v2291 = vld [vmem:[%s21 + $0x1e8] sm:$0xff]
        %v2292 = vld [vmem:[%s21 + $0x1f0] sm:$0xff]
        %v2293 = vld [vmem:[%s21 + $0x1f8] sm:$0xff]
        %v2294 = vld [vmem:[#allocation15] sm:$0xff]
        %v2295 = vld [vmem:[#allocation15 + $0x8] sm:$0xff]
        %v2297 = vsel %vm2056, %v2229, 0
        %2299 = vmatprep.subr.mxu0 %v2226
        %2300 = vmatpush1.msra.mxu0 %v2225
        %2301 = vmatprep.subr.mxu0 %v2228
        %2302 = vmatpush1.msra.mxu0 %v2227
        %2303 = vmatprep.subr.mxu0 0.0
        %2304 = vmatpush1.msra.mxu0 0.0
        %2305 = vmatprep.subr.mxu0 0.0
        %2306 = vmatpush1.msra.mxu0 0.0
        %2307 = vmatprep.subr.mxu0 0.0
        %2308 = vmatpush1.msra.mxu0 0.0
        %2309 = vmatprep.subr.mxu0 0.0
        %2310 = vmatpush1.msra.mxu0 0.0
        %2311 = vmatprep.subr.mxu0 0.0
        %2312 = vmatpush1.msra.mxu0 0.0
        %2313 = vmatprep.subr.mxu0 0.0
        %2314 = vmatpush1.msra.mxu0 0.0
        %2315 = vmatprep.subr.mxu0 0.0
        %2316 = vmatpush1.msra.mxu0 0.0
        %2317 = vmatprep.subr.mxu0 0.0
        %2318 = vmatpush1.msra.mxu0 0.0
        %2319 = vmatprep.subr.mxu0 0.0
        %2320 = vmatpush1.msra.mxu0 0.0
        %2321 = vmatprep.subr.mxu0 0.0
        %2322 = vmatpush1.msra.mxu0 0.0
        %2323 = vmatprep.subr.mxu0 0.0
        %2324 = vmatpush1.msra.mxu0 0.0
        %2325 = vmatprep.subr.mxu0 0.0
        %2326 = vmatpush1.msra.mxu0 0.0
        %2327 = vmatprep.subr.mxu0 0.0
        %2328 = vmatpush1.msra.mxu0 0.0
        %2329 = vmatprep.subr.mxu0 0.0
        %2330 = vmatpush1.msra.mxu0 0.0
        %2331 = vmatprep.subr.mxu0 0.0
        %2332 = vmatpush1.msra.mxu0 0.0
        %2333 = vmatprep.subr.mxu0 0.0
        %2334 = vmatpush1.msra.mxu0 0.0
        %2335 = vmatprep.subr.mxu0 0.0
        %2336 = vmatpush1.msra.mxu0 0.0
        %2337 = vmatprep.subr.mxu0 0.0
        %2338 = vmatpush1.msra.mxu0 0.0
        %2339 = vmatprep.subr.mxu0 0.0
        %2340 = vmatpush1.msra.mxu0 0.0
        %2341 = vmatprep.subr.mxu0 0.0
        %2342 = vmatpush1.msra.mxu0 0.0
        %2343 = vmatprep.subr.mxu0 0.0
        %2344 = vmatpush1.msra.mxu0 0.0
        %2345 = vmatprep.subr.mxu0 0.0
        %2346 = vmatpush1.msra.mxu0 0.0
        %2347 = vmatprep.subr.mxu0 0.0
        %2348 = vmatpush1.msra.mxu0 0.0
        %2349 = vmatprep.subr.mxu0 0.0
        %2350 = vmatpush1.msra.mxu0 0.0
        %2351 = vmatprep.subr.mxu0 0.0
        %2352 = vmatpush1.msra.mxu0 0.0
        %2353 = vmatprep.subr.mxu0 0.0
        %2354 = vmatpush1.msra.mxu0 0.0
        %2355 = vmatprep.subr.mxu0 0.0
        %2356 = vmatpush1.msra.mxu0 0.0
        %2357 = vmatprep.subr.mxu0 0.0
        %2358 = vmatpush1.msra.mxu0 0.0
        %2359 = vmatprep.subr.mxu0 0.0
        %2360 = vmatpush1.msra.mxu0 0.0
        %2361 = vmatprep.subr.mxu0 0.0
        %2362 = vmatpush1.msra.mxu0 0.0
        %2363 = vmatprep.mubr.f32.mxu0 0.0
        %2364 = vmatmul.mubr.f32.gmra.mrb[0].mxu0 %v2297
        %v2365 = vpop.f32.mrb[0].mxu0
        %v2366 = vadd.f32 0.0, %v2365
        %v2367 = vpop.f32.mrb[0].mxu0
        %v2368 = vadd.f32 0.0, %v2367
        %2369 = vdwg.mxu0
        %2370 = vmatprep.subr.mxu0 %v2231
        %2371 = vmatpush1.msra.mxu0 %v2230
        %2372 = vmatprep.subr.mxu0 %v2233
        %2373 = vmatpush1.msra.mxu0 %v2232
        %2374 = vmatprep.subr.mxu0 %v2235
        %2375 = vmatpush1.msra.mxu0 %v2234
        %2376 = vmatprep.subr.mxu0 %v2237
        %2377 = vmatpush1.msra.mxu0 %v2236
        %2378 = vmatprep.subr.mxu0 %v2239
        %2379 = vmatpush1.msra.mxu0 %v2238
        %2380 = vmatprep.subr.mxu0 %v2241
        %2381 = vmatpush1.msra.mxu0 %v2240
        %2382 = vmatprep.subr.mxu0 %v2243
        %2383 = vmatpush1.msra.mxu0 %v2242
        %2384 = vmatprep.subr.mxu0 %v2245
        %2385 = vmatpush1.msra.mxu0 %v2244
        %2386 = vmatprep.subr.mxu0 %v2247
        %2387 = vmatpush1.msra.mxu0 %v2246
        %2388 = vmatprep.subr.mxu0 %v2249
        %2389 = vmatpush1.msra.mxu0 %v2248
        %2390 = vmatprep.subr.mxu0 %v2251
        %2391 = vmatpush1.msra.mxu0 %v2250
        %2392 = vmatprep.subr.mxu0 %v2253
        %2393 = vmatpush1.msra.mxu0 %v2252
        %2394 = vmatprep.subr.mxu0 %v2255
        %2395 = vmatpush1.msra.mxu0 %v2254
        %2396 = vmatprep.subr.mxu0 %v2257
        %2397 = vmatpush1.msra.mxu0 %v2256
        %2398 = vmatprep.subr.mxu0 %v2259
        %2399 = vmatpush1.msra.mxu0 %v2258
        %2400 = vmatprep.subr.mxu0 %v2261
        %2401 = vmatpush1.msra.mxu0 %v2260
        %2402 = vmatprep.subr.mxu0 %v2263
        %2403 = vmatpush1.msra.mxu0 %v2262
        %2404 = vmatprep.subr.mxu0 %v2265
        %2405 = vmatpush1.msra.mxu0 %v2264
        %2406 = vmatprep.subr.mxu0 %v2267
        %2407 = vmatpush1.msra.mxu0 %v2266
        %2408 = vmatprep.subr.mxu0 %v2269
        %2409 = vmatpush1.msra.mxu0 %v2268
        %2410 = vmatprep.subr.mxu0 %v2271
        %2411 = vmatpush1.msra.mxu0 %v2270
        %2412 = vmatprep.subr.mxu0 %v2273
        %2413 = vmatpush1.msra.mxu0 %v2272
        %2414 = vmatprep.subr.mxu0 %v2275
        %2415 = vmatpush1.msra.mxu0 %v2274
        %2416 = vmatprep.subr.mxu0 %v2277
        %2417 = vmatpush1.msra.mxu0 %v2276
        %2418 = vmatprep.subr.mxu0 %v2279
        %2419 = vmatpush1.msra.mxu0 %v2278
        %2420 = vmatprep.subr.mxu0 %v2281
        %2421 = vmatpush1.msra.mxu0 %v2280
        %2422 = vmatprep.subr.mxu0 %v2283
        %2423 = vmatpush1.msra.mxu0 %v2282
        %2424 = vmatprep.subr.mxu0 %v2285
        %2425 = vmatpush1.msra.mxu0 %v2284
        %2426 = vmatprep.subr.mxu0 %v2287
        %2427 = vmatpush1.msra.mxu0 %v2286
        %2428 = vmatprep.subr.mxu0 %v2289
        %2429 = vmatpush1.msra.mxu0 %v2288
        %2430 = vmatprep.subr.mxu0 %v2291
        %2431 = vmatpush1.msra.mxu0 %v2290
        %2432 = vmatprep.subr.mxu0 %v2293
        %2433 = vmatpush1.msra.mxu0 %v2292
        %2434 = vmatprep.mubr.f32.mxu0 %v2368
        %2435 = vmatmul.mubr.f32.gmra.mrb[0].mxu0 %v2366
        %v2436 = vpop.f32.mrb[0].mxu0
        %v2437 = vadd.f32 %v2294, %v2436
        %v2438 = vpop.f32.mrb[0].mxu0
        %v2439 = vadd.f32 %v2295, %v2438
        %2440 = vdwg.mxu0
        %vm2441 = vcmp.ge.f32.partialorder %v2437, 0.0
        %vm2442 = vcmp.ge.f32.partialorder %v2439, 0.0
        %v2443 = vmul.f32 %v2437, 0.2
        %v2444 = vmul.f32 %v2439, 0.2
        %v2445 = vsel %vm2441, %v2437, %v2443
        %v2446 = vsel %vm2442, %v2439, %v2444
        %v2447 = vld [vmem:[%s25] sm:$0xff]
        %v2448 = vld [vmem:[%s25 + $0x8] sm:$0xff]
        %v2449 = vld [vmem:[%s25 + $0x10] sm:$0xff]
        %v2450 = vld [vmem:[%s25 + $0x18] sm:$0xff]
        %v2451 = vld [vmem:[%s25 + $0x20] sm:$0xff]
        %v2452 = vld [vmem:[%s25 + $0x28] sm:$0xff]
        %v2453 = vld [vmem:[%s25 + $0x30] sm:$0xff]
        %v2454 = vld [vmem:[%s25 + $0x38] sm:$0xff]
        %v2455 = vld [vmem:[%s25 + $0x40] sm:$0xff]
        %v2456 = vld [vmem:[%s25 + $0x48] sm:$0xff]
        %v2457 = vld [vmem:[%s25 + $0x50] sm:$0xff]
        %v2458 = vld [vmem:[%s25 + $0x58] sm:$0xff]
        %v2459 = vld [vmem:[%s25 + $0x60] sm:$0xff]
        %v2460 = vld [vmem:[%s25 + $0x68] sm:$0xff]
        %v2461 = vld [vmem:[%s25 + $0x70] sm:$0xff]
        %v2462 = vld [vmem:[%s25 + $0x78] sm:$0xff]
        %v2463 = vld [vmem:[%s25 + $0x80] sm:$0xff]
        %v2464 = vld [vmem:[%s25 + $0x88] sm:$0xff]
        %v2465 = vld [vmem:[%s25 + $0x90] sm:$0xff]
        %v2466 = vld [vmem:[%s25 + $0x98] sm:$0xff]
        %v2467 = vld [vmem:[%s25 + $0xa0] sm:$0xff]
        %v2468 = vld [vmem:[%s25 + $0xa8] sm:$0xff]
        %v2469 = vld [vmem:[%s25 + $0xb0] sm:$0xff]
        %v2470 = vld [vmem:[%s25 + $0xb8] sm:$0xff]
        %v2471 = vld [vmem:[%s25 + $0xc0] sm:$0xff]
        %v2472 = vld [vmem:[%s25 + $0xc8] sm:$0xff]
        %v2473 = vld [vmem:[%s25 + $0xd0] sm:$0xff]
        %v2474 = vld [vmem:[%s25 + $0xd8] sm:$0xff]
        %v2475 = vld [vmem:[%s25 + $0xe0] sm:$0xff]
        %v2476 = vld [vmem:[%s25 + $0xe8] sm:$0xff]
        %v2477 = vld [vmem:[%s25 + $0xf0] sm:$0xff]
        %v2478 = vld [vmem:[%s25 + $0xf8] sm:$0xff]
        %v2479 = vld [vmem:[#allocation16] sm:$0xff]
        %v2480 = vld [vmem:[#allocation16 + $0x8] sm:$0xff]
        %v2481 = vld [vmem:[#allocation16 + $0x10] sm:$0xff]
        %v2482 = vld [vmem:[#allocation16 + $0x18] sm:$0xff]
        %v2483 = vld [vmem:[#allocation16 + $0x20] sm:$0xff]
        %v2484 = vld [vmem:[#allocation16 + $0x28] sm:$0xff]
        %v2485 = vld [vmem:[#allocation16 + $0x30] sm:$0xff]
        %v2486 = vld [vmem:[#allocation16 + $0x38] sm:$0xff]
        %v2487 = vld [vmem:[#allocation18] sm:$0x1]
        %v2488 = vld [vmem:[#allocation19] sm:$0x1]
        %v2489 = vrot.slane %v2445, 4
        %v2490 = vadd.f32 %v2445, %v2489
        %v2491 = vrot.slane %v2490, 2
        %v2492 = vadd.f32 %v2490, %v2491
        %v2493 = vrot.slane %v2492, 1
        %v2494 = vadd.f32 %v2492, %v2493
        %v2495 = vrot.slane %v2446, 4
        %v2496 = vadd.f32 %v2446, %v2495
        %v2497 = vrot.slane %v2496, 2
        %v2498 = vadd.f32 %v2496, %v2497
        %v2499 = vrot.slane %v2498, 1
        %v2500 = vadd.f32 %v2498, %v2499
        %2501 = vmatprep.subr.mxu0 0.0
        %2502 = vmatpush1.msra.mxu0 %v2447
        %2503 = vmatprep.subr.mxu0 0.0
        %2504 = vmatpush1.msra.mxu0 %v2448
        %2505 = vmatprep.subr.mxu0 0.0
        %2506 = vmatpush1.msra.mxu0 %v2449
        %2507 = vmatprep.subr.mxu0 0.0
        %2508 = vmatpush1.msra.mxu0 %v2450
        %2509 = vmatprep.subr.mxu0 0.0
        %2510 = vmatpush1.msra.mxu0 %v2451
        %2511 = vmatprep.subr.mxu0 0.0
        %2512 = vmatpush1.msra.mxu0 %v2452
        %2513 = vmatprep.subr.mxu0 0.0
        %2514 = vmatpush1.msra.mxu0 %v2453
        %2515 = vmatprep.subr.mxu0 0.0
        %2516 = vmatpush1.msra.mxu0 %v2454
        %2517 = vmatprep.subr.mxu0 0.0
        %2518 = vmatpush1.msra.mxu0 %v2455
        %2519 = vmatprep.subr.mxu0 0.0
        %2520 = vmatpush1.msra.mxu0 %v2456
        %2521 = vmatprep.subr.mxu0 0.0
        %2522 = vmatpush1.msra.mxu0 %v2457
        %2523 = vmatprep.subr.mxu0 0.0
        %2524 = vmatpush1.msra.mxu0 %v2458
        %2525 = vmatprep.subr.mxu0 0.0
        %2526 = vmatpush1.msra.mxu0 %v2459
        %2527 = vmatprep.subr.mxu0 0.0
        %2528 = vmatpush1.msra.mxu0 %v2460
        %2529 = vmatprep.subr.mxu0 0.0
        %2530 = vmatpush1.msra.mxu0 %v2461
        %2531 = vmatprep.subr.mxu0 0.0
        %2532 = vmatpush1.msra.mxu0 %v2462
        %2533 = vmatprep.subr.mxu0 0.0
        %2534 = vmatpush1.msra.mxu0 %v2463
        %2535 = vmatprep.subr.mxu0 0.0
        %2536 = vmatpush1.msra.mxu0 %v2464
        %2537 = vmatprep.subr.mxu0 0.0
        %2538 = vmatpush1.msra.mxu0 %v2465
        %2539 = vmatprep.subr.mxu0 0.0
        %2540 = vmatpush1.msra.mxu0 %v2466
        %2541 = vmatprep.subr.mxu0 0.0
        %2542 = vmatpush1.msra.mxu0 %v2467
        %2543 = vmatprep.subr.mxu0 0.0
        %2544 = vmatpush1.msra.mxu0 %v2468
        %2545 = vmatprep.subr.mxu0 0.0
        %2546 = vmatpush1.msra.mxu0 %v2469
        %2547 = vmatprep.subr.mxu0 0.0
        %2548 = vmatpush1.msra.mxu0 %v2470
        %2549 = vmatprep.subr.mxu0 0.0
        %2550 = vmatpush1.msra.mxu0 %v2471
        %2551 = vmatprep.subr.mxu0 0.0
        %2552 = vmatpush1.msra.mxu0 %v2472
        %2553 = vmatprep.subr.mxu0 0.0
        %2554 = vmatpush1.msra.mxu0 %v2473
        %2555 = vmatprep.subr.mxu0 0.0
        %2556 = vmatpush1.msra.mxu0 %v2474
        %2557 = vmatprep.subr.mxu0 0.0
        %2558 = vmatpush1.msra.mxu0 %v2475
        %2559 = vmatprep.subr.mxu0 0.0
        %2560 = vmatpush1.msra.mxu0 %v2476
        %2561 = vmatprep.subr.mxu0 0.0
        %2562 = vmatpush1.msra.mxu0 %v2477
        %2563 = vmatprep.subr.mxu0 0.0
        %2564 = vmatpush1.msra.mxu0 %v2478
        %2565 = vmatprep.mubr.f32.mxu0 %v2500
        %2566 = vmatmul.mubr.f32.gmra.mrb[0].mxu0 %v2494
        %v2567 = vpop.f32.mrb[0].mxu0
        %v2568 = vadd.f32 0.0, %v2567
        %v2569 = vpop.f32.mrb[0].mxu0
        %2570 = vdwg.mxu0
        %v2571 = vmul.f32 %v2568, 0.015625
        %v2572 = vmul.f32 %v2445, %v2445
        %v2573 = vmul.f32 %v2446, %v2446
        %v2574 = vrot.slane %v2572, 4
        %v2575 = vadd.f32 %v2572, %v2574
        %v2576 = vrot.slane %v2575, 2
        %v2577 = vadd.f32 %v2575, %v2576
        %v2578 = vrot.slane %v2577, 1
        %v2579 = vadd.f32 %v2577, %v2578
        %v2580 = vrot.slane %v2573, 4
        %v2581 = vadd.f32 %v2573, %v2580
        %v2582 = vrot.slane %v2581, 2
        %v2583 = vadd.f32 %v2581, %v2582
        %v2584 = vrot.slane %v2583, 1
        %v2585 = vadd.f32 %v2583, %v2584
        %2586 = vmatprep.subr.mxu0 0.0
        %2587 = vmatpush1.msra.mxu0 %v2447
        %2588 = vmatprep.subr.mxu0 0.0
        %2589 = vmatpush1.msra.mxu0 %v2448
        %2590 = vmatprep.subr.mxu0 0.0
        %2591 = vmatpush1.msra.mxu0 %v2449
        %2592 = vmatprep.subr.mxu0 0.0
        %2593 = vmatpush1.msra.mxu0 %v2450
        %2594 = vmatprep.subr.mxu0 0.0
        %2595 = vmatpush1.msra.mxu0 %v2451
        %2596 = vmatprep.subr.mxu0 0.0
        %2597 = vmatpush1.msra.mxu0 %v2452
        %2598 = vmatprep.subr.mxu0 0.0
        %2599 = vmatpush1.msra.mxu0 %v2453
        %2600 = vmatprep.subr.mxu0 0.0
        %2601 = vmatpush1.msra.mxu0 %v2454
        %2602 = vmatprep.subr.mxu0 0.0
        %2603 = vmatpush1.msra.mxu0 %v2455
        %2604 = vmatprep.subr.mxu0 0.0
        %2605 = vmatpush1.msra.mxu0 %v2456
        %2606 = vmatprep.subr.mxu0 0.0
        %2607 = vmatpush1.msra.mxu0 %v2457
        %2608 = vmatprep.subr.mxu0 0.0
        %2609 = vmatpush1.msra.mxu0 %v2458
        %2610 = vmatprep.subr.mxu0 0.0
        %2611 = vmatpush1.msra.mxu0 %v2459
        %2612 = vmatprep.subr.mxu0 0.0
        %2613 = vmatpush1.msra.mxu0 %v2460
        %2614 = vmatprep.subr.mxu0 0.0
        %2615 = vmatpush1.msra.mxu0 %v2461
        %2616 = vmatprep.subr.mxu0 0.0
        %2617 = vmatpush1.msra.mxu0 %v2462
        %2618 = vmatprep.subr.mxu0 0.0
        %2619 = vmatpush1.msra.mxu0 %v2463
        %2620 = vmatprep.subr.mxu0 0.0
        %2621 = vmatpush1.msra.mxu0 %v2464
        %2622 = vmatprep.subr.mxu0 0.0
        %2623 = vmatpush1.msra.mxu0 %v2465
        %2624 = vmatprep.subr.mxu0 0.0
        %2625 = vmatpush1.msra.mxu0 %v2466
        %2626 = vmatprep.subr.mxu0 0.0
        %2627 = vmatpush1.msra.mxu0 %v2467
        %2628 = vmatprep.subr.mxu0 0.0
        %2629 = vmatpush1.msra.mxu0 %v2468
        %2630 = vmatprep.subr.mxu0 0.0
        %2631 = vmatpush1.msra.mxu0 %v2469
        %2632 = vmatprep.subr.mxu0 0.0
        %2633 = vmatpush1.msra.mxu0 %v2470
        %2634 = vmatprep.subr.mxu0 0.0
        %2635 = vmatpush1.msra.mxu0 %v2471
        %2636 = vmatprep.subr.mxu0 0.0
        %2637 = vmatpush1.msra.mxu0 %v2472
        %2638 = vmatprep.subr.mxu0 0.0
        %2639 = vmatpush1.msra.mxu0 %v2473
        %2640 = vmatprep.subr.mxu0 0.0
        %2641 = vmatpush1.msra.mxu0 %v2474
        %2642 = vmatprep.subr.mxu0 0.0
        %2643 = vmatpush1.msra.mxu0 %v2475
        %2644 = vmatprep.subr.mxu0 0.0
        %2645 = vmatpush1.msra.mxu0 %v2476
        %2646 = vmatprep.subr.mxu0 0.0
        %2647 = vmatpush1.msra.mxu0 %v2477
        %2648 = vmatprep.subr.mxu0 0.0
        %2649 = vmatpush1.msra.mxu0 %v2478
        %2650 = vmatprep.mubr.f32.mxu0 %v2585
        %2651 = vmatmul.mubr.f32.gmra.mrb[0].mxu0 %v2579
        %v2652 = vpop.f32.mrb[0].mxu0
        %v2653 = vadd.f32 0.0, %v2652
        %v2654 = vpop.f32.mrb[0].mxu0
        %2655 = vdwg.mxu0
        %v2656 = vmul.f32 %v2653, 0.015625
        %v2657 = vmul.f32 %v2571, %v2571
        %v2658 = vsub.f32 %v2656, %v2657
        %v2659 = vmax.f32 %v2658, 0.0
        %v2660 = vadd.f32 %v2659, 1e-05
        %v2661 = vrsqrt.pop %v2660
        %v2662 = vmul.f32 %v2487, %v2661
        %v2663 = vmul.f32 %v2571, %v2662
        %v2664 = vsub.f32 %v2488, %v2663
        %v2666 = vsel %vm1658, %v2662, 0
        %2668 = vmatprep.subr.mxu0 %v2480
        %2669 = vmatpush1.msra.mxu0 %v2479
        %2670 = vmatprep.subr.mxu0 %v2482
        %2671 = vmatpush1.msra.mxu0 %v2481
        %2672 = vmatprep.subr.mxu0 %v2484
        %2673 = vmatpush1.msra.mxu0 %v2483
        %2674 = vmatprep.subr.mxu0 %v2486
        %2675 = vmatpush1.msra.mxu0 %v2485
        %2676 = vmatprep.subr.mxu0 0.0
        %2677 = vmatpush1.msra.mxu0 0.0
        %2678 = vmatprep.subr.mxu0 0.0
        %2679 = vmatpush1.msra.mxu0 0.0
        %2680 = vmatprep.subr.mxu0 0.0
        %2681 = vmatpush1.msra.mxu0 0.0
        %2682 = vmatprep.subr.mxu0 0.0
        %2683 = vmatpush1.msra.mxu0 0.0
        %2684 = vmatprep.subr.mxu0 0.0
        %2685 = vmatpush1.msra.mxu0 0.0
        %2686 = vmatprep.subr.mxu0 0.0
        %2687 = vmatpush1.msra.mxu0 0.0
        %2688 = vmatprep.subr.mxu0 0.0
        %2689 = vmatpush1.msra.mxu0 0.0
        %2690 = vmatprep.subr.mxu0 0.0
        %2691 = vmatpush1.msra.mxu0 0.0
        %2692 = vmatprep.subr.mxu0 0.0
        %2693 = vmatpush1.msra.mxu0 0.0
        %2694 = vmatprep.subr.mxu0 0.0
        %2695 = vmatpush1.msra.mxu0 0.0
        %2696 = vmatprep.subr.mxu0 0.0
        %2697 = vmatpush1.msra.mxu0 0.0
        %2698 = vmatprep.subr.mxu0 0.0
        %2699 = vmatpush1.msra.mxu0 0.0
        %2700 = vmatprep.subr.mxu0 0.0
        %2701 = vmatpush1.msra.mxu0 0.0
        %2702 = vmatprep.subr.mxu0 0.0
        %2703 = vmatpush1.msra.mxu0 0.0
        %2704 = vmatprep.subr.mxu0 0.0
        %2705 = vmatpush1.msra.mxu0 0.0
        %2706 = vmatprep.subr.mxu0 0.0
        %2707 = vmatpush1.msra.mxu0 0.0
        %2708 = vmatprep.subr.mxu0 0.0
        %2709 = vmatpush1.msra.mxu0 0.0
        %2710 = vmatprep.subr.mxu0 0.0
        %2711 = vmatpush1.msra.mxu0 0.0
        %2712 = vmatprep.subr.mxu0 0.0
        %2713 = vmatpush1.msra.mxu0 0.0
        %2714 = vmatprep.subr.mxu0 0.0
        %2715 = vmatpush1.msra.mxu0 0.0
        %2716 = vmatprep.subr.mxu0 0.0
        %2717 = vmatpush1.msra.mxu0 0.0
        %2718 = vmatprep.subr.mxu0 0.0
        %2719 = vmatpush1.msra.mxu0 0.0
        %2720 = vmatprep.subr.mxu0 0.0
        %2721 = vmatpush1.msra.mxu0 0.0
        %2722 = vmatprep.subr.mxu0 0.0
        %2723 = vmatpush1.msra.mxu0 0.0
        %2724 = vmatprep.subr.mxu0 0.0
        %2725 = vmatpush1.msra.mxu0 0.0
        %2726 = vmatprep.subr.mxu0 0.0
        %2727 = vmatpush1.msra.mxu0 0.0
        %2728 = vmatprep.subr.mxu0 0.0
        %2729 = vmatpush1.msra.mxu0 0.0
        %2730 = vmatprep.subr.mxu0 0.0
        %2731 = vmatpush1.msra.mxu0 0.0
        %2732 = vmatprep.mubr.f32.mxu0 0.0
        %2733 = vmatmul.mubr.f32.gmra.mrb[0].mxu0 %v2666
        %v2734 = vpop.f32.mrb[0].mxu0
        %v2735 = vadd.f32 0.0, %v2734
        %v2736 = vpop.f32.mrb[0].mxu0
        %v2737 = vadd.f32 0.0, %v2736
        %2738 = vdwg.mxu0
        %v2739 = vlaneseq
        %v2740 = vshrl.u32 %v2739, 7
        %v2741 = vsub.s32 0, %v2740
        %v2742 = vrot.slane %v2735, %v2741
        %v2743 = vlaneseq
        %v2744 = vshrl.u32 %v2743, 7
        %v2745 = vsub.s32 0, %v2744
        %v2746 = vrot.slane %v2737, %v2745
        %v2747 = vmul.f32 %v2445, %v2742
        %v2748 = vmul.f32 %v2446, %v2746
        %v2750 = vsel %vm1658, %v2664, 0
        %2752 = vmatprep.subr.mxu0 %v2480
        %2753 = vmatpush1.msra.mxu0 %v2479
        %2754 = vmatprep.subr.mxu0 %v2482
        %2755 = vmatpush1.msra.mxu0 %v2481
        %2756 = vmatprep.subr.mxu0 %v2484
        %2757 = vmatpush1.msra.mxu0 %v2483
        %2758 = vmatprep.subr.mxu0 %v2486
        %2759 = vmatpush1.msra.mxu0 %v2485
        %2760 = vmatprep.subr.mxu0 0.0
        %2761 = vmatpush1.msra.mxu0 0.0
        %2762 = vmatprep.subr.mxu0 0.0
        %2763 = vmatpush1.msra.mxu0 0.0
        %2764 = vmatprep.subr.mxu0 0.0
        %2765 = vmatpush1.msra.mxu0 0.0
        %2766 = vmatprep.subr.mxu0 0.0
        %2767 = vmatpush1.msra.mxu0 0.0
        %2768 = vmatprep.subr.mxu0 0.0
        %2769 = vmatpush1.msra.mxu0 0.0
        %2770 = vmatprep.subr.mxu0 0.0
        %2771 = vmatpush1.msra.mxu0 0.0
        %2772 = vmatprep.subr.mxu0 0.0
        %2773 = vmatpush1.msra.mxu0 0.0
        %2774 = vmatprep.subr.mxu0 0.0
        %2775 = vmatpush1.msra.mxu0 0.0
        %2776 = vmatprep.subr.mxu0 0.0
        %2777 = vmatpush1.msra.mxu0 0.0
        %2778 = vmatprep.subr.mxu0 0.0
        %2779 = vmatpush1.msra.mxu0 0.0
        %2780 = vmatprep.subr.mxu0 0.0
        %2781 = vmatpush1.msra.mxu0 0.0
        %2782 = vmatprep.subr.mxu0 0.0
        %2783 = vmatpush1.msra.mxu0 0.0
        %2784 = vmatprep.subr.mxu0 0.0
        %2785 = vmatpush1.msra.mxu0 0.0
        %2786 = vmatprep.subr.mxu0 0.0
        %2787 = vmatpush1.msra.mxu0 0.0
        %2788 = vmatprep.subr.mxu0 0.0
        %2789 = vmatpush1.msra.mxu0 0.0
        %2790 = vmatprep.subr.mxu0 0.0
        %2791 = vmatpush1.msra.mxu0 0.0
        %2792 = vmatprep.subr.mxu0 0.0
        %2793 = vmatpush1.msra.mxu0 0.0
        %2794 = vmatprep.subr.mxu0 0.0
        %2795 = vmatpush1.msra.mxu0 0.0
        %2796 = vmatprep.subr.mxu0 0.0
        %2797 = vmatpush1.msra.mxu0 0.0
        %2798 = vmatprep.subr.mxu0 0.0
        %2799 = vmatpush1.msra.mxu0 0.0
        %2800 = vmatprep.subr.mxu0 0.0
        %2801 = vmatpush1.msra.mxu0 0.0
        %2802 = vmatprep.subr.mxu0 0.0
        %2803 = vmatpush1.msra.mxu0 0.0
        %2804 = vmatprep.subr.mxu0 0.0
        %2805 = vmatpush1.msra.mxu0 0.0
        %2806 = vmatprep.subr.mxu0 0.0
        %2807 = vmatpush1.msra.mxu0 0.0
        %2808 = vmatprep.subr.mxu0 0.0
        %2809 = vmatpush1.msra.mxu0 0.0
        %2810 = vmatprep.subr.mxu0 0.0
        %2811 = vmatpush1.msra.mxu0 0.0
        %2812 = vmatprep.subr.mxu0 0.0
        %2813 = vmatpush1.msra.mxu0 0.0
        %2814 = vmatprep.subr.mxu0 0.0
        %2815 = vmatpush1.msra.mxu0 0.0
        %2816 = vmatprep.mubr.f32.mxu0 0.0
        %2817 = vmatmul.mubr.f32.gmra.mrb[0].mxu0 %v2750
        %v2818 = vpop.f32.mrb[0].mxu0
        %v2819 = vadd.f32 0.0, %v2818
        %v2820 = vpop.f32.mrb[0].mxu0
        %v2821 = vadd.f32 0.0, %v2820
        %2822 = vdwg.mxu0
        %v2823 = vlaneseq
        %v2824 = vshrl.u32 %v2823, 7
        %v2825 = vsub.s32 0, %v2824
        %v2826 = vrot.slane %v2819, %v2825
        %v2827 = vlaneseq
        %v2828 = vshrl.u32 %v2827, 7
        %v2829 = vsub.s32 0, %v2828
        %v2830 = vrot.slane %v2821, %v2829
        %v2831 = vadd.f32 %v2747, %v2826
        %v2832 = vadd.f32 %v2748, %v2830
        %v2833 = vld [vmem:[#allocation21] sm:$0xf]
        %v2834 = vld [vmem:[%s35] sm:$0xff]
        %v2835 = vld [vmem:[%s35 + $0x8] sm:$0xff]
        %v2836 = vld [vmem:[%s35 + $0x10] sm:$0xff]
        %v2837 = vld [vmem:[%s35 + $0x18] sm:$0xff]
        %v2838 = vld [vmem:[%s35 + $0x20] sm:$0xff]
        %v2839 = vld [vmem:[%s35 + $0x28] sm:$0xff]
        %v2840 = vld [vmem:[%s35 + $0x30] sm:$0xff]
        %v2841 = vld [vmem:[%s35 + $0x38] sm:$0xff]
        %v2842 = vld [vmem:[%s35 + $0x40] sm:$0xff]
        %v2843 = vld [vmem:[%s35 + $0x48] sm:$0xff]
        %v2844 = vld [vmem:[%s35 + $0x50] sm:$0xff]
        %v2845 = vld [vmem:[%s35 + $0x58] sm:$0xff]
        %v2846 = vld [vmem:[%s35 + $0x60] sm:$0xff]
        %v2847 = vld [vmem:[%s35 + $0x68] sm:$0xff]
        %v2848 = vld [vmem:[%s35 + $0x70] sm:$0xff]
        %v2849 = vld [vmem:[%s35 + $0x78] sm:$0xff]
        %v2850 = vld [vmem:[%s35 + $0x80] sm:$0xff]
        %v2851 = vld [vmem:[%s35 + $0x88] sm:$0xff]
        %v2852 = vld [vmem:[%s35 + $0x90] sm:$0xff]
        %v2853 = vld [vmem:[%s35 + $0x98] sm:$0xff]
        %v2854 = vld [vmem:[%s35 + $0xa0] sm:$0xff]
        %v2855 = vld [vmem:[%s35 + $0xa8] sm:$0xff]
        %v2856 = vld [vmem:[%s35 + $0xb0] sm:$0xff]
        %v2857 = vld [vmem:[%s35 + $0xb8] sm:$0xff]
        %v2858 = vld [vmem:[%s35 + $0xc0] sm:$0xff]
        %v2859 = vld [vmem:[%s35 + $0xc8] sm:$0xff]
        %v2860 = vld [vmem:[%s35 + $0xd0] sm:$0xff]
        %v2861 = vld [vmem:[%s35 + $0xd8] sm:$0xff]
        %v2862 = vld [vmem:[%s35 + $0xe0] sm:$0xff]
        %v2863 = vld [vmem:[%s35 + $0xe8] sm:$0xff]
        %v2864 = vld [vmem:[%s35 + $0xf0] sm:$0xff]
        %v2865 = vld [vmem:[%s35 + $0xf8] sm:$0xff]
        %v2866 = vld [vmem:[%s35 + $0x100] sm:$0xff]
        %v2867 = vld [vmem:[%s35 + $0x108] sm:$0xff]
        %v2868 = vld [vmem:[%s35 + $0x110] sm:$0xff]
        %v2869 = vld [vmem:[%s35 + $0x118] sm:$0xff]
        %v2870 = vld [vmem:[%s35 + $0x120] sm:$0xff]
        %v2871 = vld [vmem:[%s35 + $0x128] sm:$0xff]
        %v2872 = vld [vmem:[%s35 + $0x130] sm:$0xff]
        %v2873 = vld [vmem:[%s35 + $0x138] sm:$0xff]
        %v2874 = vld [vmem:[%s35 + $0x140] sm:$0xff]
        %v2875 = vld [vmem:[%s35 + $0x148] sm:$0xff]
        %v2876 = vld [vmem:[%s35 + $0x150] sm:$0xff]
        %v2877 = vld [vmem:[%s35 + $0x158] sm:$0xff]
        %v2878 = vld [vmem:[%s35 + $0x160] sm:$0xff]
        %v2879 = vld [vmem:[%s35 + $0x168] sm:$0xff]
        %v2880 = vld [vmem:[%s35 + $0x170] sm:$0xff]
        %v2881 = vld [vmem:[%s35 + $0x178] sm:$0xff]
        %v2882 = vld [vmem:[%s35 + $0x180] sm:$0xff]
        %v2883 = vld [vmem:[%s35 + $0x188] sm:$0xff]
        %v2884 = vld [vmem:[%s35 + $0x190] sm:$0xff]
        %v2885 = vld [vmem:[%s35 + $0x198] sm:$0xff]
        %v2886 = vld [vmem:[%s35 + $0x1a0] sm:$0xff]
        %v2887 = vld [vmem:[%s35 + $0x1a8] sm:$0xff]
        %v2888 = vld [vmem:[%s35 + $0x1b0] sm:$0xff]
        %v2889 = vld [vmem:[%s35 + $0x1b8] sm:$0xff]
        %v2890 = vld [vmem:[%s35 + $0x1c0] sm:$0xff]
        %v2891 = vld [vmem:[%s35 + $0x1c8] sm:$0xff]
        %v2892 = vld [vmem:[%s35 + $0x1d0] sm:$0xff]
        %v2893 = vld [vmem:[%s35 + $0x1d8] sm:$0xff]
        %v2894 = vld [vmem:[%s35 + $0x1e0] sm:$0xff]
        %v2895 = vld [vmem:[%s35 + $0x1e8] sm:$0xff]
        %v2896 = vld [vmem:[%s35 + $0x1f0] sm:$0xff]
        %v2897 = vld [vmem:[%s35 + $0x1f8] sm:$0xff]
        %v2898 = vld [vmem:[#allocation22] sm:$0xff]
        %vm2899 = vcmask 64512
        %v2901 = vsel %vm2899, %v2833, 0
        %2903 = vmatprep.subr.mxu0 %v2832
        %2904 = vmatpush1.msra.mxu0 %v2831
        %2905 = vmatprep.subr.mxu0 0.0
        %2906 = vmatpush1.msra.mxu0 0.0
        %2907 = vmatprep.subr.mxu0 0.0
        %2908 = vmatpush1.msra.mxu0 0.0
        %2909 = vmatprep.subr.mxu0 0.0
        %2910 = vmatpush1.msra.mxu0 0.0
        %2911 = vmatprep.subr.mxu0 0.0
        %2912 = vmatpush1.msra.mxu0 0.0
        %2913 = vmatprep.subr.mxu0 0.0
        %2914 = vmatpush1.msra.mxu0 0.0
        %2915 = vmatprep.subr.mxu0 0.0
        %2916 = vmatpush1.msra.mxu0 0.0
        %2917 = vmatprep.subr.mxu0 0.0
        %2918 = vmatpush1.msra.mxu0 0.0
        %2919 = vmatprep.subr.mxu0 0.0
        %2920 = vmatpush1.msra.mxu0 0.0
        %2921 = vmatprep.subr.mxu0 0.0
        %2922 = vmatpush1.msra.mxu0 0.0
        %2923 = vmatprep.subr.mxu0 0.0
        %2924 = vmatpush1.msra.mxu0 0.0
        %2925 = vmatprep.subr.mxu0 0.0
        %2926 = vmatpush1.msra.mxu0 0.0
        %2927 = vmatprep.subr.mxu0 0.0
        %2928 = vmatpush1.msra.mxu0 0.0
        %2929 = vmatprep.subr.mxu0 0.0
        %2930 = vmatpush1.msra.mxu0 0.0
        %2931 = vmatprep.subr.mxu0 0.0
        %2932 = vmatpush1.msra.mxu0 0.0
        %2933 = vmatprep.subr.mxu0 0.0
        %2934 = vmatpush1.msra.mxu0 0.0
        %2935 = vmatprep.subr.mxu0 0.0
        %2936 = vmatpush1.msra.mxu0 0.0
        %2937 = vmatprep.subr.mxu0 0.0
        %2938 = vmatpush1.msra.mxu0 0.0
        %2939 = vmatprep.subr.mxu0 0.0
        %2940 = vmatpush1.msra.mxu0 0.0
        %2941 = vmatprep.subr.mxu0 0.0
        %2942 = vmatpush1.msra.mxu0 0.0
        %2943 = vmatprep.subr.mxu0 0.0
        %2944 = vmatpush1.msra.mxu0 0.0
        %2945 = vmatprep.subr.mxu0 0.0
        %2946 = vmatpush1.msra.mxu0 0.0
        %2947 = vmatprep.subr.mxu0 0.0
        %2948 = vmatpush1.msra.mxu0 0.0
        %2949 = vmatprep.subr.mxu0 0.0
        %2950 = vmatpush1.msra.mxu0 0.0
        %2951 = vmatprep.subr.mxu0 0.0
        %2952 = vmatpush1.msra.mxu0 0.0
        %2953 = vmatprep.subr.mxu0 0.0
        %2954 = vmatpush1.msra.mxu0 0.0
        %2955 = vmatprep.subr.mxu0 0.0
        %2956 = vmatpush1.msra.mxu0 0.0
        %2957 = vmatprep.subr.mxu0 0.0
        %2958 = vmatpush1.msra.mxu0 0.0
        %2959 = vmatprep.subr.mxu0 0.0
        %2960 = vmatpush1.msra.mxu0 0.0
        %2961 = vmatprep.subr.mxu0 0.0
        %2962 = vmatpush1.msra.mxu0 0.0
        %2963 = vmatprep.subr.mxu0 0.0
        %2964 = vmatpush1.msra.mxu0 0.0
        %2965 = vmatprep.subr.mxu0 0.0
        %2966 = vmatpush1.msra.mxu0 0.0
        %2967 = vmatprep.mubr.f32.mxu0 0.0
        %2968 = vmatmul.mubr.f32.gmra.mrb[0].mxu0 %v2901
        %v2969 = vpop.f32.mrb[0].mxu0
        %v2970 = vadd.f32 0.0, %v2969
        %v2971 = vpop.f32.mrb[0].mxu0
        %v2972 = vadd.f32 0.0, %v2971
        %2973 = vdwg.mxu0
        %v2975 = vcombine.high %v2898, %v2898
        %2977 = vmatprep.subr.mxu0 %v2835
        %2978 = vmatpush1.msra.mxu0 %v2834
        %2979 = vmatprep.subr.mxu0 %v2837
        %2980 = vmatpush1.msra.mxu0 %v2836
        %2981 = vmatprep.subr.mxu0 %v2839
        %2982 = vmatpush1.msra.mxu0 %v2838
        %2983 = vmatprep.subr.mxu0 %v2841
        %2984 = vmatpush1.msra.mxu0 %v2840
        %2985 = vmatprep.subr.mxu0 %v2843
        %2986 = vmatpush1.msra.mxu0 %v2842
        %2987 = vmatprep.subr.mxu0 %v2845
        %2988 = vmatpush1.msra.mxu0 %v2844
        %2989 = vmatprep.subr.mxu0 %v2847
        %2990 = vmatpush1.msra.mxu0 %v2846
        %2991 = vmatprep.subr.mxu0 %v2849
        %2992 = vmatpush1.msra.mxu0 %v2848
        %2993 = vmatprep.subr.mxu0 %v2851
        %2994 = vmatpush1.msra.mxu0 %v2850
        %2995 = vmatprep.subr.mxu0 %v2853
        %2996 = vmatpush1.msra.mxu0 %v2852
        %2997 = vmatprep.subr.mxu0 %v2855
        %2998 = vmatpush1.msra.mxu0 %v2854
        %2999 = vmatprep.subr.mxu0 %v2857
        %3000 = vmatpush1.msra.mxu0 %v2856
        %3001 = vmatprep.subr.mxu0 %v2859
        %3002 = vmatpush1.msra.mxu0 %v2858
        %3003 = vmatprep.subr.mxu0 %v2861
        %3004 = vmatpush1.msra.mxu0 %v2860
        %3005 = vmatprep.subr.mxu0 %v2863
        %3006 = vmatpush1.msra.mxu0 %v2862
        %3007 = vmatprep.subr.mxu0 %v2865
        %3008 = vmatpush1.msra.mxu0 %v2864
        %3009 = vmatprep.subr.mxu0 %v2867
        %3010 = vmatpush1.msra.mxu0 %v2866
        %3011 = vmatprep.subr.mxu0 %v2869
        %3012 = vmatpush1.msra.mxu0 %v2868
        %3013 = vmatprep.subr.mxu0 %v2871
        %3014 = vmatpush1.msra.mxu0 %v2870
        %3015 = vmatprep.subr.mxu0 %v2873
        %3016 = vmatpush1.msra.mxu0 %v2872
        %3017 = vmatprep.subr.mxu0 %v2875
        %3018 = vmatpush1.msra.mxu0 %v2874
        %3019 = vmatprep.subr.mxu0 %v2877
        %3020 = vmatpush1.msra.mxu0 %v2876
        %3021 = vmatprep.subr.mxu0 %v2879
        %3022 = vmatpush1.msra.mxu0 %v2878
        %3023 = vmatprep.subr.mxu0 %v2881
        %3024 = vmatpush1.msra.mxu0 %v2880
        %3025 = vmatprep.subr.mxu0 %v2883
        %3026 = vmatpush1.msra.mxu0 %v2882
        %3027 = vmatprep.subr.mxu0 %v2885
        %3028 = vmatpush1.msra.mxu0 %v2884
        %3029 = vmatprep.subr.mxu0 %v2887
        %3030 = vmatpush1.msra.mxu0 %v2886
        %3031 = vmatprep.subr.mxu0 %v2889
        %3032 = vmatpush1.msra.mxu0 %v2888
        %3033 = vmatprep.subr.mxu0 %v2891
        %3034 = vmatpush1.msra.mxu0 %v2890
        %3035 = vmatprep.subr.mxu0 %v2893
        %3036 = vmatpush1.msra.mxu0 %v2892
        %3037 = vmatprep.subr.mxu0 %v2895
        %3038 = vmatpush1.msra.mxu0 %v2894
        %3039 = vmatprep.subr.mxu0 %v2897
        %3040 = vmatpush1.msra.mxu0 %v2896
        %3041 = vmatprep.mubr.f32.mxu0 %v2972
        %3042 = vmatmul.mubr.f32.gmra.mrb[0].mxu0 %v2970
        %v3043 = vpop.f32.mrb[0].mxu0
        %v3044 = vadd.f32 %v2898, %v3043
        %v3045 = vpop.f32.mrb[0].mxu0
        %v3046 = vadd.f32 %v2975, %v3045
        %3047 = vdwg.mxu0
        %vm3048 = vcmp.ge.f32.partialorder %v3044, 0.0
        %vm3049 = vcmp.ge.f32.partialorder %v3046, 0.0
        %v3050 = vmul.f32 %v3044, 0.2
        %v3051 = vmul.f32 %v3046, 0.2
        %v3052 = vsel %vm3048, %v3044, %v3050
        %v3053 = vsel %vm3049, %v3046, %v3051
        %v3054 = vld [vmem:[%s39] sm:$0xff]
        %v3055 = vld [vmem:[%s39 + $0x8] sm:$0xff]
        %v3056 = vld [vmem:[%s39 + $0x10] sm:$0xff]
        %v3057 = vld [vmem:[%s39 + $0x18] sm:$0xff]
        %v3058 = vld [vmem:[%s39 + $0x20] sm:$0xff]
        %v3059 = vld [vmem:[%s39 + $0x28] sm:$0xff]
        %v3060 = vld [vmem:[%s39 + $0x30] sm:$0xff]
        %v3061 = vld [vmem:[%s39 + $0x38] sm:$0xff]
        %v3062 = vld [vmem:[%s39 + $0x40] sm:$0xff]
        %v3063 = vld [vmem:[%s39 + $0x48] sm:$0xff]
        %v3064 = vld [vmem:[%s39 + $0x50] sm:$0xff]
        %v3065 = vld [vmem:[%s39 + $0x58] sm:$0xff]
        %v3066 = vld [vmem:[%s39 + $0x60] sm:$0xff]
        %v3067 = vld [vmem:[%s39 + $0x68] sm:$0xff]
        %v3068 = vld [vmem:[%s39 + $0x70] sm:$0xff]
        %v3069 = vld [vmem:[%s39 + $0x78] sm:$0xff]
        %v3070 = vld [vmem:[%s39 + $0x80] sm:$0xff]
        %v3071 = vld [vmem:[%s39 + $0x88] sm:$0xff]
        %v3072 = vld [vmem:[%s39 + $0x90] sm:$0xff]
        %v3073 = vld [vmem:[%s39 + $0x98] sm:$0xff]
        %v3074 = vld [vmem:[%s39 + $0xa0] sm:$0xff]
        %v3075 = vld [vmem:[%s39 + $0xa8] sm:$0xff]
        %v3076 = vld [vmem:[%s39 + $0xb0] sm:$0xff]
        %v3077 = vld [vmem:[%s39 + $0xb8] sm:$0xff]
        %v3078 = vld [vmem:[%s39 + $0xc0] sm:$0xff]
        %v3079 = vld [vmem:[%s39 + $0xc8] sm:$0xff]
        %v3080 = vld [vmem:[%s39 + $0xd0] sm:$0xff]
        %v3081 = vld [vmem:[%s39 + $0xd8] sm:$0xff]
        %v3082 = vld [vmem:[%s39 + $0xe0] sm:$0xff]
        %v3083 = vld [vmem:[%s39 + $0xe8] sm:$0xff]
        %v3084 = vld [vmem:[%s39 + $0xf0] sm:$0xff]
        %v3085 = vld [vmem:[%s39 + $0xf8] sm:$0xff]
        %v3086 = vld [vmem:[#allocation24] sm:$0xff]
        %v3087 = vld [vmem:[#allocation24 + $0x8] sm:$0xff]
        %v3088 = vld [vmem:[#allocation24 + $0x10] sm:$0xff]
        %v3089 = vld [vmem:[#allocation24 + $0x18] sm:$0xff]
        %v3090 = vld [vmem:[#allocation24 + $0x20] sm:$0xff]
        %v3091 = vld [vmem:[#allocation24 + $0x28] sm:$0xff]
        %v3092 = vld [vmem:[#allocation24 + $0x30] sm:$0xff]
        %v3093 = vld [vmem:[#allocation24 + $0x38] sm:$0xff]
        %v3094 = vld [vmem:[#allocation24 + $0x40] sm:$0xff]
        %v3095 = vld [vmem:[#allocation24 + $0x48] sm:$0xff]
        %v3096 = vld [vmem:[#allocation24 + $0x50] sm:$0xff]
        %v3097 = vld [vmem:[#allocation24 + $0x58] sm:$0xff]
        %v3098 = vld [vmem:[#allocation24 + $0x60] sm:$0xff]
        %v3099 = vld [vmem:[#allocation24 + $0x68] sm:$0xff]
        %v3100 = vld [vmem:[#allocation24 + $0x70] sm:$0xff]
        %v3101 = vld [vmem:[#allocation24 + $0x78] sm:$0xff]
        %v3102 = vld [vmem:[#allocation25] sm:$0x1]
        %v3103 = vld [vmem:[#allocation27] sm:$0x1]
        %vm3104 = vcmask 1043456
        %v3105 = vsel %vm3104, %v3052, 0.0
        %v3106 = vrot.slane %v3105, 4
        %v3107 = vadd.f32 %v3105, %v3106
        %v3108 = vrot.slane %v3107, 2
        %v3109 = vadd.f32 %v3107, %v3108
        %v3110 = vrot.slane %v3109, 1
        %v3111 = vadd.f32 %v3109, %v3110
        %v3112 = vsel %vm3104, %v3053, 0.0
        %v3113 = vrot.slane %v3112, 4
        %v3114 = vadd.f32 %v3112, %v3113
        %v3115 = vrot.slane %v3114, 2
        %v3116 = vadd.f32 %v3114, %v3115
        %v3117 = vrot.slane %v3116, 1
        %v3118 = vadd.f32 %v3116, %v3117
        %3119 = vmatprep.subr.mxu0 0.0
        %3120 = vmatpush1.msra.mxu0 %v3054
        %3121 = vmatprep.subr.mxu0 0.0
        %3122 = vmatpush1.msra.mxu0 %v3055
        %3123 = vmatprep.subr.mxu0 0.0
        %3124 = vmatpush1.msra.mxu0 %v3056
        %3125 = vmatprep.subr.mxu0 0.0
        %3126 = vmatpush1.msra.mxu0 %v3057
        %3127 = vmatprep.subr.mxu0 0.0
        %3128 = vmatpush1.msra.mxu0 %v3058
        %3129 = vmatprep.subr.mxu0 0.0
        %3130 = vmatpush1.msra.mxu0 %v3059
        %3131 = vmatprep.subr.mxu0 0.0
        %3132 = vmatpush1.msra.mxu0 %v3060
        %3133 = vmatprep.subr.mxu0 0.0
        %3134 = vmatpush1.msra.mxu0 %v3061
        %3135 = vmatprep.subr.mxu0 0.0
        %3136 = vmatpush1.msra.mxu0 %v3062
        %3137 = vmatprep.subr.mxu0 0.0
        %3138 = vmatpush1.msra.mxu0 %v3063
        %3139 = vmatprep.subr.mxu0 0.0
        %3140 = vmatpush1.msra.mxu0 %v3064
        %3141 = vmatprep.subr.mxu0 0.0
        %3142 = vmatpush1.msra.mxu0 %v3065
        %3143 = vmatprep.subr.mxu0 0.0
        %3144 = vmatpush1.msra.mxu0 %v3066
        %3145 = vmatprep.subr.mxu0 0.0
        %3146 = vmatpush1.msra.mxu0 %v3067
        %3147 = vmatprep.subr.mxu0 0.0
        %3148 = vmatpush1.msra.mxu0 %v3068
        %3149 = vmatprep.subr.mxu0 0.0
        %3150 = vmatpush1.msra.mxu0 %v3069
        %3151 = vmatprep.subr.mxu0 0.0
        %3152 = vmatpush1.msra.mxu0 %v3070
        %3153 = vmatprep.subr.mxu0 0.0
        %3154 = vmatpush1.msra.mxu0 %v3071
        %3155 = vmatprep.subr.mxu0 0.0
        %3156 = vmatpush1.msra.mxu0 %v3072
        %3157 = vmatprep.subr.mxu0 0.0
        %3158 = vmatpush1.msra.mxu0 %v3073
        %3159 = vmatprep.subr.mxu0 0.0
        %3160 = vmatpush1.msra.mxu0 %v3074
        %3161 = vmatprep.subr.mxu0 0.0
        %3162 = vmatpush1.msra.mxu0 %v3075
        %3163 = vmatprep.subr.mxu0 0.0
        %3164 = vmatpush1.msra.mxu0 %v3076
        %3165 = vmatprep.subr.mxu0 0.0
        %3166 = vmatpush1.msra.mxu0 %v3077
        %3167 = vmatprep.subr.mxu0 0.0
        %3168 = vmatpush1.msra.mxu0 %v3078
        %3169 = vmatprep.subr.mxu0 0.0
        %3170 = vmatpush1.msra.mxu0 %v3079
        %3171 = vmatprep.subr.mxu0 0.0
        %3172 = vmatpush1.msra.mxu0 %v3080
        %3173 = vmatprep.subr.mxu0 0.0
        %3174 = vmatpush1.msra.mxu0 %v3081
        %3175 = vmatprep.subr.mxu0 0.0
        %3176 = vmatpush1.msra.mxu0 %v3082
        %3177 = vmatprep.subr.mxu0 0.0
        %3178 = vmatpush1.msra.mxu0 %v3083
        %3179 = vmatprep.subr.mxu0 0.0
        %3180 = vmatpush1.msra.mxu0 %v3084
        %3181 = vmatprep.subr.mxu0 0.0
        %3182 = vmatpush1.msra.mxu0 %v3085
        %3183 = vmatprep.mubr.f32.mxu0 %v3118
        %3184 = vmatmul.mubr.f32.gmra.mrb[0].mxu0 %v3111
        %v3185 = vpop.f32.mrb[0].mxu0
        %v3186 = vadd.f32 0.0, %v3185
        %v3187 = vpop.f32.mrb[0].mxu0
        %3188 = vdwg.mxu0
        %v3189 = vmul.f32 %v3186, 0.0625
        %v3190 = vmul.f32 %v3052, %v3052
        %v3191 = vmul.f32 %v3053, %v3053
        %v3192 = vsel %vm3104, %v3190, 0.0
        %v3193 = vrot.slane %v3192, 4
        %v3194 = vadd.f32 %v3192, %v3193
        %v3195 = vrot.slane %v3194, 2
        %v3196 = vadd.f32 %v3194, %v3195
        %v3197 = vrot.slane %v3196, 1
        %v3198 = vadd.f32 %v3196, %v3197
        %v3199 = vsel %vm3104, %v3191, 0.0
        %v3200 = vrot.slane %v3199, 4
        %v3201 = vadd.f32 %v3199, %v3200
        %v3202 = vrot.slane %v3201, 2
        %v3203 = vadd.f32 %v3201, %v3202
        %v3204 = vrot.slane %v3203, 1
        %v3205 = vadd.f32 %v3203, %v3204
        %3206 = vmatprep.subr.mxu0 0.0
        %3207 = vmatpush1.msra.mxu0 %v3054
        %3208 = vmatprep.subr.mxu0 0.0
        %3209 = vmatpush1.msra.mxu0 %v3055
        %3210 = vmatprep.subr.mxu0 0.0
        %3211 = vmatpush1.msra.mxu0 %v3056
        %3212 = vmatprep.subr.mxu0 0.0
        %3213 = vmatpush1.msra.mxu0 %v3057
        %3214 = vmatprep.subr.mxu0 0.0
        %3215 = vmatpush1.msra.mxu0 %v3058
        %3216 = vmatprep.subr.mxu0 0.0
        %3217 = vmatpush1.msra.mxu0 %v3059
        %3218 = vmatprep.subr.mxu0 0.0
        %3219 = vmatpush1.msra.mxu0 %v3060
        %3220 = vmatprep.subr.mxu0 0.0
        %3221 = vmatpush1.msra.mxu0 %v3061
        %3222 = vmatprep.subr.mxu0 0.0
        %3223 = vmatpush1.msra.mxu0 %v3062
        %3224 = vmatprep.subr.mxu0 0.0
        %3225 = vmatpush1.msra.mxu0 %v3063
        %3226 = vmatprep.subr.mxu0 0.0
        %3227 = vmatpush1.msra.mxu0 %v3064
        %3228 = vmatprep.subr.mxu0 0.0
        %3229 = vmatpush1.msra.mxu0 %v3065
        %3230 = vmatprep.subr.mxu0 0.0
        %3231 = vmatpush1.msra.mxu0 %v3066
        %3232 = vmatprep.subr.mxu0 0.0
        %3233 = vmatpush1.msra.mxu0 %v3067
        %3234 = vmatprep.subr.mxu0 0.0
        %3235 = vmatpush1.msra.mxu0 %v3068
        %3236 = vmatprep.subr.mxu0 0.0
        %3237 = vmatpush1.msra.mxu0 %v3069
        %3238 = vmatprep.subr.mxu0 0.0
        %3239 = vmatpush1.msra.mxu0 %v3070
        %3240 = vmatprep.subr.mxu0 0.0
        %3241 = vmatpush1.msra.mxu0 %v3071
        %3242 = vmatprep.subr.mxu0 0.0
        %3243 = vmatpush1.msra.mxu0 %v3072
        %3244 = vmatprep.subr.mxu0 0.0
        %3245 = vmatpush1.msra.mxu0 %v3073
        %3246 = vmatprep.subr.mxu0 0.0
        %3247 = vmatpush1.msra.mxu0 %v3074
        %3248 = vmatprep.subr.mxu0 0.0
        %3249 = vmatpush1.msra.mxu0 %v3075
        %3250 = vmatprep.subr.mxu0 0.0
        %3251 = vmatpush1.msra.mxu0 %v3076
        %3252 = vmatprep.subr.mxu0 0.0
        %3253 = vmatpush1.msra.mxu0 %v3077
        %3254 = vmatprep.subr.mxu0 0.0
        %3255 = vmatpush1.msra.mxu0 %v3078
        %3256 = vmatprep.subr.mxu0 0.0
        %3257 = vmatpush1.msra.mxu0 %v3079
        %3258 = vmatprep.subr.mxu0 0.0
        %3259 = vmatpush1.msra.mxu0 %v3080
        %3260 = vmatprep.subr.mxu0 0.0
        %3261 = vmatpush1.msra.mxu0 %v3081
        %3262 = vmatprep.subr.mxu0 0.0
        %3263 = vmatpush1.msra.mxu0 %v3082
        %3264 = vmatprep.subr.mxu0 0.0
        %3265 = vmatpush1.msra.mxu0 %v3083
        %3266 = vmatprep.subr.mxu0 0.0
        %3267 = vmatpush1.msra.mxu0 %v3084
        %3268 = vmatprep.subr.mxu0 0.0
        %3269 = vmatpush1.msra.mxu0 %v3085
        %3270 = vmatprep.mubr.f32.mxu0 %v3205
        %3271 = vmatmul.mubr.f32.gmra.mrb[0].mxu0 %v3198
        %v3272 = vpop.f32.mrb[0].mxu0
        %v3273 = vadd.f32 0.0, %v3272
        %v3274 = vpop.f32.mrb[0].mxu0
        %3275 = vdwg.mxu0
        %v3276 = vmul.f32 %v3273, 0.0625
        %v3277 = vmul.f32 %v3189, %v3189
        %v3278 = vsub.f32 %v3276, %v3277
        %v3279 = vmax.f32 %v3278, 0.0
        %v3280 = vadd.f32 %v3279, 1e-05
        %v3281 = vrsqrt.pop %v3280
        %v3282 = vmul.f32 %v3102, %v3281
        %v3283 = vmul.f32 %v3189, %v3282
        %v3284 = vsub.f32 %v3103, %v3283
        %vm3285 = vcmask 523264
        %v3287 = vsel %vm3285, %v3282, 0
        %3289 = vmatprep.subr.mxu0 %v3087
        %3290 = vmatpush1.msra.mxu0 %v3086
        %3291 = vmatprep.subr.mxu0 %v3089
        %3292 = vmatpush1.msra.mxu0 %v3088
        %3293 = vmatprep.subr.mxu0 %v3091
        %3294 = vmatpush1.msra.mxu0 %v3090
        %3295 = vmatprep.subr.mxu0 %v3093
        %3296 = vmatpush1.msra.mxu0 %v3092
        %3297 = vmatprep.subr.mxu0 %v3095
        %3298 = vmatpush1.msra.mxu0 %v3094
        %3299 = vmatprep.subr.mxu0 %v3097
        %3300 = vmatpush1.msra.mxu0 %v3096
        %3301 = vmatprep.subr.mxu0 %v3099
        %3302 = vmatpush1.msra.mxu0 %v3098
        %3303 = vmatprep.subr.mxu0 %v3101
        %3304 = vmatpush1.msra.mxu0 %v3100
        %3305 = vmatprep.subr.mxu0 0.0
        %3306 = vmatpush1.msra.mxu0 0.0
        %3307 = vmatprep.subr.mxu0 0.0
        %3308 = vmatpush1.msra.mxu0 0.0
        %3309 = vmatprep.subr.mxu0 0.0
        %3310 = vmatpush1.msra.mxu0 0.0
        %3311 = vmatprep.subr.mxu0 0.0
        %3312 = vmatpush1.msra.mxu0 0.0
        %3313 = vmatprep.subr.mxu0 0.0
        %3314 = vmatpush1.msra.mxu0 0.0
        %3315 = vmatprep.subr.mxu0 0.0
        %3316 = vmatpush1.msra.mxu0 0.0
        %3317 = vmatprep.subr.mxu0 0.0
        %3318 = vmatpush1.msra.mxu0 0.0
        %3319 = vmatprep.subr.mxu0 0.0
        %3320 = vmatpush1.msra.mxu0 0.0
        %3321 = vmatprep.subr.mxu0 0.0
        %3322 = vmatpush1.msra.mxu0 0.0
        %3323 = vmatprep.subr.mxu0 0.0
        %3324 = vmatpush1.msra.mxu0 0.0
        %3325 = vmatprep.subr.mxu0 0.0
        %3326 = vmatpush1.msra.mxu0 0.0
        %3327 = vmatprep.subr.mxu0 0.0
        %3328 = vmatpush1.msra.mxu0 0.0
        %3329 = vmatprep.subr.mxu0 0.0
        %3330 = vmatpush1.msra.mxu0 0.0
        %3331 = vmatprep.subr.mxu0 0.0
        %3332 = vmatpush1.msra.mxu0 0.0
        %3333 = vmatprep.subr.mxu0 0.0
        %3334 = vmatpush1.msra.mxu0 0.0
        %3335 = vmatprep.subr.mxu0 0.0
        %3336 = vmatpush1.msra.mxu0 0.0
        %3337 = vmatprep.subr.mxu0 0.0
        %3338 = vmatpush1.msra.mxu0 0.0
        %3339 = vmatprep.subr.mxu0 0.0
        %3340 = vmatpush1.msra.mxu0 0.0
        %3341 = vmatprep.subr.mxu0 0.0
        %3342 = vmatpush1.msra.mxu0 0.0
        %3343 = vmatprep.subr.mxu0 0.0
        %3344 = vmatpush1.msra.mxu0 0.0
        %3345 = vmatprep.subr.mxu0 0.0
        %3346 = vmatpush1.msra.mxu0 0.0
        %3347 = vmatprep.subr.mxu0 0.0
        %3348 = vmatpush1.msra.mxu0 0.0
        %3349 = vmatprep.subr.mxu0 0.0
        %3350 = vmatpush1.msra.mxu0 0.0
        %3351 = vmatprep.subr.mxu0 0.0
        %3352 = vmatpush1.msra.mxu0 0.0
        %3353 = vmatprep.mubr.f32.mxu0 0.0
        %3354 = vmatmul.mubr.f32.gmra.mrb[0].mxu0 %v3287
        %v3355 = vpop.f32.mrb[0].mxu0
        %v3356 = vadd.f32 0.0, %v3355
        %v3357 = vpop.f32.mrb[0].mxu0
        %v3358 = vadd.f32 0.0, %v3357
        %3359 = vdwg.mxu0
        %v3360 = vlaneseq
        %v3361 = vshrl.u32 %v3360, 7
        %v3362 = vsub.s32 0, %v3361
        %v3363 = vrot.slane %v3356, %v3362
        %v3364 = vlaneseq
        %v3365 = vshrl.u32 %v3364, 7
        %v3366 = vsub.s32 0, %v3365
        %v3367 = vrot.slane %v3358, %v3366
        %v3368 = vmul.f32 %v3052, %v3363
        %v3369 = vmul.f32 %v3053, %v3367
        %v3371 = vsel %vm3285, %v3284, 0
        %3373 = vmatprep.subr.mxu0 %v3087
        %3374 = vmatpush1.msra.mxu0 %v3086
        %3375 = vmatprep.subr.mxu0 %v3089
        %3376 = vmatpush1.msra.mxu0 %v3088
        %3377 = vmatprep.subr.mxu0 %v3091
        %3378 = vmatpush1.msra.mxu0 %v3090
        %3379 = vmatprep.subr.mxu0 %v3093
        %3380 = vmatpush1.msra.mxu0 %v3092
        %3381 = vmatprep.subr.mxu0 %v3095
        %3382 = vmatpush1.msra.mxu0 %v3094
        %3383 = vmatprep.subr.mxu0 %v3097
        %3384 = vmatpush1.msra.mxu0 %v3096
        %3385 = vmatprep.subr.mxu0 %v3099
        %3386 = vmatpush1.msra.mxu0 %v3098
        %3387 = vmatprep.subr.mxu0 %v3101
        %3388 = vmatpush1.msra.mxu0 %v3100
        %3389 = vmatprep.subr.mxu0 0.0
        %3390 = vmatpush1.msra.mxu0 0.0
        %3391 = vmatprep.subr.mxu0 0.0
        %3392 = vmatpush1.msra.mxu0 0.0
        %3393 = vmatprep.subr.mxu0 0.0
        %3394 = vmatpush1.msra.mxu0 0.0
        %3395 = vmatprep.subr.mxu0 0.0
        %3396 = vmatpush1.msra.mxu0 0.0
        %3397 = vmatprep.subr.mxu0 0.0
        %3398 = vmatpush1.msra.mxu0 0.0
        %3399 = vmatprep.subr.mxu0 0.0
        %3400 = vmatpush1.msra.mxu0 0.0
        %3401 = vmatprep.subr.mxu0 0.0
        %3402 = vmatpush1.msra.mxu0 0.0
        %3403 = vmatprep.subr.mxu0 0.0
        %3404 = vmatpush1.msra.mxu0 0.0
        %3405 = vmatprep.subr.mxu0 0.0
        %3406 = vmatpush1.msra.mxu0 0.0
        %3407 = vmatprep.subr.mxu0 0.0
        %3408 = vmatpush1.msra.mxu0 0.0
        %3409 = vmatprep.subr.mxu0 0.0
        %3410 = vmatpush1.msra.mxu0 0.0
        %3411 = vmatprep.subr.mxu0 0.0
        %3412 = vmatpush1.msra.mxu0 0.0
        %3413 = vmatprep.subr.mxu0 0.0
        %3414 = vmatpush1.msra.mxu0 0.0
        %3415 = vmatprep.subr.mxu0 0.0
        %3416 = vmatpush1.msra.mxu0 0.0
        %3417 = vmatprep.subr.mxu0 0.0
        %3418 = vmatpush1.msra.mxu0 0.0
        %3419 = vmatprep.subr.mxu0 0.0
        %3420 = vmatpush1.msra.mxu0 0.0
        %3421 = vmatprep.subr.mxu0 0.0
        %3422 = vmatpush1.msra.mxu0 0.0
        %3423 = vmatprep.subr.mxu0 0.0
        %3424 = vmatpush1.msra.mxu0 0.0
        %3425 = vmatprep.subr.mxu0 0.0
        %3426 = vmatpush1.msra.mxu0 0.0
        %3427 = vmatprep.subr.mxu0 0.0
        %3428 = vmatpush1.msra.mxu0 0.0
        %3429 = vmatprep.subr.mxu0 0.0
        %3430 = vmatpush1.msra.mxu0 0.0
        %3431 = vmatprep.subr.mxu0 0.0
        %3432 = vmatpush1.msra.mxu0 0.0
        %3433 = vmatprep.subr.mxu0 0.0
        %3434 = vmatpush1.msra.mxu0 0.0
        %3435 = vmatprep.subr.mxu0 0.0
        %3436 = vmatpush1.msra.mxu0 0.0
        %3437 = vmatprep.mubr.f32.mxu0 0.0
        %3438 = vmatmul.mubr.f32.gmra.mrb[0].mxu0 %v3371
        %v3439 = vpop.f32.mrb[0].mxu0
        %v3440 = vadd.f32 0.0, %v3439
        %v3441 = vpop.f32.mrb[0].mxu0
        %v3442 = vadd.f32 0.0, %v3441
        %3443 = vdwg.mxu0
        %v3444 = vlaneseq
        %v3445 = vshrl.u32 %v3444, 7
        %v3446 = vsub.s32 0, %v3445
        %v3447 = vrot.slane %v3440, %v3446
        %v3448 = vlaneseq
        %v3449 = vshrl.u32 %v3448, 7
        %v3450 = vsub.s32 0, %v3449
        %v3451 = vrot.slane %v3442, %v3450
        %v3452 = vadd.f32 %v3368, %v3447
        %v3453 = vadd.f32 %v3369, %v3451
        %v3454 = vld [vmem:[#allocation28] sm:$0x3]
        %v3455 = vld [vmem:[%s49] sm:$0xff]
        %v3456 = vld [vmem:[%s49 + $0x8] sm:$0xff]
        %v3457 = vld [vmem:[%s49 + $0x10] sm:$0xff]
        %v3458 = vld [vmem:[%s49 + $0x18] sm:$0xff]
        %v3459 = vld [vmem:[%s49 + $0x20] sm:$0xff]
        %v3460 = vld [vmem:[%s49 + $0x28] sm:$0xff]
        %v3461 = vld [vmem:[%s49 + $0x30] sm:$0xff]
        %v3462 = vld [vmem:[%s49 + $0x38] sm:$0xff]
        %v3463 = vld [vmem:[%s49 + $0x40] sm:$0xff]
        %v3464 = vld [vmem:[%s49 + $0x48] sm:$0xff]
        %v3465 = vld [vmem:[%s49 + $0x50] sm:$0xff]
        %v3466 = vld [vmem:[%s49 + $0x58] sm:$0xff]
        %v3467 = vld [vmem:[%s49 + $0x60] sm:$0xff]
        %v3468 = vld [vmem:[%s49 + $0x68] sm:$0xff]
        %v3469 = vld [vmem:[%s49 + $0x70] sm:$0xff]
        %v3470 = vld [vmem:[%s49 + $0x78] sm:$0xff]
        %v3471 = vld [vmem:[%s49 + $0x80] sm:$0xff]
        %v3472 = vld [vmem:[%s49 + $0x88] sm:$0xff]
        %v3473 = vld [vmem:[%s49 + $0x90] sm:$0xff]
        %v3474 = vld [vmem:[%s49 + $0x98] sm:$0xff]
        %v3475 = vld [vmem:[%s49 + $0xa0] sm:$0xff]
        %v3476 = vld [vmem:[%s49 + $0xa8] sm:$0xff]
        %v3477 = vld [vmem:[%s49 + $0xb0] sm:$0xff]
        %v3478 = vld [vmem:[%s49 + $0xb8] sm:$0xff]
        %v3479 = vld [vmem:[%s49 + $0xc0] sm:$0xff]
        %v3480 = vld [vmem:[%s49 + $0xc8] sm:$0xff]
        %v3481 = vld [vmem:[%s49 + $0xd0] sm:$0xff]
        %v3482 = vld [vmem:[%s49 + $0xd8] sm:$0xff]
        %v3483 = vld [vmem:[%s49 + $0xe0] sm:$0xff]
        %v3484 = vld [vmem:[%s49 + $0xe8] sm:$0xff]
        %v3485 = vld [vmem:[%s49 + $0xf0] sm:$0xff]
        %v3486 = vld [vmem:[%s49 + $0xf8] sm:$0xff]
        %v3487 = vld [vmem:[%s49 + $0x100] sm:$0xff]
        %v3488 = vld [vmem:[%s49 + $0x108] sm:$0xff]
        %v3489 = vld [vmem:[%s49 + $0x110] sm:$0xff]
        %v3490 = vld [vmem:[%s49 + $0x118] sm:$0xff]
        %v3491 = vld [vmem:[%s49 + $0x120] sm:$0xff]
        %v3492 = vld [vmem:[%s49 + $0x128] sm:$0xff]
        %v3493 = vld [vmem:[%s49 + $0x130] sm:$0xff]
        %v3494 = vld [vmem:[%s49 + $0x138] sm:$0xff]
        %v3495 = vld [vmem:[%s49 + $0x140] sm:$0xff]
        %v3496 = vld [vmem:[%s49 + $0x148] sm:$0xff]
        %v3497 = vld [vmem:[%s49 + $0x150] sm:$0xff]
        %v3498 = vld [vmem:[%s49 + $0x158] sm:$0xff]
        %v3499 = vld [vmem:[%s49 + $0x160] sm:$0xff]
        %v3500 = vld [vmem:[%s49 + $0x168] sm:$0xff]
        %v3501 = vld [vmem:[%s49 + $0x170] sm:$0xff]
        %v3502 = vld [vmem:[%s49 + $0x178] sm:$0xff]
        %v3503 = vld [vmem:[%s49 + $0x180] sm:$0xff]
        %v3504 = vld [vmem:[%s49 + $0x188] sm:$0xff]
        %v3505 = vld [vmem:[%s49 + $0x190] sm:$0xff]
        %v3506 = vld [vmem:[%s49 + $0x198] sm:$0xff]
        %v3507 = vld [vmem:[%s49 + $0x1a0] sm:$0xff]
        %v3508 = vld [vmem:[%s49 + $0x1a8] sm:$0xff]
        %v3509 = vld [vmem:[%s49 + $0x1b0] sm:$0xff]
        %v3510 = vld [vmem:[%s49 + $0x1b8] sm:$0xff]
        %v3511 = vld [vmem:[%s49 + $0x1c0] sm:$0xff]
        %v3512 = vld [vmem:[%s49 + $0x1c8] sm:$0xff]
        %v3513 = vld [vmem:[%s49 + $0x1d0] sm:$0xff]
        %v3514 = vld [vmem:[%s49 + $0x1d8] sm:$0xff]
        %v3515 = vld [vmem:[%s49 + $0x1e0] sm:$0xff]
        %v3516 = vld [vmem:[%s49 + $0x1e8] sm:$0xff]
        %v3517 = vld [vmem:[%s49 + $0x1f0] sm:$0xff]
        %v3518 = vld [vmem:[%s49 + $0x1f8] sm:$0xff]
        %v3519 = vld [vmem:[#allocation30] sm:$0xf]
        %vm3520 = vcmask 31744
        %v3522 = vsel %vm3520, %v3454, 0
        %v3525 = vsel %vm3104, %v3452, 0
        %v3528 = vsel %vm3104, %v3453, 0
        %3530 = vmatprep.subr.mxu0 %v3528
        %3531 = vmatpush1.msra.mxu0 %v3525
        %3532 = vmatprep.subr.mxu0 0.0
        %3533 = vmatpush1.msra.mxu0 0.0
        %3534 = vmatprep.subr.mxu0 0.0
        %3535 = vmatpush1.msra.mxu0 0.0
        %3536 = vmatprep.subr.mxu0 0.0
        %3537 = vmatpush1.msra.mxu0 0.0
        %3538 = vmatprep.subr.mxu0 0.0
        %3539 = vmatpush1.msra.mxu0 0.0
        %3540 = vmatprep.subr.mxu0 0.0
        %3541 = vmatpush1.msra.mxu0 0.0
        %3542 = vmatprep.subr.mxu0 0.0
        %3543 = vmatpush1.msra.mxu0 0.0
        %3544 = vmatprep.subr.mxu0 0.0
        %3545 = vmatpush1.msra.mxu0 0.0
        %3546 = vmatprep.subr.mxu0 0.0
        %3547 = vmatpush1.msra.mxu0 0.0
        %3548 = vmatprep.subr.mxu0 0.0
        %3549 = vmatpush1.msra.mxu0 0.0
        %3550 = vmatprep.subr.mxu0 0.0
        %3551 = vmatpush1.msra.mxu0 0.0
        %3552 = vmatprep.subr.mxu0 0.0
        %3553 = vmatpush1.msra.mxu0 0.0
        %3554 = vmatprep.subr.mxu0 0.0
        %3555 = vmatpush1.msra.mxu0 0.0
        %3556 = vmatprep.subr.mxu0 0.0
        %3557 = vmatpush1.msra.mxu0 0.0
        %3558 = vmatprep.subr.mxu0 0.0
        %3559 = vmatpush1.msra.mxu0 0.0
        %3560 = vmatprep.subr.mxu0 0.0
        %3561 = vmatpush1.msra.mxu0 0.0
        %3562 = vmatprep.subr.mxu0 0.0
        %3563 = vmatpush1.msra.mxu0 0.0
        %3564 = vmatprep.subr.mxu0 0.0
        %3565 = vmatpush1.msra.mxu0 0.0
        %3566 = vmatprep.subr.mxu0 0.0
        %3567 = vmatpush1.msra.mxu0 0.0
        %3568 = vmatprep.subr.mxu0 0.0
        %3569 = vmatpush1.msra.mxu0 0.0
        %3570 = vmatprep.subr.mxu0 0.0
        %3571 = vmatpush1.msra.mxu0 0.0
        %3572 = vmatprep.subr.mxu0 0.0
        %3573 = vmatpush1.msra.mxu0 0.0
        %3574 = vmatprep.subr.mxu0 0.0
        %3575 = vmatpush1.msra.mxu0 0.0
        %3576 = vmatprep.subr.mxu0 0.0
        %3577 = vmatpush1.msra.mxu0 0.0
        %3578 = vmatprep.subr.mxu0 0.0
        %3579 = vmatpush1.msra.mxu0 0.0
        %3580 = vmatprep.subr.mxu0 0.0
        %3581 = vmatpush1.msra.mxu0 0.0
        %3582 = vmatprep.subr.mxu0 0.0
        %3583 = vmatpush1.msra.mxu0 0.0
        %3584 = vmatprep.subr.mxu0 0.0
        %3585 = vmatpush1.msra.mxu0 0.0
        %3586 = vmatprep.subr.mxu0 0.0
        %3587 = vmatpush1.msra.mxu0 0.0
        %3588 = vmatprep.subr.mxu0 0.0
        %3589 = vmatpush1.msra.mxu0 0.0
        %3590 = vmatprep.subr.mxu0 0.0
        %3591 = vmatpush1.msra.mxu0 0.0
        %3592 = vmatprep.subr.mxu0 0.0
        %3593 = vmatpush1.msra.mxu0 0.0
        %3594 = vmatprep.mubr.f32.mxu0 0.0
        %3595 = vmatmul.mubr.f32.gmra.mrb[0].mxu0 %v3522
        %v3596 = vpop.f32.mrb[0].mxu0
        %v3597 = vadd.f32 0.0, %v3596
        %v3598 = vpop.f32.mrb[0].mxu0
        %v3599 = vadd.f32 0.0, %v3598
        %3600 = vdwg.mxu0
        %v3603 = vunpack.c.l.s4 1983009808
        %v3604 = vunpack.c.0.s8 %v3603
        %v3605 = vlaneseq
        %v3606 = vshrl.u32 %v3605, 7
        %v3607 = vsub.s32 %v3604, %v3606
        %v3608 = vrot.slane %v3519, %v3607
        %v3609 = vcombine.high %v3608, %v3608
        %3612 = vmatprep.subr.mxu0 %v3456
        %3613 = vmatpush1.msra.mxu0 %v3455
        %3614 = vmatprep.subr.mxu0 %v3458
        %3615 = vmatpush1.msra.mxu0 %v3457
        %3616 = vmatprep.subr.mxu0 %v3460
        %3617 = vmatpush1.msra.mxu0 %v3459
        %3618 = vmatprep.subr.mxu0 %v3462
        %3619 = vmatpush1.msra.mxu0 %v3461
        %3620 = vmatprep.subr.mxu0 %v3464
        %3621 = vmatpush1.msra.mxu0 %v3463
        %3622 = vmatprep.subr.mxu0 %v3466
        %3623 = vmatpush1.msra.mxu0 %v3465
        %3624 = vmatprep.subr.mxu0 %v3468
        %3625 = vmatpush1.msra.mxu0 %v3467
        %3626 = vmatprep.subr.mxu0 %v3470
        %3627 = vmatpush1.msra.mxu0 %v3469
        %3628 = vmatprep.subr.mxu0 %v3472
        %3629 = vmatpush1.msra.mxu0 %v3471
        %3630 = vmatprep.subr.mxu0 %v3474
        %3631 = vmatpush1.msra.mxu0 %v3473
        %3632 = vmatprep.subr.mxu0 %v3476
        %3633 = vmatpush1.msra.mxu0 %v3475
        %3634 = vmatprep.subr.mxu0 %v3478
        %3635 = vmatpush1.msra.mxu0 %v3477
        %3636 = vmatprep.subr.mxu0 %v3480
        %3637 = vmatpush1.msra.mxu0 %v3479
        %3638 = vmatprep.subr.mxu0 %v3482
        %3639 = vmatpush1.msra.mxu0 %v3481
        %3640 = vmatprep.subr.mxu0 %v3484
        %3641 = vmatpush1.msra.mxu0 %v3483
        %3642 = vmatprep.subr.mxu0 %v3486
        %3643 = vmatpush1.msra.mxu0 %v3485
        %3644 = vmatprep.subr.mxu0 %v3488
        %3645 = vmatpush1.msra.mxu0 %v3487
        %3646 = vmatprep.subr.mxu0 %v3490
        %3647 = vmatpush1.msra.mxu0 %v3489
        %3648 = vmatprep.subr.mxu0 %v3492
        %3649 = vmatpush1.msra.mxu0 %v3491
        %3650 = vmatprep.subr.mxu0 %v3494
        %3651 = vmatpush1.msra.mxu0 %v3493
        %3652 = vmatprep.subr.mxu0 %v3496
        %3653 = vmatpush1.msra.mxu0 %v3495
        %3654 = vmatprep.subr.mxu0 %v3498
        %3655 = vmatpush1.msra.mxu0 %v3497
        %3656 = vmatprep.subr.mxu0 %v3500
        %3657 = vmatpush1.msra.mxu0 %v3499
        %3658 = vmatprep.subr.mxu0 %v3502
        %3659 = vmatpush1.msra.mxu0 %v3501
        %3660 = vmatprep.subr.mxu0 %v3504
        %3661 = vmatpush1.msra.mxu0 %v3503
        %3662 = vmatprep.subr.mxu0 %v3506
        %3663 = vmatpush1.msra.mxu0 %v3505
        %3664 = vmatprep.subr.mxu0 %v3508
        %3665 = vmatpush1.msra.mxu0 %v3507
        %3666 = vmatprep.subr.mxu0 %v3510
        %3667 = vmatpush1.msra.mxu0 %v3509
        %3668 = vmatprep.subr.mxu0 %v3512
        %3669 = vmatpush1.msra.mxu0 %v3511
        %3670 = vmatprep.subr.mxu0 %v3514
        %3671 = vmatpush1.msra.mxu0 %v3513
        %3672 = vmatprep.subr.mxu0 %v3516
        %3673 = vmatpush1.msra.mxu0 %v3515
        %3674 = vmatprep.subr.mxu0 %v3518
        %3675 = vmatpush1.msra.mxu0 %v3517
        %3676 = vmatprep.mubr.f32.mxu0 %v3599
        %3677 = vmatmul.mubr.f32.gmra.mrb[0].mxu0 %v3597
        %v3678 = vpop.f32.mrb[0].mxu0
        %v3679 = vadd.f32 %v3608, %v3678
        %v3680 = vpop.f32.mrb[0].mxu0
        %v3681 = vadd.f32 %v3609, %v3680
        %3682 = vdwg.mxu0
        %vm3683 = vcmp.ge.f32.partialorder %v3679, 0.0
        %vm3684 = vcmp.ge.f32.partialorder %v3681, 0.0
        %v3685 = vmul.f32 %v3679, 0.2
        %v3686 = vmul.f32 %v3681, 0.2
        %v3687 = vsel %vm3683, %v3679, %v3685
        %v3688 = vsel %vm3684, %v3681, %v3686
        %v3689 = vld [vmem:[#allocation31] sm:$0xff]
        %v3690 = vld [vmem:[#allocation31 + $0x8] sm:$0xff]
        %v3691 = vld [vmem:[#allocation31 + $0x10] sm:$0xff]
        %v3692 = vld [vmem:[#allocation31 + $0x18] sm:$0xff]
        %v3693 = vld [vmem:[#allocation31 + $0x20] sm:$0xff]
        %v3694 = vld [vmem:[#allocation31 + $0x28] sm:$0xff]
        %v3695 = vld [vmem:[#allocation31 + $0x30] sm:$0xff]
        %v3696 = vld [vmem:[#allocation31 + $0x38] sm:$0xff]
        %v3697 = vld [vmem:[#allocation31 + $0x40] sm:$0xff]
        %v3698 = vld [vmem:[#allocation31 + $0x48] sm:$0xff]
        %v3699 = vld [vmem:[#allocation31 + $0x50] sm:$0xff]
        %v3700 = vld [vmem:[#allocation31 + $0x58] sm:$0xff]
        %v3701 = vld [vmem:[#allocation31 + $0x60] sm:$0xff]
        %v3702 = vld [vmem:[#allocation31 + $0x68] sm:$0xff]
        %v3703 = vld [vmem:[#allocation31 + $0x70] sm:$0xff]
        %v3704 = vld [vmem:[#allocation31 + $0x78] sm:$0xff]
        %v3705 = vld [vmem:[#allocation31 + $0x80] sm:$0xff]
        %v3706 = vld [vmem:[#allocation31 + $0x88] sm:$0xff]
        %v3707 = vld [vmem:[#allocation31 + $0x90] sm:$0xff]
        %v3708 = vld [vmem:[#allocation31 + $0x98] sm:$0xff]
        %v3709 = vld [vmem:[#allocation31 + $0xa0] sm:$0xff]
        %v3710 = vld [vmem:[#allocation31 + $0xa8] sm:$0xff]
        %v3711 = vld [vmem:[#allocation31 + $0xb0] sm:$0xff]
        %v3712 = vld [vmem:[#allocation31 + $0xb8] sm:$0xff]
        %v3713 = vld [vmem:[#allocation31 + $0xc0] sm:$0xff]
        %v3714 = vld [vmem:[#allocation31 + $0xc8] sm:$0xff]
        %v3715 = vld [vmem:[#allocation31 + $0xd0] sm:$0xff]
        %v3716 = vld [vmem:[#allocation31 + $0xd8] sm:$0xff]
        %v3717 = vld [vmem:[#allocation31 + $0xe0] sm:$0xff]
        %v3718 = vld [vmem:[#allocation31 + $0xe8] sm:$0xff]
        %v3719 = vld [vmem:[#allocation31 + $0xf0] sm:$0xff]
        %v3720 = vld [vmem:[#allocation31 + $0xf8] sm:$0xff]
        %v3721 = vld [vmem:[#allocation33] sm:$0xff]
        %v3722 = vld [vmem:[#allocation33 + $0x8] sm:$0xff]
        %v3723 = vld [vmem:[#allocation33 + $0x10] sm:$0xff]
        %v3724 = vld [vmem:[#allocation33 + $0x18] sm:$0xff]
        %v3725 = vld [vmem:[#allocation33 + $0x20] sm:$0xff]
        %v3726 = vld [vmem:[#allocation33 + $0x28] sm:$0xff]
        %v3727 = vld [vmem:[#allocation33 + $0x30] sm:$0xff]
        %v3728 = vld [vmem:[#allocation33 + $0x38] sm:$0xff]
        %v3729 = vld [vmem:[#allocation33 + $0x40] sm:$0xff]
        %v3730 = vld [vmem:[#allocation33 + $0x48] sm:$0xff]
        %v3731 = vld [vmem:[#allocation33 + $0x50] sm:$0xff]
        %v3732 = vld [vmem:[#allocation33 + $0x58] sm:$0xff]
        %v3733 = vld [vmem:[#allocation33 + $0x60] sm:$0xff]
        %v3734 = vld [vmem:[#allocation33 + $0x68] sm:$0xff]
        %v3735 = vld [vmem:[#allocation33 + $0x70] sm:$0xff]
        %v3736 = vld [vmem:[#allocation33 + $0x78] sm:$0xff]
        %v3737 = vld [vmem:[#allocation33 + $0x80] sm:$0xff]
        %v3738 = vld [vmem:[#allocation33 + $0x88] sm:$0xff]
        %v3739 = vld [vmem:[#allocation33 + $0x90] sm:$0xff]
        %v3740 = vld [vmem:[#allocation33 + $0x98] sm:$0xff]
        %v3741 = vld [vmem:[#allocation33 + $0xa0] sm:$0xff]
        %v3742 = vld [vmem:[#allocation33 + $0xa8] sm:$0xff]
        %v3743 = vld [vmem:[#allocation33 + $0xb0] sm:$0xff]
        %v3744 = vld [vmem:[#allocation33 + $0xb8] sm:$0xff]
        %v3745 = vld [vmem:[#allocation33 + $0xc0] sm:$0xff]
        %v3746 = vld [vmem:[#allocation33 + $0xc8] sm:$0xff]
        %v3747 = vld [vmem:[#allocation33 + $0xd0] sm:$0xff]
        %v3748 = vld [vmem:[#allocation33 + $0xd8] sm:$0xff]
        %v3749 = vld [vmem:[#allocation33 + $0xe0] sm:$0xff]
        %v3750 = vld [vmem:[#allocation33 + $0xe8] sm:$0xff]
        %v3751 = vld [vmem:[#allocation33 + $0xf0] sm:$0xff]
        %v3752 = vld [vmem:[#allocation33 + $0xf8] sm:$0xff]
        %v3753 = vld [vmem:[#allocation34] sm:$0x1]
        %v3754 = vld [vmem:[#allocation36] sm:$0x1]
        %vm3755 = vcmask 1041408
        %v3756 = vsel %vm3755, %v3687, 0.0
        %v3757 = vrot.slane %v3756, 4
        %v3758 = vadd.f32 %v3756, %v3757
        %v3759 = vrot.slane %v3758, 2
        %v3760 = vadd.f32 %v3758, %v3759
        %v3761 = vrot.slane %v3760, 1
        %v3762 = vadd.f32 %v3760, %v3761
        %v3763 = vsel %vm3755, %v3688, 0.0
        %v3764 = vrot.slane %v3763, 4
        %v3765 = vadd.f32 %v3763, %v3764
        %v3766 = vrot.slane %v3765, 2
        %v3767 = vadd.f32 %v3765, %v3766
        %v3768 = vrot.slane %v3767, 1
        %v3769 = vadd.f32 %v3767, %v3768
        %3770 = vmatprep.subr.mxu0 0.0
        %3771 = vmatpush1.msra.mxu0 %v3689
        %3772 = vmatprep.subr.mxu0 0.0
        %3773 = vmatpush1.msra.mxu0 %v3690
        %3774 = vmatprep.subr.mxu0 0.0
        %3775 = vmatpush1.msra.mxu0 %v3691
        %3776 = vmatprep.subr.mxu0 0.0
        %3777 = vmatpush1.msra.mxu0 %v3692
        %3778 = vmatprep.subr.mxu0 0.0
        %3779 = vmatpush1.msra.mxu0 %v3693
        %3780 = vmatprep.subr.mxu0 0.0
        %3781 = vmatpush1.msra.mxu0 %v3694
        %3782 = vmatprep.subr.mxu0 0.0
        %3783 = vmatpush1.msra.mxu0 %v3695
        %3784 = vmatprep.subr.mxu0 0.0
        %3785 = vmatpush1.msra.mxu0 %v3696
        %3786 = vmatprep.subr.mxu0 0.0
        %3787 = vmatpush1.msra.mxu0 %v3697
        %3788 = vmatprep.subr.mxu0 0.0
        %3789 = vmatpush1.msra.mxu0 %v3698
        %3790 = vmatprep.subr.mxu0 0.0
        %3791 = vmatpush1.msra.mxu0 %v3699
        %3792 = vmatprep.subr.mxu0 0.0
        %3793 = vmatpush1.msra.mxu0 %v3700
        %3794 = vmatprep.subr.mxu0 0.0
        %3795 = vmatpush1.msra.mxu0 %v3701
        %3796 = vmatprep.subr.mxu0 0.0
        %3797 = vmatpush1.msra.mxu0 %v3702
        %3798 = vmatprep.subr.mxu0 0.0
        %3799 = vmatpush1.msra.mxu0 %v3703
        %3800 = vmatprep.subr.mxu0 0.0
        %3801 = vmatpush1.msra.mxu0 %v3704
        %3802 = vmatprep.subr.mxu0 0.0
        %3803 = vmatpush1.msra.mxu0 %v3705
        %3804 = vmatprep.subr.mxu0 0.0
        %3805 = vmatpush1.msra.mxu0 %v3706
        %3806 = vmatprep.subr.mxu0 0.0
        %3807 = vmatpush1.msra.mxu0 %v3707
        %3808 = vmatprep.subr.mxu0 0.0
        %3809 = vmatpush1.msra.mxu0 %v3708
        %3810 = vmatprep.subr.mxu0 0.0
        %3811 = vmatpush1.msra.mxu0 %v3709
        %3812 = vmatprep.subr.mxu0 0.0
        %3813 = vmatpush1.msra.mxu0 %v3710
        %3814 = vmatprep.subr.mxu0 0.0
        %3815 = vmatpush1.msra.mxu0 %v3711
        %3816 = vmatprep.subr.mxu0 0.0
        %3817 = vmatpush1.msra.mxu0 %v3712
        %3818 = vmatprep.subr.mxu0 0.0
        %3819 = vmatpush1.msra.mxu0 %v3713
        %3820 = vmatprep.subr.mxu0 0.0
        %3821 = vmatpush1.msra.mxu0 %v3714
        %3822 = vmatprep.subr.mxu0 0.0
        %3823 = vmatpush1.msra.mxu0 %v3715
        %3824 = vmatprep.subr.mxu0 0.0
        %3825 = vmatpush1.msra.mxu0 %v3716
        %3826 = vmatprep.subr.mxu0 0.0
        %3827 = vmatpush1.msra.mxu0 %v3717
        %3828 = vmatprep.subr.mxu0 0.0
        %3829 = vmatpush1.msra.mxu0 %v3718
        %3830 = vmatprep.subr.mxu0 0.0
        %3831 = vmatpush1.msra.mxu0 %v3719
        %3832 = vmatprep.subr.mxu0 0.0
        %3833 = vmatpush1.msra.mxu0 %v3720
        %3834 = vmatprep.mubr.f32.mxu0 %v3769
        %3835 = vmatmul.mubr.f32.gmra.mrb[0].mxu0 %v3762
        %v3836 = vpop.f32.mrb[0].mxu0
        %v3837 = vadd.f32 0.0, %v3836
        %v3838 = vpop.f32.mrb[0].mxu0
        %3839 = vdwg.mxu0
        %v3840 = vmul.f32 %v3837, 0.25
        %v3841 = vmul.f32 %v3687, %v3687
        %v3842 = vmul.f32 %v3688, %v3688
        %v3843 = vsel %vm3755, %v3841, 0.0
        %v3844 = vrot.slane %v3843, 4
        %v3845 = vadd.f32 %v3843, %v3844
        %v3846 = vrot.slane %v3845, 2
        %v3847 = vadd.f32 %v3845, %v3846
        %v3848 = vrot.slane %v3847, 1
        %v3849 = vadd.f32 %v3847, %v3848
        %v3850 = vsel %vm3755, %v3842, 0.0
        %v3851 = vrot.slane %v3850, 4
        %v3852 = vadd.f32 %v3850, %v3851
        %v3853 = vrot.slane %v3852, 2
        %v3854 = vadd.f32 %v3852, %v3853
        %v3855 = vrot.slane %v3854, 1
        %v3856 = vadd.f32 %v3854, %v3855
        %3857 = vmatprep.subr.mxu0 0.0
        %3858 = vmatpush1.msra.mxu0 %v3689
        %3859 = vmatprep.subr.mxu0 0.0
        %3860 = vmatpush1.msra.mxu0 %v3690
        %3861 = vmatprep.subr.mxu0 0.0
        %3862 = vmatpush1.msra.mxu0 %v3691
        %3863 = vmatprep.subr.mxu0 0.0
        %3864 = vmatpush1.msra.mxu0 %v3692
        %3865 = vmatprep.subr.mxu0 0.0
        %3866 = vmatpush1.msra.mxu0 %v3693
        %3867 = vmatprep.subr.mxu0 0.0
        %3868 = vmatpush1.msra.mxu0 %v3694
        %3869 = vmatprep.subr.mxu0 0.0
        %3870 = vmatpush1.msra.mxu0 %v3695
        %3871 = vmatprep.subr.mxu0 0.0
        %3872 = vmatpush1.msra.mxu0 %v3696
        %3873 = vmatprep.subr.mxu0 0.0
        %3874 = vmatpush1.msra.mxu0 %v3697
        %3875 = vmatprep.subr.mxu0 0.0
        %3876 = vmatpush1.msra.mxu0 %v3698
        %3877 = vmatprep.subr.mxu0 0.0
        %3878 = vmatpush1.msra.mxu0 %v3699
        %3879 = vmatprep.subr.mxu0 0.0
        %3880 = vmatpush1.msra.mxu0 %v3700
        %3881 = vmatprep.subr.mxu0 0.0
        %3882 = vmatpush1.msra.mxu0 %v3701
        %3883 = vmatprep.subr.mxu0 0.0
        %3884 = vmatpush1.msra.mxu0 %v3702
        %3885 = vmatprep.subr.mxu0 0.0
        %3886 = vmatpush1.msra.mxu0 %v3703
        %3887 = vmatprep.subr.mxu0 0.0
        %3888 = vmatpush1.msra.mxu0 %v3704
        %3889 = vmatprep.subr.mxu0 0.0
        %3890 = vmatpush1.msra.mxu0 %v3705
        %3891 = vmatprep.subr.mxu0 0.0
        %3892 = vmatpush1.msra.mxu0 %v3706
        %3893 = vmatprep.subr.mxu0 0.0
        %3894 = vmatpush1.msra.mxu0 %v3707
        %3895 = vmatprep.subr.mxu0 0.0
        %3896 = vmatpush1.msra.mxu0 %v3708
        %3897 = vmatprep.subr.mxu0 0.0
        %3898 = vmatpush1.msra.mxu0 %v3709
        %3899 = vmatprep.subr.mxu0 0.0
        %3900 = vmatpush1.msra.mxu0 %v3710
        %3901 = vmatprep.subr.mxu0 0.0
        %3902 = vmatpush1.msra.mxu0 %v3711
        %3903 = vmatprep.subr.mxu0 0.0
        %3904 = vmatpush1.msra.mxu0 %v3712
        %3905 = vmatprep.subr.mxu0 0.0
        %3906 = vmatpush1.msra.mxu0 %v3713
        %3907 = vmatprep.subr.mxu0 0.0
        %3908 = vmatpush1.msra.mxu0 %v3714
        %3909 = vmatprep.subr.mxu0 0.0
        %3910 = vmatpush1.msra.mxu0 %v3715
        %3911 = vmatprep.subr.mxu0 0.0
        %3912 = vmatpush1.msra.mxu0 %v3716
        %3913 = vmatprep.subr.mxu0 0.0
        %3914 = vmatpush1.msra.mxu0 %v3717
        %3915 = vmatprep.subr.mxu0 0.0
        %3916 = vmatpush1.msra.mxu0 %v3718
        %3917 = vmatprep.subr.mxu0 0.0
        %3918 = vmatpush1.msra.mxu0 %v3719
        %3919 = vmatprep.subr.mxu0 0.0
        %3920 = vmatpush1.msra.mxu0 %v3720
        %3921 = vmatprep.mubr.f32.mxu0 %v3856
        %3922 = vmatmul.mubr.f32.gmra.mrb[0].mxu0 %v3849
        %v3923 = vpop.f32.mrb[0].mxu0
        %v3924 = vadd.f32 0.0, %v3923
        %v3925 = vpop.f32.mrb[0].mxu0
        %3926 = vdwg.mxu0
        %v3927 = vmul.f32 %v3924, 0.25
        %v3928 = vmul.f32 %v3840, %v3840
        %v3929 = vsub.f32 %v3927, %v3928
        %v3930 = vmax.f32 %v3929, 0.0
        %v3931 = vadd.f32 %v3930, 1e-05
        %v3932 = vrsqrt.pop %v3931
        %v3933 = vmul.f32 %v3753, %v3932
        %v3934 = vmul.f32 %v3840, %v3933
        %v3935 = vsub.f32 %v3754, %v3934
        %3936 = vmatprep.subr.mxu0 %v3722
        %3937 = vmatpush1.msra.mxu0 %v3721
        %3938 = vmatprep.subr.mxu0 %v3724
        %3939 = vmatpush1.msra.mxu0 %v3723
        %3940 = vmatprep.subr.mxu0 %v3726
        %3941 = vmatpush1.msra.mxu0 %v3725
        %3942 = vmatprep.subr.mxu0 %v3728
        %3943 = vmatpush1.msra.mxu0 %v3727
        %3944 = vmatprep.subr.mxu0 %v3730
        %3945 = vmatpush1.msra.mxu0 %v3729
        %3946 = vmatprep.subr.mxu0 %v3732
        %3947 = vmatpush1.msra.mxu0 %v3731
        %3948 = vmatprep.subr.mxu0 %v3734
        %3949 = vmatpush1.msra.mxu0 %v3733
        %3950 = vmatprep.subr.mxu0 %v3736
        %3951 = vmatpush1.msra.mxu0 %v3735
        %3952 = vmatprep.subr.mxu0 %v3738
        %3953 = vmatpush1.msra.mxu0 %v3737
        %3954 = vmatprep.subr.mxu0 %v3740
        %3955 = vmatpush1.msra.mxu0 %v3739
        %3956 = vmatprep.subr.mxu0 %v3742
        %3957 = vmatpush1.msra.mxu0 %v3741
        %3958 = vmatprep.subr.mxu0 %v3744
        %3959 = vmatpush1.msra.mxu0 %v3743
        %3960 = vmatprep.subr.mxu0 %v3746
        %3961 = vmatpush1.msra.mxu0 %v3745
        %3962 = vmatprep.subr.mxu0 %v3748
        %3963 = vmatpush1.msra.mxu0 %v3747
        %3964 = vmatprep.subr.mxu0 %v3750
        %3965 = vmatpush1.msra.mxu0 %v3749
        %3966 = vmatprep.subr.mxu0 %v3752
        %3967 = vmatpush1.msra.mxu0 %v3751
        %3968 = vmatprep.subr.mxu0 0.0
        %3969 = vmatpush1.msra.mxu0 0.0
        %3970 = vmatprep.subr.mxu0 0.0
        %3971 = vmatpush1.msra.mxu0 0.0
        %3972 = vmatprep.subr.mxu0 0.0
        %3973 = vmatpush1.msra.mxu0 0.0
        %3974 = vmatprep.subr.mxu0 0.0
        %3975 = vmatpush1.msra.mxu0 0.0
        %3976 = vmatprep.subr.mxu0 0.0
        %3977 = vmatpush1.msra.mxu0 0.0
        %3978 = vmatprep.subr.mxu0 0.0
        %3979 = vmatpush1.msra.mxu0 0.0
        %3980 = vmatprep.subr.mxu0 0.0
        %3981 = vmatpush1.msra.mxu0 0.0
        %3982 = vmatprep.subr.mxu0 0.0
        %3983 = vmatpush1.msra.mxu0 0.0
        %3984 = vmatprep.subr.mxu0 0.0
        %3985 = vmatpush1.msra.mxu0 0.0
        %3986 = vmatprep.subr.mxu0 0.0
        %3987 = vmatpush1.msra.mxu0 0.0
        %3988 = vmatprep.subr.mxu0 0.0
        %3989 = vmatpush1.msra.mxu0 0.0
        %3990 = vmatprep.subr.mxu0 0.0
        %3991 = vmatpush1.msra.mxu0 0.0
        %3992 = vmatprep.subr.mxu0 0.0
        %3993 = vmatpush1.msra.mxu0 0.0
        %3994 = vmatprep.subr.mxu0 0.0
        %3995 = vmatpush1.msra.mxu0 0.0
        %3996 = vmatprep.subr.mxu0 0.0
        %3997 = vmatpush1.msra.mxu0 0.0
        %3998 = vmatprep.subr.mxu0 0.0
        %3999 = vmatpush1.msra.mxu0 0.0
        %4000 = vmatprep.mubr.f32.mxu0 0.0
        %4001 = vmatmul.mubr.f32.gmra.mrb[0].mxu0 %v3933
        %v4002 = vpop.f32.mrb[0].mxu0
        %v4003 = vadd.f32 0.0, %v4002
        %v4004 = vpop.f32.mrb[0].mxu0
        %v4005 = vadd.f32 0.0, %v4004
        %4006 = vdwg.mxu0
        %v4007 = vlaneseq
        %v4008 = vshrl.u32 %v4007, 7
        %v4009 = vsub.s32 0, %v4008
        %v4010 = vrot.slane %v4003, %v4009
        %v4011 = vlaneseq
        %v4012 = vshrl.u32 %v4011, 7
        %v4013 = vsub.s32 0, %v4012
        %v4014 = vrot.slane %v4005, %v4013
        %v4015 = vmul.f32 %v3687, %v4010
        %v4016 = vmul.f32 %v3688, %v4014
        %4017 = vmatprep.subr.mxu0 %v3722
        %4018 = vmatpush1.msra.mxu0 %v3721
        %4019 = vmatprep.subr.mxu0 %v3724
        %4020 = vmatpush1.msra.mxu0 %v3723
        %4021 = vmatprep.subr.mxu0 %v3726
        %4022 = vmatpush1.msra.mxu0 %v3725
        %4023 = vmatprep.subr.mxu0 %v3728
        %4024 = vmatpush1.msra.mxu0 %v3727
        %4025 = vmatprep.subr.mxu0 %v3730
        %4026 = vmatpush1.msra.mxu0 %v3729
        %4027 = vmatprep.subr.mxu0 %v3732
        %4028 = vmatpush1.msra.mxu0 %v3731
        %4029 = vmatprep.subr.mxu0 %v3734
        %4030 = vmatpush1.msra.mxu0 %v3733
        %4031 = vmatprep.subr.mxu0 %v3736
        %4032 = vmatpush1.msra.mxu0 %v3735
        %4033 = vmatprep.subr.mxu0 %v3738
        %4034 = vmatpush1.msra.mxu0 %v3737
        %4035 = vmatprep.subr.mxu0 %v3740
        %4036 = vmatpush1.msra.mxu0 %v3739
        %4037 = vmatprep.subr.mxu0 %v3742
        %4038 = vmatpush1.msra.mxu0 %v3741
        %4039 = vmatprep.subr.mxu0 %v3744
        %4040 = vmatpush1.msra.mxu0 %v3743
        %4041 = vmatprep.subr.mxu0 %v3746
        %4042 = vmatpush1.msra.mxu0 %v3745
        %4043 = vmatprep.subr.mxu0 %v3748
        %4044 = vmatpush1.msra.mxu0 %v3747
        %4045 = vmatprep.subr.mxu0 %v3750
        %4046 = vmatpush1.msra.mxu0 %v3749
        %4047 = vmatprep.subr.mxu0 %v3752
        %4048 = vmatpush1.msra.mxu0 %v3751
        %4049 = vmatprep.subr.mxu0 0.0
        %4050 = vmatpush1.msra.mxu0 0.0
        %4051 = vmatprep.subr.mxu0 0.0
        %4052 = vmatpush1.msra.mxu0 0.0
        %4053 = vmatprep.subr.mxu0 0.0
        %4054 = vmatpush1.msra.mxu0 0.0
        %4055 = vmatprep.subr.mxu0 0.0
        %4056 = vmatpush1.msra.mxu0 0.0
        %4057 = vmatprep.subr.mxu0 0.0
        %4058 = vmatpush1.msra.mxu0 0.0
        %4059 = vmatprep.subr.mxu0 0.0
        %4060 = vmatpush1.msra.mxu0 0.0
        %4061 = vmatprep.subr.mxu0 0.0
        %4062 = vmatpush1.msra.mxu0 0.0
        %4063 = vmatprep.subr.mxu0 0.0
        %4064 = vmatpush1.msra.mxu0 0.0
        %4065 = vmatprep.subr.mxu0 0.0
        %4066 = vmatpush1.msra.mxu0 0.0
        %4067 = vmatprep.subr.mxu0 0.0
        %4068 = vmatpush1.msra.mxu0 0.0
        %4069 = vmatprep.subr.mxu0 0.0
        %4070 = vmatpush1.msra.mxu0 0.0
        %4071 = vmatprep.subr.mxu0 0.0
        %4072 = vmatpush1.msra.mxu0 0.0
        %4073 = vmatprep.subr.mxu0 0.0
        %4074 = vmatpush1.msra.mxu0 0.0
        %4075 = vmatprep.subr.mxu0 0.0
        %4076 = vmatpush1.msra.mxu0 0.0
        %4077 = vmatprep.subr.mxu0 0.0
        %4078 = vmatpush1.msra.mxu0 0.0
        %4079 = vmatprep.subr.mxu0 0.0
        %4080 = vmatpush1.msra.mxu0 0.0
        %4081 = vmatprep.mubr.f32.mxu0 0.0
        %4082 = vmatmul.mubr.f32.gmra.mrb[0].mxu0 %v3935
        %v4083 = vpop.f32.mrb[0].mxu0
        %v4084 = vadd.f32 0.0, %v4083
        %v4085 = vpop.f32.mrb[0].mxu0
        %v4086 = vadd.f32 0.0, %v4085
        %4087 = vdwg.mxu0
        %v4088 = vlaneseq
        %v4089 = vshrl.u32 %v4088, 7
        %v4090 = vsub.s32 0, %v4089
        %v4091 = vrot.slane %v4084, %v4090
        %v4092 = vlaneseq
        %v4093 = vshrl.u32 %v4092, 7
        %v4094 = vsub.s32 0, %v4093
        %v4095 = vrot.slane %v4086, %v4094
        %v4096 = vadd.f32 %v4015, %v4091
        %v4097 = vadd.f32 %v4016, %v4095
        %v4098 = vld [vmem:[#allocation37] sm:$0x1]
        %v4099 = vld [vmem:[#allocation39] sm:$0xff]
        %v4100 = vld [vmem:[#allocation39 + $0x8] sm:$0xff]
        %v4101 = vld [vmem:[#allocation39 + $0x10] sm:$0xff]
        %v4102 = vld [vmem:[#allocation39 + $0x18] sm:$0xff]
        %v4103 = vld [vmem:[#allocation39 + $0x20] sm:$0xff]
        %v4104 = vld [vmem:[#allocation39 + $0x28] sm:$0xff]
        %v4105 = vld [vmem:[#allocation39 + $0x30] sm:$0xff]
        %v4106 = vld [vmem:[#allocation39 + $0x38] sm:$0xff]
        %v4107 = vld [vmem:[#allocation39 + $0x40] sm:$0xff]
        %v4108 = vld [vmem:[#allocation39 + $0x48] sm:$0xff]
        %v4109 = vld [vmem:[#allocation39 + $0x50] sm:$0xff]
        %v4110 = vld [vmem:[#allocation39 + $0x58] sm:$0xff]
        %v4111 = vld [vmem:[#allocation39 + $0x60] sm:$0xff]
        %v4112 = vld [vmem:[#allocation39 + $0x68] sm:$0xff]
        %v4113 = vld [vmem:[#allocation39 + $0x70] sm:$0xff]
        %v4114 = vld [vmem:[#allocation39 + $0x78] sm:$0xff]
        %v4115 = vld [vmem:[#allocation39 + $0x80] sm:$0xff]
        %v4116 = vld [vmem:[#allocation39 + $0x88] sm:$0xff]
        %v4117 = vld [vmem:[#allocation39 + $0x90] sm:$0xff]
        %v4118 = vld [vmem:[#allocation39 + $0x98] sm:$0xff]
        %v4119 = vld [vmem:[#allocation39 + $0xa0] sm:$0xff]
        %v4120 = vld [vmem:[#allocation39 + $0xa8] sm:$0xff]
        %v4121 = vld [vmem:[#allocation39 + $0xb0] sm:$0xff]
        %v4122 = vld [vmem:[#allocation39 + $0xb8] sm:$0xff]
        %v4123 = vld [vmem:[#allocation39 + $0xc0] sm:$0xff]
        %v4124 = vld [vmem:[#allocation39 + $0xc8] sm:$0xff]
        %v4125 = vld [vmem:[#allocation39 + $0xd0] sm:$0xff]
        %v4126 = vld [vmem:[#allocation39 + $0xd8] sm:$0xff]
        %v4127 = vld [vmem:[#allocation39 + $0xe0] sm:$0xff]
        %v4128 = vld [vmem:[#allocation39 + $0xe8] sm:$0xff]
        %v4129 = vld [vmem:[#allocation39 + $0xf0] sm:$0xff]
        %v4130 = vld [vmem:[#allocation39 + $0xf8] sm:$0xff]
        %v4131 = vld [vmem:[#allocation40] sm:$0x1]
        %vm4132 = vcmask 15360
        %v4134 = vsel %vm4132, %v4098, 0
        %v4137 = vsel %vm3755, %v4096, 0
        %v4140 = vsel %vm3755, %v4097, 0
        %4142 = vmatprep.subr.mxu0 %v4140
        %4143 = vmatpush1.msra.mxu0 %v4137
        %4144 = vmatprep.subr.mxu0 0.0
        %4145 = vmatpush1.msra.mxu0 0.0
        %4146 = vmatprep.subr.mxu0 0.0
        %4147 = vmatpush1.msra.mxu0 0.0
        %4148 = vmatprep.subr.mxu0 0.0
        %4149 = vmatpush1.msra.mxu0 0.0
        %4150 = vmatprep.subr.mxu0 0.0
        %4151 = vmatpush1.msra.mxu0 0.0
        %4152 = vmatprep.subr.mxu0 0.0
        %4153 = vmatpush1.msra.mxu0 0.0
        %4154 = vmatprep.subr.mxu0 0.0
        %4155 = vmatpush1.msra.mxu0 0.0
        %4156 = vmatprep.subr.mxu0 0.0
        %4157 = vmatpush1.msra.mxu0 0.0
        %4158 = vmatprep.subr.mxu0 0.0
        %4159 = vmatpush1.msra.mxu0 0.0
        %4160 = vmatprep.subr.mxu0 0.0
        %4161 = vmatpush1.msra.mxu0 0.0
        %4162 = vmatprep.subr.mxu0 0.0
        %4163 = vmatpush1.msra.mxu0 0.0
        %4164 = vmatprep.subr.mxu0 0.0
        %4165 = vmatpush1.msra.mxu0 0.0
        %4166 = vmatprep.subr.mxu0 0.0
        %4167 = vmatpush1.msra.mxu0 0.0
        %4168 = vmatprep.subr.mxu0 0.0
        %4169 = vmatpush1.msra.mxu0 0.0
        %4170 = vmatprep.subr.mxu0 0.0
        %4171 = vmatpush1.msra.mxu0 0.0
        %4172 = vmatprep.subr.mxu0 0.0
        %4173 = vmatpush1.msra.mxu0 0.0
        %4174 = vmatprep.subr.mxu0 0.0
        %4175 = vmatpush1.msra.mxu0 0.0
        %4176 = vmatprep.subr.mxu0 0.0
        %4177 = vmatpush1.msra.mxu0 0.0
        %4178 = vmatprep.subr.mxu0 0.0
        %4179 = vmatpush1.msra.mxu0 0.0
        %4180 = vmatprep.subr.mxu0 0.0
        %4181 = vmatpush1.msra.mxu0 0.0
        %4182 = vmatprep.subr.mxu0 0.0
        %4183 = vmatpush1.msra.mxu0 0.0
        %4184 = vmatprep.subr.mxu0 0.0
        %4185 = vmatpush1.msra.mxu0 0.0
        %4186 = vmatprep.subr.mxu0 0.0
        %4187 = vmatpush1.msra.mxu0 0.0
        %4188 = vmatprep.subr.mxu0 0.0
        %4189 = vmatpush1.msra.mxu0 0.0
        %4190 = vmatprep.subr.mxu0 0.0
        %4191 = vmatpush1.msra.mxu0 0.0
        %4192 = vmatprep.subr.mxu0 0.0
        %4193 = vmatpush1.msra.mxu0 0.0
        %4194 = vmatprep.subr.mxu0 0.0
        %4195 = vmatpush1.msra.mxu0 0.0
        %4196 = vmatprep.subr.mxu0 0.0
        %4197 = vmatpush1.msra.mxu0 0.0
        %4198 = vmatprep.subr.mxu0 0.0
        %4199 = vmatpush1.msra.mxu0 0.0
        %4200 = vmatprep.subr.mxu0 0.0
        %4201 = vmatpush1.msra.mxu0 0.0
        %4202 = vmatprep.subr.mxu0 0.0
        %4203 = vmatpush1.msra.mxu0 0.0
        %4204 = vmatprep.subr.mxu0 0.0
        %4205 = vmatpush1.msra.mxu0 0.0
        %4206 = vmatprep.mubr.f32.mxu0 0.0
        %4207 = vmatmul.mubr.f32.gmra.mrb[0].mxu0 %v4134
        %v4208 = vpop.f32.mrb[0].mxu0
        %v4209 = vadd.f32 0.0, %v4208
        %v4210 = vpop.f32.mrb[0].mxu0
        %v4211 = vadd.f32 0.0, %v4210
        %4212 = vdwg.mxu0
        %4213 = vmatprep.subr.mxu0 0.0
        %4214 = vmatpush1.msra.mxu0 %v4099
        %4215 = vmatprep.subr.mxu0 0.0
        %4216 = vmatpush1.msra.mxu0 %v4100
        %4217 = vmatprep.subr.mxu0 0.0
        %4218 = vmatpush1.msra.mxu0 %v4101
        %4219 = vmatprep.subr.mxu0 0.0
        %4220 = vmatpush1.msra.mxu0 %v4102
        %4221 = vmatprep.subr.mxu0 0.0
        %4222 = vmatpush1.msra.mxu0 %v4103
        %4223 = vmatprep.subr.mxu0 0.0
        %4224 = vmatpush1.msra.mxu0 %v4104
        %4225 = vmatprep.subr.mxu0 0.0
        %4226 = vmatpush1.msra.mxu0 %v4105
        %4227 = vmatprep.subr.mxu0 0.0
        %4228 = vmatpush1.msra.mxu0 %v4106
        %4229 = vmatprep.subr.mxu0 0.0
        %4230 = vmatpush1.msra.mxu0 %v4107
        %4231 = vmatprep.subr.mxu0 0.0
        %4232 = vmatpush1.msra.mxu0 %v4108
        %4233 = vmatprep.subr.mxu0 0.0
        %4234 = vmatpush1.msra.mxu0 %v4109
        %4235 = vmatprep.subr.mxu0 0.0
        %4236 = vmatpush1.msra.mxu0 %v4110
        %4237 = vmatprep.subr.mxu0 0.0
        %4238 = vmatpush1.msra.mxu0 %v4111
        %4239 = vmatprep.subr.mxu0 0.0
        %4240 = vmatpush1.msra.mxu0 %v4112
        %4241 = vmatprep.subr.mxu0 0.0
        %4242 = vmatpush1.msra.mxu0 %v4113
        %4243 = vmatprep.subr.mxu0 0.0
        %4244 = vmatpush1.msra.mxu0 %v4114
        %4245 = vmatprep.subr.mxu0 0.0
        %4246 = vmatpush1.msra.mxu0 %v4115
        %4247 = vmatprep.subr.mxu0 0.0
        %4248 = vmatpush1.msra.mxu0 %v4116
        %4249 = vmatprep.subr.mxu0 0.0
        %4250 = vmatpush1.msra.mxu0 %v4117
        %4251 = vmatprep.subr.mxu0 0.0
        %4252 = vmatpush1.msra.mxu0 %v4118
        %4253 = vmatprep.subr.mxu0 0.0
        %4254 = vmatpush1.msra.mxu0 %v4119
        %4255 = vmatprep.subr.mxu0 0.0
        %4256 = vmatpush1.msra.mxu0 %v4120
        %4257 = vmatprep.subr.mxu0 0.0
        %4258 = vmatpush1.msra.mxu0 %v4121
        %4259 = vmatprep.subr.mxu0 0.0
        %4260 = vmatpush1.msra.mxu0 %v4122
        %4261 = vmatprep.subr.mxu0 0.0
        %4262 = vmatpush1.msra.mxu0 %v4123
        %4263 = vmatprep.subr.mxu0 0.0
        %4264 = vmatpush1.msra.mxu0 %v4124
        %4265 = vmatprep.subr.mxu0 0.0
        %4266 = vmatpush1.msra.mxu0 %v4125
        %4267 = vmatprep.subr.mxu0 0.0
        %4268 = vmatpush1.msra.mxu0 %v4126
        %4269 = vmatprep.subr.mxu0 0.0
        %4270 = vmatpush1.msra.mxu0 %v4127
        %4271 = vmatprep.subr.mxu0 0.0
        %4272 = vmatpush1.msra.mxu0 %v4128
        %4273 = vmatprep.subr.mxu0 0.0
        %4274 = vmatpush1.msra.mxu0 %v4129
        %4275 = vmatprep.subr.mxu0 0.0
        %4276 = vmatpush1.msra.mxu0 %v4130
        %4277 = vmatprep.mubr.f32.mxu0 %v4211
        %4278 = vmatmul.mubr.f32.gmra.mrb[0].mxu0 %v4209
        %v4279 = vpop.f32.mrb[0].mxu0
        %v4280 = vadd.f32 %v4131, %v4279
        %v4281 = vpop.f32.mrb[0].mxu0
        %4282 = vdwg.mxu0
        %vm4283 = vcmp.ge.f32.partialorder %v4280, 0.0
        %v4284 = vmul.f32 %v4280, 0.2
        %v4285 = vsel %vm4283, %v4280, %v4284
        %v4286 = vld [vmem:[#allocation42] sm:$0xff]
        %v4287 = vld [vmem:[#allocation42 + $0x8] sm:$0xff]
        %v4288 = vld [vmem:[#allocation42 + $0x10] sm:$0xff]
        %v4289 = vld [vmem:[#allocation42 + $0x18] sm:$0xff]
        %v4290 = vld [vmem:[#allocation42 + $0x20] sm:$0xff]
        %v4291 = vld [vmem:[#allocation42 + $0x28] sm:$0xff]
        %v4292 = vld [vmem:[#allocation42 + $0x30] sm:$0xff]
        %v4293 = vld [vmem:[#allocation42 + $0x38] sm:$0xff]
        %v4294 = vld [vmem:[#allocation42 + $0x40] sm:$0xff]
        %v4295 = vld [vmem:[#allocation42 + $0x48] sm:$0xff]
        %v4296 = vld [vmem:[#allocation42 + $0x50] sm:$0xff]
        %v4297 = vld [vmem:[#allocation42 + $0x58] sm:$0xff]
        %v4298 = vld [vmem:[#allocation42 + $0x60] sm:$0xff]
        %v4299 = vld [vmem:[#allocation42 + $0x68] sm:$0xff]
        %v4300 = vld [vmem:[#allocation42 + $0x70] sm:$0xff]
        %v4301 = vld [vmem:[#allocation42 + $0x78] sm:$0xff]
        %v4302 = vld [vmem:[#allocation42 + $0x80] sm:$0xff]
        %v4303 = vld [vmem:[#allocation42 + $0x88] sm:$0xff]
        %v4304 = vld [vmem:[#allocation42 + $0x90] sm:$0xff]
        %v4305 = vld [vmem:[#allocation42 + $0x98] sm:$0xff]
        %v4306 = vld [vmem:[#allocation42 + $0xa0] sm:$0xff]
        %v4307 = vld [vmem:[#allocation42 + $0xa8] sm:$0xff]
        %v4308 = vld [vmem:[#allocation42 + $0xb0] sm:$0xff]
        %v4309 = vld [vmem:[#allocation42 + $0xb8] sm:$0xff]
        %v4310 = vld [vmem:[#allocation42 + $0xc0] sm:$0xff]
        %v4311 = vld [vmem:[#allocation42 + $0xc8] sm:$0xff]
        %v4312 = vld [vmem:[#allocation42 + $0xd0] sm:$0xff]
        %v4313 = vld [vmem:[#allocation42 + $0xd8] sm:$0xff]
        %v4314 = vld [vmem:[#allocation42 + $0xe0] sm:$0xff]
        %v4315 = vld [vmem:[#allocation42 + $0xe8] sm:$0xff]
        %v4316 = vld [vmem:[#allocation42 + $0xf0] sm:$0xff]
        %v4317 = vld [vmem:[#allocation42 + $0xf8] sm:$0xff]
        %v4318 = vld [vmem:[#allocation42 + $0x100] sm:$0xff]
        %v4319 = vld [vmem:[#allocation42 + $0x108] sm:$0xff]
        %v4320 = vld [vmem:[%s69] sm:$0xff]
        %v4321 = vld [vmem:[%s69 + $0x8] sm:$0xff]
        %v4322 = vld [vmem:[%s69 + $0x10] sm:$0xff]
        %v4323 = vld [vmem:[%s69 + $0x18] sm:$0xff]
        %v4324 = vld [vmem:[%s69 + $0x20] sm:$0xff]
        %v4325 = vld [vmem:[%s69 + $0x28] sm:$0xff]
        %v4326 = vld [vmem:[%s69 + $0x30] sm:$0xff]
        %v4327 = vld [vmem:[%s69 + $0x38] sm:$0xff]
        %v4328 = vld [vmem:[%s69 + $0x40] sm:$0xff]
        %v4329 = vld [vmem:[%s69 + $0x48] sm:$0xff]
        %v4330 = vld [vmem:[%s69 + $0x50] sm:$0xff]
        %v4331 = vld [vmem:[%s69 + $0x58] sm:$0xff]
        %v4332 = vld [vmem:[%s69 + $0x60] sm:$0xff]
        %v4333 = vld [vmem:[%s69 + $0x68] sm:$0xff]
        %v4334 = vld [vmem:[%s69 + $0x70] sm:$0xff]
        %v4335 = vld [vmem:[%s69 + $0x78] sm:$0xff]
        %v4336 = vld [vmem:[%s69 + $0x80] sm:$0xff]
        %v4337 = vld [vmem:[%s69 + $0x88] sm:$0xff]
        %v4338 = vld [vmem:[%s69 + $0x90] sm:$0xff]
        %v4339 = vld [vmem:[%s69 + $0x98] sm:$0xff]
        %v4340 = vld [vmem:[%s69 + $0xa0] sm:$0xff]
        %v4341 = vld [vmem:[%s69 + $0xa8] sm:$0xff]
        %v4342 = vld [vmem:[%s69 + $0xb0] sm:$0xff]
        %v4343 = vld [vmem:[%s69 + $0xb8] sm:$0xff]
        %v4344 = vld [vmem:[%s69 + $0xc0] sm:$0xff]
        %v4345 = vld [vmem:[%s69 + $0xc8] sm:$0xff]
        %v4346 = vld [vmem:[%s69 + $0xd0] sm:$0xff]
        %v4347 = vld [vmem:[%s69 + $0xd8] sm:$0xff]
        %v4348 = vld [vmem:[%s69 + $0xe0] sm:$0xff]
        %v4349 = vld [vmem:[%s69 + $0xe8] sm:$0xff]
        %v4350 = vld [vmem:[%s69 + $0xf0] sm:$0xff]
        %v4351 = vld [vmem:[%s69 + $0xf8] sm:$0xff]
        %v4352 = vld [vmem:[%s69 + $0x100] sm:$0xff]
        %v4353 = vld [vmem:[%s69 + $0x108] sm:$0xff]
        %v4354 = vadd.f32 %v4285, 0.0
        %v4355 = vlaneseq
        %v4356 = vshrl.u32 %v4355, 7
        %v4357 = vsub.s32 0, %v4356
        %v4358 = vrot.slane %v4354, %v4357
        %v4359 = vmul.f32 %v4286, %v4358
        %v4360 = vmul.f32 %v4287, %v4358
        %v4361 = vmul.f32 %v4288, %v4358
        %v4362 = vmul.f32 %v4289, %v4358
        %v4363 = vmul.f32 %v4290, %v4358
        %v4364 = vmul.f32 %v4291, %v4358
        %v4365 = vmul.f32 %v4292, %v4358
        %v4366 = vmul.f32 %v4293, %v4358
        %v4367 = vmul.f32 %v4294, %v4358
        %v4368 = vmul.f32 %v4295, %v4358
        %v4369 = vmul.f32 %v4296, %v4358
        %v4370 = vmul.f32 %v4297, %v4358
        %v4371 = vmul.f32 %v4298, %v4358
        %v4372 = vmul.f32 %v4299, %v4358
        %v4373 = vmul.f32 %v4300, %v4358
        %v4374 = vmul.f32 %v4301, %v4358
        %v4375 = vmul.f32 %v4302, %v4358
        %v4376 = vmul.f32 %v4303, %v4358
        %v4377 = vmul.f32 %v4304, %v4358
        %v4378 = vmul.f32 %v4305, %v4358
        %v4379 = vmul.f32 %v4306, %v4358
        %v4380 = vmul.f32 %v4307, %v4358
        %v4381 = vmul.f32 %v4308, %v4358
        %v4382 = vmul.f32 %v4309, %v4358
        %v4383 = vmul.f32 %v4310, %v4358
        %v4384 = vmul.f32 %v4311, %v4358
        %v4385 = vmul.f32 %v4312, %v4358
        %v4386 = vmul.f32 %v4313, %v4358
        %v4387 = vmul.f32 %v4314, %v4358
        %v4388 = vmul.f32 %v4315, %v4358
        %v4389 = vmul.f32 %v4316, %v4358
        %v4390 = vmul.f32 %v4317, %v4358
        %v4391 = vmul.f32 %v4318, %v4358
        %v4392 = vmul.f32 %v4319, %v4358
        %4393 = vadd.xlane.f32.xlu0 %v4359
        %v4394 = vpop.xlane.xlu0 %4393
        %4395 = vadd.xlane.f32.xlu0 %v4360
        %v4396 = vpop.xlane.xlu0 %4395
        %4397 = vadd.xlane.f32.xlu0 %v4361
        %v4398 = vpop.xlane.xlu0 %4397
        %4399 = vadd.xlane.f32.xlu0 %v4362
        %v4400 = vpop.xlane.xlu0 %4399
        %4401 = vadd.xlane.f32.xlu0 %v4363
        %v4402 = vpop.xlane.xlu0 %4401
        %4403 = vadd.xlane.f32.xlu0 %v4364
        %v4404 = vpop.xlane.xlu0 %4403
        %4405 = vadd.xlane.f32.xlu0 %v4365
        %v4406 = vpop.xlane.xlu0 %4405
        %4407 = vadd.xlane.f32.xlu0 %v4366
        %v4408 = vpop.xlane.xlu0 %4407
        %4409 = vadd.xlane.f32.xlu0 %v4367
        %v4410 = vpop.xlane.xlu0 %4409
        %4411 = vadd.xlane.f32.xlu0 %v4368
        %v4412 = vpop.xlane.xlu0 %4411
        %4413 = vadd.xlane.f32.xlu0 %v4369
        %v4414 = vpop.xlane.xlu0 %4413
        %4415 = vadd.xlane.f32.xlu0 %v4370
        %v4416 = vpop.xlane.xlu0 %4415
        %4417 = vadd.xlane.f32.xlu0 %v4371
        %v4418 = vpop.xlane.xlu0 %4417
        %4419 = vadd.xlane.f32.xlu0 %v4372
        %v4420 = vpop.xlane.xlu0 %4419
        %4421 = vadd.xlane.f32.xlu0 %v4373
        %v4422 = vpop.xlane.xlu0 %4421
        %4423 = vadd.xlane.f32.xlu0 %v4374
        %v4424 = vpop.xlane.xlu0 %4423
        %4425 = vadd.xlane.f32.xlu0 %v4375
        %v4426 = vpop.xlane.xlu0 %4425
        %4427 = vadd.xlane.f32.xlu0 %v4376
        %v4428 = vpop.xlane.xlu0 %4427
        %4429 = vadd.xlane.f32.xlu0 %v4377
        %v4430 = vpop.xlane.xlu0 %4429
        %4431 = vadd.xlane.f32.xlu0 %v4378
        %v4432 = vpop.xlane.xlu0 %4431
        %4433 = vadd.xlane.f32.xlu0 %v4379
        %v4434 = vpop.xlane.xlu0 %4433
        %4435 = vadd.xlane.f32.xlu0 %v4380
        %v4436 = vpop.xlane.xlu0 %4435
        %4437 = vadd.xlane.f32.xlu0 %v4381
        %v4438 = vpop.xlane.xlu0 %4437
        %4439 = vadd.xlane.f32.xlu0 %v4382
        %v4440 = vpop.xlane.xlu0 %4439
        %4441 = vadd.xlane.f32.xlu0 %v4383
        %v4442 = vpop.xlane.xlu0 %4441
        %4443 = vadd.xlane.f32.xlu0 %v4384
        %v4444 = vpop.xlane.xlu0 %4443
        %4445 = vadd.xlane.f32.xlu0 %v4385
        %v4446 = vpop.xlane.xlu0 %4445
        %4447 = vadd.xlane.f32.xlu0 %v4386
        %v4448 = vpop.xlane.xlu0 %4447
        %4449 = vadd.xlane.f32.xlu0 %v4387
        %v4450 = vpop.xlane.xlu0 %4449
        %4451 = vadd.xlane.f32.xlu0 %v4388
        %v4452 = vpop.xlane.xlu0 %4451
        %4453 = vadd.xlane.f32.xlu0 %v4389
        %v4454 = vpop.xlane.xlu0 %4453
        %4455 = vadd.xlane.f32.xlu0 %v4390
        %v4456 = vpop.xlane.xlu0 %4455
        %4457 = vadd.xlane.f32.xlu0 %v4391
        %v4458 = vpop.xlane.xlu0 %4457
        %4459 = vadd.xlane.f32.xlu0 %v4392
        %v4460 = vpop.xlane.xlu0 %4459
        %v4461 = vadd.f32 %v4394, %v4320
        %v4462 = vadd.f32 %v4396, %v4321
        %v4463 = vadd.f32 %v4398, %v4322
        %v4464 = vadd.f32 %v4400, %v4323
        %v4465 = vadd.f32 %v4402, %v4324
        %v4466 = vadd.f32 %v4404, %v4325
        %v4467 = vadd.f32 %v4406, %v4326
        %v4468 = vadd.f32 %v4408, %v4327
        %v4469 = vadd.f32 %v4410, %v4328
        %v4470 = vadd.f32 %v4412, %v4329
        %v4471 = vadd.f32 %v4414, %v4330
        %v4472 = vadd.f32 %v4416, %v4331
        %v4473 = vadd.f32 %v4418, %v4332
        %v4474 = vadd.f32 %v4420, %v4333
        %v4475 = vadd.f32 %v4422, %v4334
        %v4476 = vadd.f32 %v4424, %v4335
        %v4477 = vadd.f32 %v4426, %v4336
        %v4478 = vadd.f32 %v4428, %v4337
        %v4479 = vadd.f32 %v4430, %v4338
        %v4480 = vadd.f32 %v4432, %v4339
        %v4481 = vadd.f32 %v4434, %v4340
        %v4482 = vadd.f32 %v4436, %v4341
        %v4483 = vadd.f32 %v4438, %v4342
        %v4484 = vadd.f32 %v4440, %v4343
        %v4485 = vadd.f32 %v4442, %v4344
        %v4486 = vadd.f32 %v4444, %v4345
        %v4487 = vadd.f32 %v4446, %v4346
        %v4488 = vadd.f32 %v4448, %v4347
        %v4489 = vadd.f32 %v4450, %v4348
        %v4490 = vadd.f32 %v4452, %v4349
        %v4491 = vadd.f32 %v4454, %v4350
        %v4492 = vadd.f32 %v4456, %v4351
        %v4493 = vadd.f32 %v4458, %v4352
        %v4494 = vadd.f32 %v4460, %v4353
        %v4495 = vld [vmem:[%s1618] sm:$0x77]
        %v4496 = vld [vmem:[%s71] sm:$0xff]
        %v4497 = vld [vmem:[%s71 + $0x8] sm:$0xff]
        %v4498 = vld [vmem:[%s71 + $0x10] sm:$0xff]
        %v4499 = vld [vmem:[%s71 + $0x18] sm:$0xff]
        %v4500 = vld [vmem:[%s71 + $0x20] sm:$0xff]
        %v4501 = vld [vmem:[%s71 + $0x28] sm:$0xff]
        %v4502 = vld [vmem:[%s71 + $0x30] sm:$0xff]
        %v4503 = vld [vmem:[%s71 + $0x38] sm:$0xff]
        %v4504 = vld [vmem:[%s73] sm:$0xff]
        %v4505 = vld [vmem:[%s73 + $0x8] sm:$0xff]
        %v4506 = vld [vmem:[%s73 + $0x10] sm:$0xff]
        %v4507 = vld [vmem:[%s73 + $0x18] sm:$0xff]
        %v4508 = vld [vmem:[%s73 + $0x20] sm:$0xff]
        %v4509 = vld [vmem:[%s73 + $0x28] sm:$0xff]
        %v4510 = vld [vmem:[%s73 + $0x30] sm:$0xff]
        %v4511 = vld [vmem:[%s73 + $0x38] sm:$0xff]
        %v4512 = vadd.f32 %v4461, 1.0
        %v4513 = vadd.f32 %v4462, 1.0
        %v4514 = vadd.f32 %v4463, 1.0
        %v4515 = vadd.f32 %v4464, 1.0
        %v4516 = vadd.f32 %v4465, 1.0
        %v4517 = vadd.f32 %v4466, 1.0
        %v4518 = vadd.f32 %v4467, 1.0
        %v4519 = vadd.f32 %v4468, 1.0
        %4521 = vset.pattern.permute.xlu0 0
        %4522 = vperm.xlu0 %4521, %v4512
        %v4523 = vpop.permute.xlu0 %4522
        %4526 = vset.pattern.permute.xlu0 0
        %4527 = vperm.xlu0 %4526, %v4513
        %v4528 = vpop.permute.xlu0 %4527
        %4531 = vset.pattern.permute.xlu0 0
        %4532 = vperm.xlu0 %4531, %v4514
        %v4533 = vpop.permute.xlu0 %4532
        %4536 = vset.pattern.permute.xlu0 0
        %4537 = vperm.xlu0 %4536, %v4515
        %v4538 = vpop.permute.xlu0 %4537
        %4541 = vset.pattern.permute.xlu0 0
        %4542 = vperm.xlu0 %4541, %v4516
        %v4543 = vpop.permute.xlu0 %4542
        %4546 = vset.pattern.permute.xlu0 0
        %4547 = vperm.xlu0 %4546, %v4517
        %v4548 = vpop.permute.xlu0 %4547
        %4551 = vset.pattern.permute.xlu0 0
        %4552 = vperm.xlu0 %4551, %v4518
        %v4553 = vpop.permute.xlu0 %4552
        %4556 = vset.pattern.permute.xlu0 0
        %4557 = vperm.xlu0 %4556, %v4519
        %v4558 = vpop.permute.xlu0 %4557
        %v4560 = vmul.f32 %v4496, %v4523
        %v4561 = vmul.f32 %v4497, %v4528
        %v4562 = vmul.f32 %v4498, %v4533
        %v4563 = vmul.f32 %v4499, %v4538
        %v4564 = vmul.f32 %v4500, %v4543
        %v4565 = vmul.f32 %v4501, %v4548
        %v4566 = vmul.f32 %v4502, %v4553
        %v4567 = vmul.f32 %v4503, %v4558
        %v4568 = vmul.f32 %v4504, %v4512
        %v4569 = vmul.f32 %v4505, %v4513
        %v4570 = vmul.f32 %v4506, %v4514
        %v4571 = vmul.f32 %v4507, %v4515
        %v4572 = vmul.f32 %v4508, %v4516
        %v4573 = vmul.f32 %v4509, %v4517
        %v4574 = vmul.f32 %v4510, %v4518
        %v4575 = vmul.f32 %v4511, %v4519
        %v4576 = vadd.f32 %v4568, %v4469
        %v4577 = vadd.f32 %v4569, %v4470
        %v4578 = vadd.f32 %v4570, %v4471
        %v4579 = vadd.f32 %v4571, %v4472
        %v4580 = vadd.f32 %v4572, %v4473
        %v4581 = vadd.f32 %v4573, %v4474
        %v4582 = vadd.f32 %v4574, %v4475
        %v4583 = vadd.f32 %v4575, %v4476
        %4585 = vset.pattern.permute.xlu0 0
        %4586 = vperm.xlu0 %4585, %v4576
        %v4587 = vpop.permute.xlu0 %4586
        %4590 = vset.pattern.permute.xlu0 0
        %4591 = vperm.xlu0 %4590, %v4577
        %v4592 = vpop.permute.xlu0 %4591
        %4595 = vset.pattern.permute.xlu0 0
        %4596 = vperm.xlu0 %4595, %v4578
        %v4597 = vpop.permute.xlu0 %4596
        %4600 = vset.pattern.permute.xlu0 0
        %4601 = vperm.xlu0 %4600, %v4579
        %v4602 = vpop.permute.xlu0 %4601
        %4605 = vset.pattern.permute.xlu0 0
        %4606 = vperm.xlu0 %4605, %v4580
        %v4607 = vpop.permute.xlu0 %4606
        %4610 = vset.pattern.permute.xlu0 0
        %4611 = vperm.xlu0 %4610, %v4581
        %v4612 = vpop.permute.xlu0 %4611
        %4615 = vset.pattern.permute.xlu0 0
        %4616 = vperm.xlu0 %4615, %v4582
        %v4617 = vpop.permute.xlu0 %4616
        %4620 = vset.pattern.permute.xlu0 0
        %4621 = vperm.xlu0 %4620, %v4583
        %v4622 = vpop.permute.xlu0 %4621
        %v4625 = vcombine.high %v4495, %v4495
        %vm4626 = vcmask 23552
        %v4628 = vsel %vm4626, %v4560, 0
        %v4631 = vsel %vm4626, %v4561, 0
        %v4634 = vsel %vm4626, %v4562, 0
        %v4637 = vsel %vm4626, %v4563, 0
        %v4640 = vsel %vm4626, %v4564, 0
        %v4643 = vsel %vm4626, %v4565, 0
        %v4646 = vsel %vm4626, %v4566, 0
        %v4649 = vsel %vm4626, %v4567, 0
        %vm4651 = vcmask 1042432
        %v4652 = vsel %vm4651, %v4495, 0
        %v4654 = vsel %vm4651, %v4625, 0
        %4656 = vmatprep.subr.mxu0 %v4654
        %4657 = vmatpush1.msra.mxu0 %v4652
        %4658 = vmatprep.subr.mxu0 0.0
        %4659 = vmatpush1.msra.mxu0 0.0
        %4660 = vmatprep.subr.mxu0 0.0
        %4661 = vmatpush1.msra.mxu0 0.0
        %4662 = vmatprep.subr.mxu0 0.0
        %4663 = vmatpush1.msra.mxu0 0.0
        %4664 = vmatprep.subr.mxu0 0.0
        %4665 = vmatpush1.msra.mxu0 0.0
        %4666 = vmatprep.subr.mxu0 0.0
        %4667 = vmatpush1.msra.mxu0 0.0
        %4668 = vmatprep.subr.mxu0 0.0
        %4669 = vmatpush1.msra.mxu0 0.0
        %4670 = vmatprep.subr.mxu0 0.0
        %4671 = vmatpush1.msra.mxu0 0.0
        %4672 = vmatprep.subr.mxu0 0.0
        %4673 = vmatpush1.msra.mxu0 0.0
        %4674 = vmatprep.subr.mxu0 0.0
        %4675 = vmatpush1.msra.mxu0 0.0
        %4676 = vmatprep.subr.mxu0 0.0
        %4677 = vmatpush1.msra.mxu0 0.0
        %4678 = vmatprep.subr.mxu0 0.0
        %4679 = vmatpush1.msra.mxu0 0.0
        %4680 = vmatprep.subr.mxu0 0.0
        %4681 = vmatpush1.msra.mxu0 0.0
        %4682 = vmatprep.subr.mxu0 0.0
        %4683 = vmatpush1.msra.mxu0 0.0
        %4684 = vmatprep.subr.mxu0 0.0
        %4685 = vmatpush1.msra.mxu0 0.0
        %4686 = vmatprep.subr.mxu0 0.0
        %4687 = vmatpush1.msra.mxu0 0.0
        %4688 = vmatprep.subr.mxu0 0.0
        %4689 = vmatpush1.msra.mxu0 0.0
        %4690 = vmatprep.subr.mxu0 0.0
        %4691 = vmatpush1.msra.mxu0 0.0
        %4692 = vmatprep.subr.mxu0 0.0
        %4693 = vmatpush1.msra.mxu0 0.0
        %4694 = vmatprep.subr.mxu0 0.0
        %4695 = vmatpush1.msra.mxu0 0.0
        %4696 = vmatprep.subr.mxu0 0.0
        %4697 = vmatpush1.msra.mxu0 0.0
        %4698 = vmatprep.subr.mxu0 0.0
        %4699 = vmatpush1.msra.mxu0 0.0
        %4700 = vmatprep.subr.mxu0 0.0
        %4701 = vmatpush1.msra.mxu0 0.0
        %4702 = vmatprep.subr.mxu0 0.0
        %4703 = vmatpush1.msra.mxu0 0.0
        %4704 = vmatprep.subr.mxu0 0.0
        %4705 = vmatpush1.msra.mxu0 0.0
        %4706 = vmatprep.subr.mxu0 0.0
        %4707 = vmatpush1.msra.mxu0 0.0
        %4708 = vmatprep.subr.mxu0 0.0
        %4709 = vmatpush1.msra.mxu0 0.0
        %4710 = vmatprep.subr.mxu0 0.0
        %4711 = vmatpush1.msra.mxu0 0.0
        %4712 = vmatprep.subr.mxu0 0.0
        %4713 = vmatpush1.msra.mxu0 0.0
        %4714 = vmatprep.subr.mxu0 0.0
        %4715 = vmatpush1.msra.mxu0 0.0
        %4716 = vmatprep.subr.mxu0 0.0
        %4717 = vmatpush1.msra.mxu0 0.0
        %4718 = vmatprep.subr.mxu0 0.0
        %4719 = vmatpush1.msra.mxu0 0.0
        %4720 = vmatprep.mubr.f32.mxu0 0.0
        %4721 = vmatmul.mubr.f32.gmra.mrb[0].mxu0 %v4628
        %v4722 = vpop.f32.mrb[0].mxu0
        %v4723 = vadd.f32 %v4587, %v4722
        %v4724 = vpop.f32.mrb[0].mxu0
        %v4725 = vadd.f32 %v4587, %v4724
        %4726 = vmatprep.mubr.f32.mxu0 0.0
        %4727 = vmatmul.mubr.f32.gmra.mrb[0].mxu0 %v4631
        %v4728 = vpop.f32.mrb[0].mxu0
        %v4729 = vadd.f32 %v4592, %v4728
        %v4730 = vpop.f32.mrb[0].mxu0
        %v4731 = vadd.f32 %v4592, %v4730
        %4732 = vmatprep.mubr.f32.mxu0 0.0
        %4733 = vmatmul.mubr.f32.gmra.mrb[0].mxu0 %v4634
        %v4734 = vpop.f32.mrb[0].mxu0
        %v4735 = vadd.f32 %v4597, %v4734
        %v4736 = vpop.f32.mrb[0].mxu0
        %v4737 = vadd.f32 %v4597, %v4736
        %4738 = vmatprep.mubr.f32.mxu0 0.0
        %4739 = vmatmul.mubr.f32.gmra.mrb[0].mxu0 %v4637
        %v4740 = vpop.f32.mrb[0].mxu0
        %v4741 = vadd.f32 %v4602, %v4740
        %v4742 = vpop.f32.mrb[0].mxu0
        %v4743 = vadd.f32 %v4602, %v4742
        %4744 = vmatprep.mubr.f32.mxu0 0.0
        %4745 = vmatmul.mubr.f32.gmra.mrb[0].mxu0 %v4640
        %v4746 = vpop.f32.mrb[0].mxu0
        %v4747 = vadd.f32 %v4607, %v4746
        %v4748 = vpop.f32.mrb[0].mxu0
        %v4749 = vadd.f32 %v4607, %v4748
        %4750 = vmatprep.mubr.f32.mxu0 0.0
        %4751 = vmatmul.mubr.f32.gmra.mrb[0].mxu0 %v4643
        %v4752 = vpop.f32.mrb[0].mxu0
        %v4753 = vadd.f32 %v4612, %v4752
        %v4754 = vpop.f32.mrb[0].mxu0
        %v4755 = vadd.f32 %v4612, %v4754
        %4756 = vmatprep.mubr.f32.mxu0 0.0
        %4757 = vmatmul.mubr.f32.gmra.mrb[0].mxu0 %v4646
        %v4758 = vpop.f32.mrb[0].mxu0
        %v4759 = vadd.f32 %v4617, %v4758
        %v4760 = vpop.f32.mrb[0].mxu0
        %v4761 = vadd.f32 %v4617, %v4760
        %4762 = vmatprep.mubr.f32.mxu0 0.0
        %4763 = vmatmul.mubr.f32.gmra.mrb[0].mxu0 %v4649
        %v4764 = vpop.f32.mrb[0].mxu0
        %v4765 = vadd.f32 %v4622, %v4764
        %v4766 = vpop.f32.mrb[0].mxu0
        %v4767 = vadd.f32 %v4622, %v4766
        %4768 = vdwg.mxu0
        %v4769 = vmax.f32 %v4723, 0.0
        %v4770 = vmax.f32 %v4725, 0.0
        %v4771 = vmax.f32 %v4729, 0.0
        %v4772 = vmax.f32 %v4731, 0.0
        %v4773 = vmax.f32 %v4735, 0.0
        %v4774 = vmax.f32 %v4737, 0.0
        %v4775 = vmax.f32 %v4741, 0.0
        %v4776 = vmax.f32 %v4743, 0.0
        %v4777 = vmax.f32 %v4747, 0.0
        %v4778 = vmax.f32 %v4749, 0.0
        %v4779 = vmax.f32 %v4753, 0.0
        %v4780 = vmax.f32 %v4755, 0.0
        %v4781 = vmax.f32 %v4759, 0.0
        %v4782 = vmax.f32 %v4761, 0.0
        %v4783 = vmax.f32 %v4765, 0.0
        %v4784 = vmax.f32 %v4767, 0.0
        %v4785 = vld [vmem:[%s75] sm:$0xff]
        %v4786 = vld [vmem:[%s75 + $0x8] sm:$0xff]
        %v4787 = vld [vmem:[%s75 + $0x10] sm:$0xff]
        %v4788 = vld [vmem:[%s75 + $0x18] sm:$0xff]
        %v4789 = vld [vmem:[%s75 + $0x20] sm:$0xff]
        %v4790 = vld [vmem:[%s75 + $0x28] sm:$0xff]
        %v4791 = vld [vmem:[%s75 + $0x30] sm:$0xff]
        %v4792 = vld [vmem:[%s75 + $0x38] sm:$0xff]
        %v4793 = vld [vmem:[%s77] sm:$0xff]
        %v4794 = vld [vmem:[%s77 + $0x8] sm:$0xff]
        %v4795 = vld [vmem:[%s77 + $0x10] sm:$0xff]
        %v4796 = vld [vmem:[%s77 + $0x18] sm:$0xff]
        %v4797 = vld [vmem:[%s77 + $0x20] sm:$0xff]
        %v4798 = vld [vmem:[%s77 + $0x28] sm:$0xff]
        %v4799 = vld [vmem:[%s77 + $0x30] sm:$0xff]
        %v4800 = vld [vmem:[%s77 + $0x38] sm:$0xff]
        %v4801 = vadd.f32 %v4477, 1.0
        %v4802 = vadd.f32 %v4478, 1.0
        %v4803 = vadd.f32 %v4479, 1.0
        %v4804 = vadd.f32 %v4480, 1.0
        %v4805 = vadd.f32 %v4481, 1.0
        %v4806 = vadd.f32 %v4482, 1.0
        %v4807 = vadd.f32 %v4483, 1.0
        %v4808 = vadd.f32 %v4484, 1.0
        %4810 = vset.pattern.permute.xlu0 0
        %4811 = vperm.xlu0 %4810, %v4801
        %v4812 = vpop.permute.xlu0 %4811
        %4815 = vset.pattern.permute.xlu0 0
        %4816 = vperm.xlu0 %4815, %v4802
        %v4817 = vpop.permute.xlu0 %4816
        %4820 = vset.pattern.permute.xlu0 0
        %4821 = vperm.xlu0 %4820, %v4803
        %v4822 = vpop.permute.xlu0 %4821
        %4825 = vset.pattern.permute.xlu0 0
        %4826 = vperm.xlu0 %4825, %v4804
        %v4827 = vpop.permute.xlu0 %4826
        %4830 = vset.pattern.permute.xlu0 0
        %4831 = vperm.xlu0 %4830, %v4805
        %v4832 = vpop.permute.xlu0 %4831
        %4835 = vset.pattern.permute.xlu0 0
        %4836 = vperm.xlu0 %4835, %v4806
        %v4837 = vpop.permute.xlu0 %4836
        %4840 = vset.pattern.permute.xlu0 0
        %4841 = vperm.xlu0 %4840, %v4807
        %v4842 = vpop.permute.xlu0 %4841
        %4845 = vset.pattern.permute.xlu0 0
        %4846 = vperm.xlu0 %4845, %v4808
        %v4847 = vpop.permute.xlu0 %4846
        %v4849 = vmul.f32 %v4785, %v4812
        %v4850 = vmul.f32 %v4786, %v4817
        %v4851 = vmul.f32 %v4787, %v4822
        %v4852 = vmul.f32 %v4788, %v4827
        %v4853 = vmul.f32 %v4789, %v4832
        %v4854 = vmul.f32 %v4790, %v4837
        %v4855 = vmul.f32 %v4791, %v4842
        %v4856 = vmul.f32 %v4792, %v4847
        %v4857 = vmul.f32 %v4793, %v4801
        %v4858 = vmul.f32 %v4794, %v4802
        %v4859 = vmul.f32 %v4795, %v4803
        %v4860 = vmul.f32 %v4796, %v4804
        %v4861 = vmul.f32 %v4797, %v4805
        %v4862 = vmul.f32 %v4798, %v4806
        %v4863 = vmul.f32 %v4799, %v4807
        %v4864 = vmul.f32 %v4800, %v4808
        %v4865 = vadd.f32 %v4857, %v4485
        %v4866 = vadd.f32 %v4858, %v4486
        %v4867 = vadd.f32 %v4859, %v4487
        %v4868 = vadd.f32 %v4860, %v4488
        %v4869 = vadd.f32 %v4861, %v4489
        %v4870 = vadd.f32 %v4862, %v4490
        %v4871 = vadd.f32 %v4863, %v4491
        %v4872 = vadd.f32 %v4864, %v4492
        %4874 = vset.pattern.permute.xlu0 0
        %4875 = vperm.xlu0 %4874, %v4865
        %v4876 = vpop.permute.xlu0 %4875
        %4879 = vset.pattern.permute.xlu0 0
        %4880 = vperm.xlu0 %4879, %v4866
        %v4881 = vpop.permute.xlu0 %4880
        %4884 = vset.pattern.permute.xlu0 0
        %4885 = vperm.xlu0 %4884, %v4867
        %v4886 = vpop.permute.xlu0 %4885
        %4889 = vset.pattern.permute.xlu0 0
        %4890 = vperm.xlu0 %4889, %v4868
        %v4891 = vpop.permute.xlu0 %4890
        %4894 = vset.pattern.permute.xlu0 0
        %4895 = vperm.xlu0 %4894, %v4869
        %v4896 = vpop.permute.xlu0 %4895
        %4899 = vset.pattern.permute.xlu0 0
        %4900 = vperm.xlu0 %4899, %v4870
        %v4901 = vpop.permute.xlu0 %4900
        %4904 = vset.pattern.permute.xlu0 0
        %4905 = vperm.xlu0 %4904, %v4871
        %v4906 = vpop.permute.xlu0 %4905
        %4909 = vset.pattern.permute.xlu0 0
        %4910 = vperm.xlu0 %4909, %v4872
        %v4911 = vpop.permute.xlu0 %4910
        %v4914 = vsel %vm3285, %v4849, 0
        %v4917 = vsel %vm3285, %v4850, 0
        %v4920 = vsel %vm3285, %v4851, 0
        %v4923 = vsel %vm3285, %v4852, 0
        %v4926 = vsel %vm3285, %v4853, 0
        %v4929 = vsel %vm3285, %v4854, 0
        %v4932 = vsel %vm3285, %v4855, 0
        %v4935 = vsel %vm3285, %v4856, 0
        %4937 = vmatprep.subr.mxu0 %v4770
        %4938 = vmatpush1.msra.mxu0 %v4769
        %4939 = vmatprep.subr.mxu0 %v4772
        %4940 = vmatpush1.msra.mxu0 %v4771
        %4941 = vmatprep.subr.mxu0 %v4774
        %4942 = vmatpush1.msra.mxu0 %v4773
        %4943 = vmatprep.subr.mxu0 %v4776
        %4944 = vmatpush1.msra.mxu0 %v4775
        %4945 = vmatprep.subr.mxu0 %v4778
        %4946 = vmatpush1.msra.mxu0 %v4777
        %4947 = vmatprep.subr.mxu0 %v4780
        %4948 = vmatpush1.msra.mxu0 %v4779
        %4949 = vmatprep.subr.mxu0 %v4782
        %4950 = vmatpush1.msra.mxu0 %v4781
        %4951 = vmatprep.subr.mxu0 %v4784
        %4952 = vmatpush1.msra.mxu0 %v4783
        %4953 = vmatprep.subr.mxu0 0.0
        %4954 = vmatpush1.msra.mxu0 0.0
        %4955 = vmatprep.subr.mxu0 0.0
        %4956 = vmatpush1.msra.mxu0 0.0
        %4957 = vmatprep.subr.mxu0 0.0
        %4958 = vmatpush1.msra.mxu0 0.0
        %4959 = vmatprep.subr.mxu0 0.0
        %4960 = vmatpush1.msra.mxu0 0.0
        %4961 = vmatprep.subr.mxu0 0.0
        %4962 = vmatpush1.msra.mxu0 0.0
        %4963 = vmatprep.subr.mxu0 0.0
        %4964 = vmatpush1.msra.mxu0 0.0
        %4965 = vmatprep.subr.mxu0 0.0
        %4966 = vmatpush1.msra.mxu0 0.0
        %4967 = vmatprep.subr.mxu0 0.0
        %4968 = vmatpush1.msra.mxu0 0.0
        %4969 = vmatprep.subr.mxu0 0.0
        %4970 = vmatpush1.msra.mxu0 0.0
        %4971 = vmatprep.subr.mxu0 0.0
        %4972 = vmatpush1.msra.mxu0 0.0
        %4973 = vmatprep.subr.mxu0 0.0
        %4974 = vmatpush1.msra.mxu0 0.0
        %4975 = vmatprep.subr.mxu0 0.0
        %4976 = vmatpush1.msra.mxu0 0.0
        %4977 = vmatprep.subr.mxu0 0.0
        %4978 = vmatpush1.msra.mxu0 0.0
        %4979 = vmatprep.subr.mxu0 0.0
        %4980 = vmatpush1.msra.mxu0 0.0
        %4981 = vmatprep.subr.mxu0 0.0
        %4982 = vmatpush1.msra.mxu0 0.0
        %4983 = vmatprep.subr.mxu0 0.0
        %4984 = vmatpush1.msra.mxu0 0.0
        %4985 = vmatprep.subr.mxu0 0.0
        %4986 = vmatpush1.msra.mxu0 0.0
        %4987 = vmatprep.subr.mxu0 0.0
        %4988 = vmatpush1.msra.mxu0 0.0
        %4989 = vmatprep.subr.mxu0 0.0
        %4990 = vmatpush1.msra.mxu0 0.0
        %4991 = vmatprep.subr.mxu0 0.0
        %4992 = vmatpush1.msra.mxu0 0.0
        %4993 = vmatprep.subr.mxu0 0.0
        %4994 = vmatpush1.msra.mxu0 0.0
        %4995 = vmatprep.subr.mxu0 0.0
        %4996 = vmatpush1.msra.mxu0 0.0
        %4997 = vmatprep.subr.mxu0 0.0
        %4998 = vmatpush1.msra.mxu0 0.0
        %4999 = vmatprep.subr.mxu0 0.0
        %5000 = vmatpush1.msra.mxu0 0.0
        %5001 = vmatprep.mubr.f32.mxu0 0.0
        %5002 = vmatmul.mubr.f32.gmra.mrb[0].mxu0 %v4914
        %v5003 = vpop.f32.mrb[0].mxu0
        %v5004 = vadd.f32 %v4876, %v5003
        %v5005 = vpop.f32.mrb[0].mxu0
        %v5006 = vadd.f32 %v4876, %v5005
        %5007 = vmatprep.mubr.f32.mxu0 0.0
        %5008 = vmatmul.mubr.f32.gmra.mrb[0].mxu0 %v4917
        %v5009 = vpop.f32.mrb[0].mxu0
        %v5010 = vadd.f32 %v4881, %v5009
        %v5011 = vpop.f32.mrb[0].mxu0
        %v5012 = vadd.f32 %v4881, %v5011
        %5013 = vmatprep.mubr.f32.mxu0 0.0
        %5014 = vmatmul.mubr.f32.gmra.mrb[0].mxu0 %v4920
        %v5015 = vpop.f32.mrb[0].mxu0
        %v5016 = vadd.f32 %v4886, %v5015
        %v5017 = vpop.f32.mrb[0].mxu0
        %v5018 = vadd.f32 %v4886, %v5017
        %5019 = vmatprep.mubr.f32.mxu0 0.0
        %5020 = vmatmul.mubr.f32.gmra.mrb[0].mxu0 %v4923
        %v5021 = vpop.f32.mrb[0].mxu0
        %v5022 = vadd.f32 %v4891, %v5021
        %v5023 = vpop.f32.mrb[0].mxu0
        %v5024 = vadd.f32 %v4891, %v5023
        %5025 = vmatprep.mubr.f32.mxu0 0.0
        %5026 = vmatmul.mubr.f32.gmra.mrb[0].mxu0 %v4926
        %v5027 = vpop.f32.mrb[0].mxu0
        %v5028 = vadd.f32 %v4896, %v5027
        %v5029 = vpop.f32.mrb[0].mxu0
        %v5030 = vadd.f32 %v4896, %v5029
        %5031 = vmatprep.mubr.f32.mxu0 0.0
        %5032 = vmatmul.mubr.f32.gmra.mrb[0].mxu0 %v4929
        %v5033 = vpop.f32.mrb[0].mxu0
        %v5034 = vadd.f32 %v4901, %v5033
        %v5035 = vpop.f32.mrb[0].mxu0
        %v5036 = vadd.f32 %v4901, %v5035
        %5037 = vmatprep.mubr.f32.mxu0 0.0
        %5038 = vmatmul.mubr.f32.gmra.mrb[0].mxu0 %v4932
        %v5039 = vpop.f32.mrb[0].mxu0
        %v5040 = vadd.f32 %v4906, %v5039
        %v5041 = vpop.f32.mrb[0].mxu0
        %v5042 = vadd.f32 %v4906, %v5041
        %5043 = vmatprep.mubr.f32.mxu0 0.0
        %5044 = vmatmul.mubr.f32.gmra.mrb[0].mxu0 %v4935
        %v5045 = vpop.f32.mrb[0].mxu0
        %v5046 = vadd.f32 %v4911, %v5045
        %v5047 = vpop.f32.mrb[0].mxu0
        %v5048 = vadd.f32 %v4911, %v5047
        %5049 = vdwg.mxu0
        %v5050 = vmax.f32 %v5004, 0.0
        %v5051 = vmax.f32 %v5006, 0.0
        %v5052 = vmax.f32 %v5010, 0.0
        %v5053 = vmax.f32 %v5012, 0.0
        %v5054 = vmax.f32 %v5016, 0.0
        %v5055 = vmax.f32 %v5018, 0.0
        %v5056 = vmax.f32 %v5022, 0.0
        %v5057 = vmax.f32 %v5024, 0.0
        %v5058 = vmax.f32 %v5028, 0.0
        %v5059 = vmax.f32 %v5030, 0.0
        %v5060 = vmax.f32 %v5034, 0.0
        %v5061 = vmax.f32 %v5036, 0.0
        %v5062 = vmax.f32 %v5040, 0.0
        %v5063 = vmax.f32 %v5042, 0.0
        %v5064 = vmax.f32 %v5046, 0.0
        %v5065 = vmax.f32 %v5048, 0.0
        %v5066 = vld [vmem:[%s79] sm:$0x7]
        %v5067 = vld [vmem:[%s81] sm:$0x7]
        %v5068 = vadd.f32 %v4493, 1.0
        %5070 = vset.pattern.permute.xlu0 0
        %5071 = vperm.xlu0 %5070, %v5068
        %v5072 = vpop.permute.xlu0 %5071
        %v5074 = vmul.f32 %v5066, %v5072
        %v5075 = vmul.f32 %v5067, %v5068
        %v5076 = vadd.f32 %v5075, %v4494
        %5078 = vset.pattern.permute.xlu0 0
        %5079 = vperm.xlu0 %5078, %v5076
        %v5080 = vpop.permute.xlu0 %5079
        %v5083 = vsel %vm3285, %v5074, 0
        %5085 = vmatprep.subr.mxu0 %v5051
        %5086 = vmatpush1.msra.mxu0 %v5050
        %5087 = vmatprep.subr.mxu0 %v5053
        %5088 = vmatpush1.msra.mxu0 %v5052
        %5089 = vmatprep.subr.mxu0 %v5055
        %5090 = vmatpush1.msra.mxu0 %v5054
        %5091 = vmatprep.subr.mxu0 %v5057
        %5092 = vmatpush1.msra.mxu0 %v5056
        %5093 = vmatprep.subr.mxu0 %v5059
        %5094 = vmatpush1.msra.mxu0 %v5058
        %5095 = vmatprep.subr.mxu0 %v5061
        %5096 = vmatpush1.msra.mxu0 %v5060
        %5097 = vmatprep.subr.mxu0 %v5063
        %5098 = vmatpush1.msra.mxu0 %v5062
        %5099 = vmatprep.subr.mxu0 %v5065
        %5100 = vmatpush1.msra.mxu0 %v5064
        %5101 = vmatprep.subr.mxu0 0.0
        %5102 = vmatpush1.msra.mxu0 0.0
        %5103 = vmatprep.subr.mxu0 0.0
        %5104 = vmatpush1.msra.mxu0 0.0
        %5105 = vmatprep.subr.mxu0 0.0
        %5106 = vmatpush1.msra.mxu0 0.0
        %5107 = vmatprep.subr.mxu0 0.0
        %5108 = vmatpush1.msra.mxu0 0.0
        %5109 = vmatprep.subr.mxu0 0.0
        %5110 = vmatpush1.msra.mxu0 0.0
        %5111 = vmatprep.subr.mxu0 0.0
        %5112 = vmatpush1.msra.mxu0 0.0
        %5113 = vmatprep.subr.mxu0 0.0
        %5114 = vmatpush1.msra.mxu0 0.0
        %5115 = vmatprep.subr.mxu0 0.0
        %5116 = vmatpush1.msra.mxu0 0.0
        %5117 = vmatprep.subr.mxu0 0.0
        %5118 = vmatpush1.msra.mxu0 0.0
        %5119 = vmatprep.subr.mxu0 0.0
        %5120 = vmatpush1.msra.mxu0 0.0
        %5121 = vmatprep.subr.mxu0 0.0
        %5122 = vmatpush1.msra.mxu0 0.0
        %5123 = vmatprep.subr.mxu0 0.0
        %5124 = vmatpush1.msra.mxu0 0.0
        %5125 = vmatprep.subr.mxu0 0.0
        %5126 = vmatpush1.msra.mxu0 0.0
        %5127 = vmatprep.subr.mxu0 0.0
        %5128 = vmatpush1.msra.mxu0 0.0
        %5129 = vmatprep.subr.mxu0 0.0
        %5130 = vmatpush1.msra.mxu0 0.0
        %5131 = vmatprep.subr.mxu0 0.0
        %5132 = vmatpush1.msra.mxu0 0.0
        %5133 = vmatprep.subr.mxu0 0.0
        %5134 = vmatpush1.msra.mxu0 0.0
        %5135 = vmatprep.subr.mxu0 0.0
        %5136 = vmatpush1.msra.mxu0 0.0
        %5137 = vmatprep.subr.mxu0 0.0
        %5138 = vmatpush1.msra.mxu0 0.0
        %5139 = vmatprep.subr.mxu0 0.0
        %5140 = vmatpush1.msra.mxu0 0.0
        %5141 = vmatprep.subr.mxu0 0.0
        %5142 = vmatpush1.msra.mxu0 0.0
        %5143 = vmatprep.subr.mxu0 0.0
        %5144 = vmatpush1.msra.mxu0 0.0
        %5145 = vmatprep.subr.mxu0 0.0
        %5146 = vmatpush1.msra.mxu0 0.0
        %5147 = vmatprep.subr.mxu0 0.0
        %5148 = vmatpush1.msra.mxu0 0.0
        %5149 = vmatprep.mubr.f32.mxu0 0.0
        %5150 = vmatmul.mubr.f32.gmra.mrb[0].mxu0 %v5083
        %v5151 = vpop.f32.mrb[0].mxu0
        %v5152 = vadd.f32 %v5080, %v5151
        %v5153 = vpop.f32.mrb[0].mxu0
        %v5154 = vadd.f32 %v5080, %v5153
        %5155 = vdwg.mxu0
        %v5158 = vcombine.low %v5152, %v5154
        %5160 = vst [vmem:[%s1623] sm:$0x77] %v5158
        %p5161 = scmp.lt.s32.totalorder %s110, 1
        %s5162 = scalar_select %p5161, %s110, 1
        %s5163 = smul.addr %s5162, 2
        %s5164 = smul.addr %s5163, 4
        %s5165 = scalar_lea.vmem %s83, %s5164
        // Predicated region
        $region293: #{tpu_custom_call.1} parent=183 // pred_check
          %p5166 = pneg %p999
        $region294: #{tpu_custom_call.1} parent=183 // pred_check_branch
          %5168 = sbr.rel (%p5166) target = $region296
        $region295: #{tpu_custom_call.1} parent=183 // pred_region
          _
        $region296: #{tpu_custom_call.1} parent=183 // pred_fallthru
          _
      $region184: #{tpu_custom_call.1} parent=5 // pred_fallthru
        _
      %p5169 = scmp.le.s32.totalorder 2, %s105
      // Predicated region
      $region297: #{tpu_custom_call.1} parent=5 // pred_check
        %p5170 = pneg %p5169
      $region298: #{tpu_custom_call.1} parent=5 // pred_check_branch
        %5172 = sbr.rel (%p5170) target = $region300
      $region299: #{tpu_custom_call.1} parent=5 // pred_region
        %s5173 = ssub.s32 %s105, 2
        // Predicated region
        $region301: #{tpu_custom_call.1} parent=299 // pred_check
          %p5174 = pneg %p1005
        $region302: #{tpu_custom_call.1} parent=299 // pred_check_branch
          %5176 = sbr.rel (%p5174) target = $region304
        $region303: #{tpu_custom_call.1} parent=299 // pred_region
          %p5177 = scmp.lt.s32.totalorder %s111, 1
          %s5178 = scalar_select %p5177, %s111, 1
          %s5179 = smul.addr %s5178, 2
          %s5180 = smul.addr %s5179, 4
          %s5181 = scalar_lea.vmem %s83, %s5180
        $region304: #{tpu_custom_call.1} parent=299 // pred_fallthru
          _
      $region300: #{tpu_custom_call.1} parent=5 // pred_fallthru
        _
    $region6: #{tpu_custom_call.1} parent=1 // loop_footer
      %s109 = sadd.s32 1, %s105
    $region7: #{tpu_custom_call.1} parent=1 // loop_footer_branch
      %104 = sbr.rel target = $region3
    $region8: #{tpu_custom_call.1} parent=1 // loop_exit
      _
    %5182 = vsyncpa [#allocation3], 1
    %s5183 = scalar_lea.sflag [#allocation3], 1
    %5184 = vsyncpa %s5183, 1
    %5185 = vsyncpa [#allocation5], 1
    %5186 = vsyncpa [#allocation8], 1
    %5187 = vsyncpa [#allocation11], 1
    %5188 = vsyncpa [#allocation14], 1
    %5189 = vsyncpa [#allocation17], 1
    %5190 = vsyncpa [#allocation20], 1
    %5191 = vsyncpa [#allocation23], 1
    %5192 = vsyncpa [#allocation26], 1
    %5193 = vsyncpa [#allocation29], 1
    %5194 = vsyncpa [#allocation32], 1
    %5195 = vsyncpa [#allocation35], 1
    %5196 = vsyncpa [#allocation38], 1
    %5197 = vsyncpa [#allocation41], 1

</llo_original>
